<compile_context>
chip_gen: v6e
topology: v6e:2x2x1
jax: 0.10.0
libtpu: 0.0.40
codegen_flags: <defaults>
</compile_context>

<pallas_src>
import functools

import jax
import jax.numpy as jnp
from jax import lax
from jax.experimental import pallas as pl
from jax.experimental.pallas import tpu as pltpu

# Scaled-down, module-consistent sizes (module: HIDDEN_SIZE=512, NUM_LAYERS=2).
HIDDEN_SIZE = 32
NUM_LAYERS = 2
VOCAB_SIZE = 16
BATCH = 2
SEQ = 8
DROPOUT = 0.2  # unused at inference (see TODO above)

_SUBLANE = 8
_LANE = 128


def _round_up(x, m):
    return (x + m - 1) // m * m


# ---------------------------------------------------------------------------
# Fused kernel: in-kernel embedding gather + per-layer hoisted input projection
# + serial recurrence, then fc epilogue.  Grid-less; everything VMEM-resident.
# ---------------------------------------------------------------------------
def char_lstm_kernel(num_layers, seq_len, batch, batch_p, hidden_p, *refs):
    """Refs layout:
      inputs : ids (B, T) int32 in SMEM,
               emb (Vr, Hp) f32,
               [w_ih_t (Hp,4Hp) bf16, w_hh_t (Hp,4Hp) bf16, bias (1,4Hp) f32] * L,
               w_fc_t (Hp, Vp) bf16, b_fc (1, Vp) f32
      outputs: logits (T*Bp, Vp) f32, h_n (L, Bp, Hp) f32, c_n (L, Bp, Hp) f32
      scratch: x (T*Bp, Hp) f32, xproj (T*Bp, 4Hp) f32, hs (T*Bp, Hp) bf16
    """
    L, T, B, Bp, Hp = num_layers, seq_len, batch, batch_p, hidden_p
    n_w = 3 * L
    ids_ref = refs[0]
    emb_ref = refs[1]
    layer_refs = refs[2:2 + n_w]
    wfc_ref, bfc_ref = refs[2 + n_w], refs[3 + n_w]
    logits_ref, hn_ref, cn_ref = refs[4 + n_w], refs[5 + n_w], refs[6 + n_w]
    x_scr, xproj_scr, hs_scr = refs[7 + n_w], refs[8 + n_w], refs[9 + n_w]

    # (0) In-kernel embedding: ids are scalars in SMEM, the table never leaves VMEM.
    #     No (T, B, H) activation ever touches HBM.
    x_scr[...] = jnp.zeros_like(x_scr)          # deterministic padded batch rows
    for t in range(T):                          # static tiny loop: T*B row copies
        for b in range(B):
            tok = ids_ref[b, t]                 # SMEM scalar read
            x_scr[pl.ds(t * Bp + b, 1), :] = emb_ref[pl.ds(tok, 1), :]

    x_in = x_scr[...].astype(jnp.bfloat16)      # (T*Bp, Hp) MXU lhs for layer 0

    unroll = T if T <= 8 else 4                 # full unroll only for tiny T

    for l in range(L):
        w_ih = layer_refs[3 * l][...]           # (Hp, 4Hp) bf16, gate-lane-aligned
        w_hh = layer_refs[3 * l + 1][...]       # (Hp, 4Hp) bf16
        bias = layer_refs[3 * l + 2][...]       # (1, 4Hp) f32  (b_ih + b_hh)

        # (a) Hoisted input projection: ONE big MXU matmul for all time steps.
        xproj_scr[...] = jnp.dot(
            x_in, w_ih, preferred_element_type=jnp.float32) + bias

        # (b) Serial recurrence: only h_prev @ W_hh^T stays inside the time loop.
        def step(t, carry):
            h_prev, c_prev = carry
            row = pl.multiple_of(t * Bp, Bp)
            gates = xproj_scr[pl.ds(row, Bp), :] + jnp.dot(
                h_prev.astype(jnp.bfloat16), w_hh,
                preferred_element_type=jnp.float32)      # (Bp, 4Hp), order i|f|g|o
            # Each gate owns its own lane-aligned 128-wide block -> plain vreg
            # selects, no XLU lane shifts on the serial path.
            i_g = jax.nn.sigmoid(gates[:, 0 * Hp:1 * Hp])
            f_g = jax.nn.sigmoid(gates[:, 1 * Hp:2 * Hp])
            g_g = jnp.tanh(gates[:, 2 * Hp:3 * Hp])
            o_g = jax.nn.sigmoid(gates[:, 3 * Hp:4 * Hp])
            c_new = f_g * c_prev + i_g * g_g
            h_new = o_g * jnp.tanh(c_new)
            # hs is only ever consumed as a bf16 MXU operand -> store bf16.
            hs_scr[pl.ds(row, Bp), :] = h_new.astype(jnp.bfloat16)
            return h_new, c_new

        h0 = jnp.zeros((Bp, Hp), jnp.float32)
        c0 = jnp.zeros((Bp, Hp), jnp.float32)
        h_last, c_last = lax.fori_loop(0, T, step, (h0, c0), unroll=unroll)

        hn_ref[l] = h_last
        cn_ref[l] = c_last
        x_in = hs_scr[...]                      # layer l -> l+1 hand-off, stays in VMEM

    # (c) fc head fused as epilogue: one (T*Bp, Hp) @ (Hp, Vp) matmul, 128-lane store.
    logits_ref[...] = jnp.dot(
        x_in, wfc_ref[...], preferred_element_type=jnp.float32) + bfc_ref[...]


# ---------------------------------------------------------------------------
# Parameter init (PyTorch-like layouts/dtypes; f32 masters).
# ---------------------------------------------------------------------------
def init_params(key, vocab_size=VOCAB_SIZE, hidden=HIDDEN_SIZE,
                num_layers=NUM_LAYERS):
    k = 1.0 / jnp.sqrt(jnp.float32(hidden))
    keys = jax.random.split(key, 1 + 4 * num_layers + 2)
    ki = iter(keys)
    params = {}
    # nn.Embedding(vocab_size, HIDDEN_SIZE): weight ~ N(0, 1)
    params["embed"] = jax.random.normal(next(ki), (vocab_size, hidden),
                                        jnp.float32)
    # nn.LSTM params per layer: W_ih (4H, H), W_hh (4H, H), b_ih (4H,), b_hh (4H,)
    for l in range(num_layers):
        params[f"wih{l}"] = jax.random.uniform(next(ki), (4 * hidden, hidden),
                                               jnp.float32, -k, k)
        params[f"whh{l}"] = jax.random.uniform(next(ki), (4 * hidden, hidden),
                                               jnp.float32, -k, k)
        params[f"bih{l}"] = jax.random.uniform(next(ki), (4 * hidden,),
                                               jnp.float32, -k, k)
        params[f"bhh{l}"] = jax.random.uniform(next(ki), (4 * hidden,),
                                               jnp.float32, -k, k)
    # nn.Linear(HIDDEN_SIZE, vocab_size)
    params["w_fc"] = jax.random.uniform(next(ki), (vocab_size, hidden),
                                        jnp.float32, -k, k)
    params["b_fc"] = jax.random.uniform(next(ki), (vocab_size,),
                                        jnp.float32, -k, k)
    return params


# ---------------------------------------------------------------------------
# One-time packing: transpose / pad / bf16-cast weights OUTSIDE the forward path.
# Each gate is placed in its own lane-aligned 128-wide block.
# ---------------------------------------------------------------------------
def prepare_params(params, hidden=HIDDEN_SIZE, vocab=VOCAB_SIZE,
                   num_layers=NUM_LAYERS):
    H, V = hidden, vocab
    Hp = _round_up(H, _LANE)
    Vp = _round_up(V, _LANE)
    Vr = _round_up(V, _SUBLANE)

    def pack_w(w):  # (4H, H) torch layout -> (Hp, 4Hp) bf16, gate-lane-aligned
        blocks = []
        for g in range(4):
            wg = jnp.transpose(w[g * H:(g + 1) * H, :])            # (H, H)
            blocks.append(jnp.pad(wg, ((0, Hp - H), (0, Hp - H))))  # (Hp, Hp)
        return jnp.concatenate(blocks, axis=1).astype(jnp.bfloat16)

    def pack_b(b):  # (4H,) -> (1, 4Hp) f32, gate-lane-aligned
        blocks = [jnp.pad(b[g * H:(g + 1) * H], (0, Hp - H)) for g in range(4)]
        return jnp.concatenate(blocks)[None, :].astype(jnp.float32)

    packed = {
        "embed": jnp.pad(params["embed"].astype(jnp.float32),
                         ((0, Vr - V), (0, Hp - H))),               # (Vr, Hp) f32
        "w_fc": jnp.pad(jnp.transpose(params["w_fc"]),
                        ((0, Hp - H), (0, Vp - V))).astype(jnp.bfloat16),
        "b_fc": jnp.pad(params["b_fc"], (0, Vp - V))[None, :].astype(jnp.float32),
    }
    for l in range(num_layers):
        packed[f"wih{l}"] = pack_w(params[f"wih{l}"])
        packed[f"whh{l}"] = pack_w(params[f"whh{l}"])
        packed[f"bias{l}"] = pack_b(params[f"bih{l}"] + params[f"bhh{l}"])
    return packed


# ---------------------------------------------------------------------------
# Full model wrapper (mirrors CharLSTM.forward, hidden=None -> zeros).
# ---------------------------------------------------------------------------
@jax.jit
def char_lstm_forward(x_ids, packed):
    """x_ids: (B, T) int32 ids. Returns (logits (B,T,V), (h_n, c_n) each (L,B,H))."""
    B, T = x_ids.shape
    H, V, L = HIDDEN_SIZE, VOCAB_SIZE, NUM_LAYERS
    Hp = _round_up(H, _LANE)                     # lane-aligned hidden / gate blocks
    Vp = _round_up(V, _LANE)                     # lane-padded fc output
    Bp = _round_up(max(B, _SUBLANE), _SUBLANE)   # sublane-padded batch

    args = [x_ids.astype(jnp.int32), packed["embed"]]
    for l in range(L):
        args += [packed[f"wih{l}"], packed[f"whh{l}"], packed[f"bias{l}"]]
    args += [packed["w_fc"], packed["b_fc"]]

    smem_spec = pl.BlockSpec(memory_space=pltpu.MemorySpace.SMEM)
    vmem_spec = pl.BlockSpec(memory_space=pltpu.MemorySpace.VMEM)

    logits_flat, h_n_p, c_n_p = pl.pallas_call(
        functools.partial(char_lstm_kernel, L, T, B, Bp, Hp),
        out_shape=(jax.ShapeDtypeStruct((T * Bp, Vp), jnp.float32),
                   jax.ShapeDtypeStruct((L, Bp, Hp), jnp.float32),
                   jax.ShapeDtypeStruct((L, Bp, Hp), jnp.float32)),
        in_specs=[smem_spec] + [vmem_spec] * (len(args) - 1),
        out_specs=(vmem_spec, vmem_spec, vmem_spec),
        scratch_shapes=[pltpu.VMEM((T * Bp, Hp), jnp.float32),      # gathered embeddings
                        pltpu.VMEM((T * Bp, 4 * Hp), jnp.float32),  # hoisted gate pre-acts
                        pltpu.VMEM((T * Bp, Hp), jnp.bfloat16)],    # per-layer hidden seq
        compiler_params=pltpu.CompilerParams(
            vmem_limit_bytes=48 * 1024 * 1024),   # <= ~48 MiB keeps headroom on v7x
    )(*args)

    # Output-side layout plumbing (tiny XLA glue): un-pad and reorder.
    logits = logits_flat.reshape(T, Bp, Vp).transpose(1, 0, 2)[:B, :, :V]
    hidden = (h_n_p[:, :B, :H], c_n_p[:, :B, :H])
    return logits, hidden


if __name__ == "__main__":
    key = jax.random.PRNGKey(0)
    pkey, xkey = jax.random.split(key)
    params = init_params(pkey)
    packed = prepare_params(params)          # one-time weight packing (not per call)
    x = jax.random.randint(xkey, (BATCH, SEQ), 0, VOCAB_SIZE, dtype=jnp.int32)

    logits, (h_n, c_n) = char_lstm_forward(x, packed)
    jax.block_until_ready((logits, h_n, c_n))

    assert logits.shape == (BATCH, SEQ, VOCAB_SIZE)
    assert h_n.shape == (NUM_LAYERS, BATCH, HIDDEN_SIZE)
    assert c_n.shape == (NUM_LAYERS, BATCH, HIDDEN_SIZE)
    assert bool(jnp.all(jnp.isfinite(logits)))
    print("KERNEL_OK")
</pallas_src>

<mosaic_0001>
module attributes {stable_mosaic.version = 11 : i64} {
  func.func @char_lstm_kernel(%arg0: memref<2x8xi32, #tpu.memory_space<smem>>, %arg1: memref<16x128xf32, #tpu.memory_space<vmem>>, %arg2: memref<128x512xbf16, #tpu.memory_space<vmem>>, %arg3: memref<128x512xbf16, #tpu.memory_space<vmem>>, %arg4: memref<1x512xf32, #tpu.memory_space<vmem>>, %arg5: memref<128x512xbf16, #tpu.memory_space<vmem>>, %arg6: memref<128x512xbf16, #tpu.memory_space<vmem>>, %arg7: memref<1x512xf32, #tpu.memory_space<vmem>>, %arg8: memref<128x128xbf16, #tpu.memory_space<vmem>>, %arg9: memref<1x128xf32, #tpu.memory_space<vmem>>, %arg10: memref<64x128xf32, #tpu.memory_space<vmem>>, %arg11: memref<2x8x128xf32, #tpu.memory_space<vmem>>, %arg12: memref<2x8x128xf32, #tpu.memory_space<vmem>>, %arg13: memref<64x128xf32, #tpu.memory_space<vmem>>, %arg14: memref<64x512xf32, #tpu.memory_space<vmem>>, %arg15: memref<64x128xbf16, #tpu.memory_space<vmem>>) attributes {dimension_semantics = [], scalar_prefetch = 0 : i64, scratch_operands = 3 : i64, tpu.core_type = #tpu.core_type<tc>} {
    %cst = arith.constant 0.000000e+00 : f32
    %0 = vector.broadcast %cst : f32 to vector<64x128xf32>
    %c0 = arith.constant 0 : index
    %c0_0 = arith.constant 0 : index
    %1 = vector.load %arg13[%c0, %c0_0] : memref<64x128xf32, #tpu.memory_space<vmem>>, vector<64x128xf32>
    tpu.vector_store %arg13[%c0, %c0_0], %0 {strides = array<i32>} : memref<64x128xf32, #tpu.memory_space<vmem>>, vector<64x128xf32>,
    %c0_1 = arith.constant 0 : index
    %c0_2 = arith.constant 0 : index
    %2 = memref.load %arg0[%c0_1, %c0_2] : memref<2x8xi32, #tpu.memory_space<smem>>
    %3 = arith.index_cast %2 : i32 to index
    %c0_3 = arith.constant 0 : index
    %4 = vector.load %arg1[%3, %c0_3] : memref<16x128xf32, #tpu.memory_space<vmem>>, vector<1x128xf32>
    %c0_4 = arith.constant 0 : index
    %c0_5 = arith.constant 0 : index
    %5 = vector.load %arg13[%c0_4, %c0_5] : memref<64x128xf32, #tpu.memory_space<vmem>>, vector<1x128xf32>
    tpu.vector_store %arg13[%c0_4, %c0_5], %4 {strides = array<i32>} : memref<64x128xf32, #tpu.memory_space<vmem>>, vector<1x128xf32>,
    %c1 = arith.constant 1 : index
    %c0_6 = arith.constant 0 : index
    %6 = memref.load %arg0[%c1, %c0_6] : memref<2x8xi32, #tpu.memory_space<smem>>
    %7 = arith.index_cast %6 : i32 to index
    %c0_7 = arith.constant 0 : index
    %8 = vector.load %arg1[%7, %c0_7] : memref<16x128xf32, #tpu.memory_space<vmem>>, vector<1x128xf32>
    %c1_8 = arith.constant 1 : index
    %c0_9 = arith.constant 0 : index
    %9 = vector.load %arg13[%c1_8, %c0_9] : memref<64x128xf32, #tpu.memory_space<vmem>>, vector<1x128xf32>
    tpu.vector_store %arg13[%c1_8, %c0_9], %8 {strides = array<i32>} : memref<64x128xf32, #tpu.memory_space<vmem>>, vector<1x128xf32>,
    %c0_10 = arith.constant 0 : index
    %c1_11 = arith.constant 1 : index
    %10 = memref.load %arg0[%c0_10, %c1_11] : memref<2x8xi32, #tpu.memory_space<smem>>
    %11 = arith.index_cast %10 : i32 to index
    %c0_12 = arith.constant 0 : index
    %12 = vector.load %arg1[%11, %c0_12] : memref<16x128xf32, #tpu.memory_space<vmem>>, vector<1x128xf32>
    %c8 = arith.constant 8 : index
    %c0_13 = arith.constant 0 : index
    %13 = vector.load %arg13[%c8, %c0_13] : memref<64x128xf32, #tpu.memory_space<vmem>>, vector<1x128xf32>
    tpu.vector_store %arg13[%c8, %c0_13], %12 {strides = array<i32>} : memref<64x128xf32, #tpu.memory_space<vmem>>, vector<1x128xf32>,
    %c1_14 = arith.constant 1 : index
    %c1_15 = arith.constant 1 : index
    %14 = memref.load %arg0[%c1_14, %c1_15] : memref<2x8xi32, #tpu.memory_space<smem>>
    %15 = arith.index_cast %14 : i32 to index
    %c0_16 = arith.constant 0 : index
    %16 = vector.load %arg1[%15, %c0_16] : memref<16x128xf32, #tpu.memory_space<vmem>>, vector<1x128xf32>
    %c9 = arith.constant 9 : index
    %c0_17 = arith.constant 0 : index
    %17 = vector.load %arg13[%c9, %c0_17] : memref<64x128xf32, #tpu.memory_space<vmem>>, vector<1x128xf32>
    tpu.vector_store %arg13[%c9, %c0_17], %16 {strides = array<i32>} : memref<64x128xf32, #tpu.memory_space<vmem>>, vector<1x128xf32>,
    %c0_18 = arith.constant 0 : index
    %c2 = arith.constant 2 : index
    %18 = memref.load %arg0[%c0_18, %c2] : memref<2x8xi32, #tpu.memory_space<smem>>
    %19 = arith.index_cast %18 : i32 to index
    %c0_19 = arith.constant 0 : index
    %20 = vector.load %arg1[%19, %c0_19] : memref<16x128xf32, #tpu.memory_space<vmem>>, vector<1x128xf32>
    %c16 = arith.constant 16 : index
    %c0_20 = arith.constant 0 : index
    %21 = vector.load %arg13[%c16, %c0_20] : memref<64x128xf32, #tpu.memory_space<vmem>>, vector<1x128xf32>
    tpu.vector_store %arg13[%c16, %c0_20], %20 {strides = array<i32>} : memref<64x128xf32, #tpu.memory_space<vmem>>, vector<1x128xf32>,
    %c1_21 = arith.constant 1 : index
    %c2_22 = arith.constant 2 : index
    %22 = memref.load %arg0[%c1_21, %c2_22] : memref<2x8xi32, #tpu.memory_space<smem>>
    %23 = arith.index_cast %22 : i32 to index
    %c0_23 = arith.constant 0 : index
    %24 = vector.load %arg1[%23, %c0_23] : memref<16x128xf32, #tpu.memory_space<vmem>>, vector<1x128xf32>
    %c17 = arith.constant 17 : index
    %c0_24 = arith.constant 0 : index
    %25 = vector.load %arg13[%c17, %c0_24] : memref<64x128xf32, #tpu.memory_space<vmem>>, vector<1x128xf32>
    tpu.vector_store %arg13[%c17, %c0_24], %24 {strides = array<i32>} : memref<64x128xf32, #tpu.memory_space<vmem>>, vector<1x128xf32>,
    %c0_25 = arith.constant 0 : index
    %c3 = arith.constant 3 : index
    %26 = memref.load %arg0[%c0_25, %c3] : memref<2x8xi32, #tpu.memory_space<smem>>
    %27 = arith.index_cast %26 : i32 to index
    %c0_26 = arith.constant 0 : index
    %28 = vector.load %arg1[%27, %c0_26] : memref<16x128xf32, #tpu.memory_space<vmem>>, vector<1x128xf32>
    %c24 = arith.constant 24 : index
    %c0_27 = arith.constant 0 : index
    %29 = vector.load %arg13[%c24, %c0_27] : memref<64x128xf32, #tpu.memory_space<vmem>>, vector<1x128xf32>
    tpu.vector_store %arg13[%c24, %c0_27], %28 {strides = array<i32>} : memref<64x128xf32, #tpu.memory_space<vmem>>, vector<1x128xf32>,
    %c1_28 = arith.constant 1 : index
    %c3_29 = arith.constant 3 : index
    %30 = memref.load %arg0[%c1_28, %c3_29] : memref<2x8xi32, #tpu.memory_space<smem>>
    %31 = arith.index_cast %30 : i32 to index
    %c0_30 = arith.constant 0 : index
    %32 = vector.load %arg1[%31, %c0_30] : memref<16x128xf32, #tpu.memory_space<vmem>>, vector<1x128xf32>
    %c25 = arith.constant 25 : index
    %c0_31 = arith.constant 0 : index
    %33 = vector.load %arg13[%c25, %c0_31] : memref<64x128xf32, #tpu.memory_space<vmem>>, vector<1x128xf32>
    tpu.vector_store %arg13[%c25, %c0_31], %32 {strides = array<i32>} : memref<64x128xf32, #tpu.memory_space<vmem>>, vector<1x128xf32>,
    %c0_32 = arith.constant 0 : index
    %c4 = arith.constant 4 : index
    %34 = memref.load %arg0[%c0_32, %c4] : memref<2x8xi32, #tpu.memory_space<smem>>
    %35 = arith.index_cast %34 : i32 to index
    %c0_33 = arith.constant 0 : index
    %36 = vector.load %arg1[%35, %c0_33] : memref<16x128xf32, #tpu.memory_space<vmem>>, vector<1x128xf32>
    %c32 = arith.constant 32 : index
    %c0_34 = arith.constant 0 : index
    %37 = vector.load %arg13[%c32, %c0_34] : memref<64x128xf32, #tpu.memory_space<vmem>>, vector<1x128xf32>
    tpu.vector_store %arg13[%c32, %c0_34], %36 {strides = array<i32>} : memref<64x128xf32, #tpu.memory_space<vmem>>, vector<1x128xf32>,
    %c1_35 = arith.constant 1 : index
    %c4_36 = arith.constant 4 : index
    %38 = memref.load %arg0[%c1_35, %c4_36] : memref<2x8xi32, #tpu.memory_space<smem>>
    %39 = arith.index_cast %38 : i32 to index
    %c0_37 = arith.constant 0 : index
    %40 = vector.load %arg1[%39, %c0_37] : memref<16x128xf32, #tpu.memory_space<vmem>>, vector<1x128xf32>
    %c33 = arith.constant 33 : index
    %c0_38 = arith.constant 0 : index
    %41 = vector.load %arg13[%c33, %c0_38] : memref<64x128xf32, #tpu.memory_space<vmem>>, vector<1x128xf32>
    tpu.vector_store %arg13[%c33, %c0_38], %40 {strides = array<i32>} : memref<64x128xf32, #tpu.memory_space<vmem>>, vector<1x128xf32>,
    %c0_39 = arith.constant 0 : index
    %c5 = arith.constant 5 : index
    %42 = memref.load %arg0[%c0_39, %c5] : memref<2x8xi32, #tpu.memory_space<smem>>
    %43 = arith.index_cast %42 : i32 to index
    %c0_40 = arith.constant 0 : index
    %44 = vector.load %arg1[%43, %c0_40] : memref<16x128xf32, #tpu.memory_space<vmem>>, vector<1x128xf32>
    %c40 = arith.constant 40 : index
    %c0_41 = arith.constant 0 : index
    %45 = vector.load %arg13[%c40, %c0_41] : memref<64x128xf32, #tpu.memory_space<vmem>>, vector<1x128xf32>
    tpu.vector_store %arg13[%c40, %c0_41], %44 {strides = array<i32>} : memref<64x128xf32, #tpu.memory_space<vmem>>, vector<1x128xf32>,
    %c1_42 = arith.constant 1 : index
    %c5_43 = arith.constant 5 : index
    %46 = memref.load %arg0[%c1_42, %c5_43] : memref<2x8xi32, #tpu.memory_space<smem>>
    %47 = arith.index_cast %46 : i32 to index
    %c0_44 = arith.constant 0 : index
    %48 = vector.load %arg1[%47, %c0_44] : memref<16x128xf32, #tpu.memory_space<vmem>>, vector<1x128xf32>
    %c41 = arith.constant 41 : index
    %c0_45 = arith.constant 0 : index
    %49 = vector.load %arg13[%c41, %c0_45] : memref<64x128xf32, #tpu.memory_space<vmem>>, vector<1x128xf32>
    tpu.vector_store %arg13[%c41, %c0_45], %48 {strides = array<i32>} : memref<64x128xf32, #tpu.memory_space<vmem>>, vector<1x128xf32>,
    %c0_46 = arith.constant 0 : index
    %c6 = arith.constant 6 : index
    %50 = memref.load %arg0[%c0_46, %c6] : memref<2x8xi32, #tpu.memory_space<smem>>
    %51 = arith.index_cast %50 : i32 to index
    %c0_47 = arith.constant 0 : index
    %52 = vector.load %arg1[%51, %c0_47] : memref<16x128xf32, #tpu.memory_space<vmem>>, vector<1x128xf32>
    %c48 = arith.constant 48 : index
    %c0_48 = arith.constant 0 : index
    %53 = vector.load %arg13[%c48, %c0_48] : memref<64x128xf32, #tpu.memory_space<vmem>>, vector<1x128xf32>
    tpu.vector_store %arg13[%c48, %c0_48], %52 {strides = array<i32>} : memref<64x128xf32, #tpu.memory_space<vmem>>, vector<1x128xf32>,
    %c1_49 = arith.constant 1 : index
    %c6_50 = arith.constant 6 : index
    %54 = memref.load %arg0[%c1_49, %c6_50] : memref<2x8xi32, #tpu.memory_space<smem>>
    %55 = arith.index_cast %54 : i32 to index
    %c0_51 = arith.constant 0 : index
    %56 = vector.load %arg1[%55, %c0_51] : memref<16x128xf32, #tpu.memory_space<vmem>>, vector<1x128xf32>
    %c49 = arith.constant 49 : index
    %c0_52 = arith.constant 0 : index
    %57 = vector.load %arg13[%c49, %c0_52] : memref<64x128xf32, #tpu.memory_space<vmem>>, vector<1x128xf32>
    tpu.vector_store %arg13[%c49, %c0_52], %56 {strides = array<i32>} : memref<64x128xf32, #tpu.memory_space<vmem>>, vector<1x128xf32>,
    %c0_53 = arith.constant 0 : index
    %c7 = arith.constant 7 : index
    %58 = memref.load %arg0[%c0_53, %c7] : memref<2x8xi32, #tpu.memory_space<smem>>
    %59 = arith.index_cast %58 : i32 to index
    %c0_54 = arith.constant 0 : index
    %60 = vector.load %arg1[%59, %c0_54] : memref<16x128xf32, #tpu.memory_space<vmem>>, vector<1x128xf32>
    %c56 = arith.constant 56 : index
    %c0_55 = arith.constant 0 : index
    %61 = vector.load %arg13[%c56, %c0_55] : memref<64x128xf32, #tpu.memory_space<vmem>>, vector<1x128xf32>
    tpu.vector_store %arg13[%c56, %c0_55], %60 {strides = array<i32>} : memref<64x128xf32, #tpu.memory_space<vmem>>, vector<1x128xf32>,
    %c1_56 = arith.constant 1 : index
    %c7_57 = arith.constant 7 : index
    %62 = memref.load %arg0[%c1_56, %c7_57] : memref<2x8xi32, #tpu.memory_space<smem>>
    %63 = arith.index_cast %62 : i32 to index
    %c0_58 = arith.constant 0 : index
    %64 = vector.load %arg1[%63, %c0_58] : memref<16x128xf32, #tpu.memory_space<vmem>>, vector<1x128xf32>
    %c57 = arith.constant 57 : index
    %c0_59 = arith.constant 0 : index
    %65 = vector.load %arg13[%c57, %c0_59] : memref<64x128xf32, #tpu.memory_space<vmem>>, vector<1x128xf32>
    tpu.vector_store %arg13[%c57, %c0_59], %64 {strides = array<i32>} : memref<64x128xf32, #tpu.memory_space<vmem>>, vector<1x128xf32>,
    %c0_60 = arith.constant 0 : index
    %c0_61 = arith.constant 0 : index
    %66 = vector.load %arg13[%c0_60, %c0_61] : memref<64x128xf32, #tpu.memory_space<vmem>>, vector<64x128xf32>
    %67 = arith.truncf %66 : vector<64x128xf32> to vector<64x128xbf16>
    %c0_62 = arith.constant 0 : index
    %c0_63 = arith.constant 0 : index
    %68 = vector.load %arg2[%c0_62, %c0_63] : memref<128x512xbf16, #tpu.memory_space<vmem>>, vector<128x512xbf16>
    %c0_64 = arith.constant 0 : index
    %c0_65 = arith.constant 0 : index
    %69 = vector.load %arg3[%c0_64, %c0_65] : memref<128x512xbf16, #tpu.memory_space<vmem>>, vector<128x512xbf16>
    %c0_66 = arith.constant 0 : index
    %c0_67 = arith.constant 0 : index
    %70 = vector.load %arg4[%c0_66, %c0_67] : memref<1x512xf32, #tpu.memory_space<vmem>>, vector<1x512xf32>
    %cst_68 = arith.constant dense<0.000000e+00> : vector<64x512xf32>
    %71 = tpu.matmul %67, %68, %cst_68 {dimension_numbers = #tpu.dot_dimension_numbers<[1], [0], [0], [1], [0, 0, 1, 1], [], []>} : vector<64x128xbf16>, vector<128x512xbf16>, vector<64x512xf32> -> vector<64x512xf32>
    %72 = vector.broadcast %70 : vector<1x512xf32> to vector<64x512xf32>
    %73 = arith.addf %71, %72 : vector<64x512xf32>
    %c0_69 = arith.constant 0 : index
    %c0_70 = arith.constant 0 : index
    %74 = vector.load %arg14[%c0_69, %c0_70] : memref<64x512xf32, #tpu.memory_space<vmem>>, vector<64x512xf32>
    tpu.vector_store %arg14[%c0_69, %c0_70], %73 {strides = array<i32>} : memref<64x512xf32, #tpu.memory_space<vmem>>, vector<64x512xf32>,
    %cst_71 = arith.constant 0.000000e+00 : f32
    %75 = vector.broadcast %cst_71 : f32 to vector<8x128xf32>
    %cst_72 = arith.constant 0.000000e+00 : f32
    %76 = vector.broadcast %cst_72 : f32 to vector<8x128xf32>
    %c0_i32 = arith.constant 0 : i32
    %c8_i32 = arith.constant 8 : i32
    %77 = arith.muli %c0_i32, %c8_i32 : i32
    %78 = tpu.assume_multiple %77, 8 : i32
    %79 = arith.index_cast %78 : i32 to index
    %c0_73 = arith.constant 0 : index
    %80 = vector.load %arg14[%79, %c0_73] : memref<64x512xf32, #tpu.memory_space<vmem>>, vector<8x512xf32>
    %81 = arith.truncf %75 : vector<8x128xf32> to vector<8x128xbf16>
    %cst_74 = arith.constant dense<0.000000e+00> : vector<8x512xf32>
    %82 = tpu.matmul %81, %69, %cst_74 {dimension_numbers = #tpu.dot_dimension_numbers<[1], [0], [0], [1], [0, 0, 1, 1], [], []>} : vector<8x128xbf16>, vector<128x512xbf16>, vector<8x512xf32> -> vector<8x512xf32>
    %83 = arith.addf %80, %82 : vector<8x512xf32>
    %84 = vector.extract_strided_slice %83 {offsets = [0, 0], sizes = [8, 128], strides = [1, 1]} : vector<8x512xf32> to vector<8x128xf32>
    %85 = arith.negf %84 : vector<8x128xf32>
    %86 = math.exp %85 : vector<8x128xf32>
    %cst_75 = arith.constant 1.000000e+00 : f32
    %87 = vector.broadcast %cst_75 : f32 to vector<8x128xf32>
    %88 = arith.addf %87, %86 : vector<8x128xf32>
    %89 = arith.divf %87, %88 : vector<8x128xf32>
    %90 = vector.extract_strided_slice %83 {offsets = [0, 128], sizes = [8, 128], strides = [1, 1]} : vector<8x512xf32> to vector<8x128xf32>
    %91 = arith.negf %90 : vector<8x128xf32>
    %92 = math.exp %91 : vector<8x128xf32>
    %cst_76 = arith.constant 1.000000e+00 : f32
    %93 = vector.broadcast %cst_76 : f32 to vector<8x128xf32>
    %94 = arith.addf %93, %92 : vector<8x128xf32>
    %95 = arith.divf %93, %94 : vector<8x128xf32>
    %96 = vector.extract_strided_slice %83 {offsets = [0, 256], sizes = [8, 128], strides = [1, 1]} : vector<8x512xf32> to vector<8x128xf32>
    %97 = math.tanh %96 : vector<8x128xf32>
    %98 = vector.extract_strided_slice %83 {offsets = [0, 384], sizes = [8, 128], strides = [1, 1]} : vector<8x512xf32> to vector<8x128xf32>
    %99 = arith.negf %98 : vector<8x128xf32>
    %100 = math.exp %99 : vector<8x128xf32>
    %cst_77 = arith.constant 1.000000e+00 : f32
    %101 = vector.broadcast %cst_77 : f32 to vector<8x128xf32>
    %102 = arith.addf %101, %100 : vector<8x128xf32>
    %103 = arith.divf %101, %102 : vector<8x128xf32>
    %104 = arith.mulf %95, %76 : vector<8x128xf32>
    %105 = arith.mulf %89, %97 : vector<8x128xf32>
    %106 = arith.addf %104, %105 : vector<8x128xf32>
    %107 = math.tanh %106 : vector<8x128xf32>
    %108 = arith.mulf %103, %107 : vector<8x128xf32>
    %109 = arith.truncf %108 : vector<8x128xf32> to vector<8x128xbf16>
    %110 = arith.index_cast %78 : i32 to index
    %c0_78 = arith.constant 0 : index
    %111 = vector.load %arg15[%110, %c0_78] : memref<64x128xbf16, #tpu.memory_space<vmem>>, vector<8x128xbf16>
    tpu.vector_store %arg15[%110, %c0_78], %109 {strides = array<i32>} : memref<64x128xbf16, #tpu.memory_space<vmem>>, vector<8x128xbf16>,
    %c1_i32 = arith.constant 1 : i32
    %c8_i32_79 = arith.constant 8 : i32
    %112 = arith.muli %c1_i32, %c8_i32_79 : i32
    %113 = tpu.assume_multiple %112, 8 : i32
    %114 = arith.index_cast %113 : i32 to index
    %c0_80 = arith.constant 0 : index
    %115 = vector.load %arg14[%114, %c0_80] : memref<64x512xf32, #tpu.memory_space<vmem>>, vector<8x512xf32>
    %116 = arith.truncf %108 : vector<8x128xf32> to vector<8x128xbf16>
    %cst_81 = arith.constant dense<0.000000e+00> : vector<8x512xf32>
    %117 = tpu.matmul %116, %69, %cst_81 {dimension_numbers = #tpu.dot_dimension_numbers<[1], [0], [0], [1], [0, 0, 1, 1], [], []>} : vector<8x128xbf16>, vector<128x512xbf16>, vector<8x512xf32> -> vector<8x512xf32>
    %118 = arith.addf %115, %117 : vector<8x512xf32>
    %119 = vector.extract_strided_slice %118 {offsets = [0, 0], sizes = [8, 128], strides = [1, 1]} : vector<8x512xf32> to vector<8x128xf32>
    %120 = arith.negf %119 : vector<8x128xf32>
    %121 = math.exp %120 : vector<8x128xf32>
    %cst_82 = arith.constant 1.000000e+00 : f32
    %122 = vector.broadcast %cst_82 : f32 to vector<8x128xf32>
    %123 = arith.addf %122, %121 : vector<8x128xf32>
    %124 = arith.divf %122, %123 : vector<8x128xf32>
    %125 = vector.extract_strided_slice %118 {offsets = [0, 128], sizes = [8, 128], strides = [1, 1]} : vector<8x512xf32> to vector<8x128xf32>
    %126 = arith.negf %125 : vector<8x128xf32>
    %127 = math.exp %126 : vector<8x128xf32>
    %cst_83 = arith.constant 1.000000e+00 : f32
    %128 = vector.broadcast %cst_83 : f32 to vector<8x128xf32>
    %129 = arith.addf %128, %127 : vector<8x128xf32>
    %130 = arith.divf %128, %129 : vector<8x128xf32>
    %131 = vector.extract_strided_slice %118 {offsets = [0, 256], sizes = [8, 128], strides = [1, 1]} : vector<8x512xf32> to vector<8x128xf32>
    %132 = math.tanh %131 : vector<8x128xf32>
    %133 = vector.extract_strided_slice %118 {offsets = [0, 384], sizes = [8, 128], strides = [1, 1]} : vector<8x512xf32> to vector<8x128xf32>
    %134 = arith.negf %133 : vector<8x128xf32>
    %135 = math.exp %134 : vector<8x128xf32>
    %cst_84 = arith.constant 1.000000e+00 : f32
    %136 = vector.broadcast %cst_84 : f32 to vector<8x128xf32>
    %137 = arith.addf %136, %135 : vector<8x128xf32>
    %138 = arith.divf %136, %137 : vector<8x128xf32>
    %139 = arith.mulf %130, %106 : vector<8x128xf32>
    %140 = arith.mulf %124, %132 : vector<8x128xf32>
    %141 = arith.addf %139, %140 : vector<8x128xf32>
    %142 = math.tanh %141 : vector<8x128xf32>
    %143 = arith.mulf %138, %142 : vector<8x128xf32>
    %144 = arith.truncf %143 : vector<8x128xf32> to vector<8x128xbf16>
    %145 = arith.index_cast %113 : i32 to index
    %c0_85 = arith.constant 0 : index
    %146 = vector.load %arg15[%145, %c0_85] : memref<64x128xbf16, #tpu.memory_space<vmem>>, vector<8x128xbf16>
    tpu.vector_store %arg15[%145, %c0_85], %144 {strides = array<i32>} : memref<64x128xbf16, #tpu.memory_space<vmem>>, vector<8x128xbf16>,
    %c2_i32 = arith.constant 2 : i32
    %c8_i32_86 = arith.constant 8 : i32
    %147 = arith.muli %c2_i32, %c8_i32_86 : i32
    %148 = tpu.assume_multiple %147, 8 : i32
    %149 = arith.index_cast %148 : i32 to index
    %c0_87 = arith.constant 0 : index
    %150 = vector.load %arg14[%149, %c0_87] : memref<64x512xf32, #tpu.memory_space<vmem>>, vector<8x512xf32>
    %151 = arith.truncf %143 : vector<8x128xf32> to vector<8x128xbf16>
    %cst_88 = arith.constant dense<0.000000e+00> : vector<8x512xf32>
    %152 = tpu.matmul %151, %69, %cst_88 {dimension_numbers = #tpu.dot_dimension_numbers<[1], [0], [0], [1], [0, 0, 1, 1], [], []>} : vector<8x128xbf16>, vector<128x512xbf16>, vector<8x512xf32> -> vector<8x512xf32>
    %153 = arith.addf %150, %152 : vector<8x512xf32>
    %154 = vector.extract_strided_slice %153 {offsets = [0, 0], sizes = [8, 128], strides = [1, 1]} : vector<8x512xf32> to vector<8x128xf32>
    %155 = arith.negf %154 : vector<8x128xf32>
    %156 = math.exp %155 : vector<8x128xf32>
    %cst_89 = arith.constant 1.000000e+00 : f32
    %157 = vector.broadcast %cst_89 : f32 to vector<8x128xf32>
    %158 = arith.addf %157, %156 : vector<8x128xf32>
    %159 = arith.divf %157, %158 : vector<8x128xf32>
    %160 = vector.extract_strided_slice %153 {offsets = [0, 128], sizes = [8, 128], strides = [1, 1]} : vector<8x512xf32> to vector<8x128xf32>
    %161 = arith.negf %160 : vector<8x128xf32>
    %162 = math.exp %161 : vector<8x128xf32>
    %cst_90 = arith.constant 1.000000e+00 : f32
    %163 = vector.broadcast %cst_90 : f32 to vector<8x128xf32>
    %164 = arith.addf %163, %162 : vector<8x128xf32>
    %165 = arith.divf %163, %164 : vector<8x128xf32>
    %166 = vector.extract_strided_slice %153 {offsets = [0, 256], sizes = [8, 128], strides = [1, 1]} : vector<8x512xf32> to vector<8x128xf32>
    %167 = math.tanh %166 : vector<8x128xf32>
    %168 = vector.extract_strided_slice %153 {offsets = [0, 384], sizes = [8, 128], strides = [1, 1]} : vector<8x512xf32> to vector<8x128xf32>
    %169 = arith.negf %168 : vector<8x128xf32>
    %170 = math.exp %169 : vector<8x128xf32>
    %cst_91 = arith.constant 1.000000e+00 : f32
    %171 = vector.broadcast %cst_91 : f32 to vector<8x128xf32>
    %172 = arith.addf %171, %170 : vector<8x128xf32>
    %173 = arith.divf %171, %172 : vector<8x128xf32>
    %174 = arith.mulf %165, %141 : vector<8x128xf32>
    %175 = arith.mulf %159, %167 : vector<8x128xf32>
    %176 = arith.addf %174, %175 : vector<8x128xf32>
    %177 = math.tanh %176 : vector<8x128xf32>
    %178 = arith.mulf %173, %177 : vector<8x128xf32>
    %179 = arith.truncf %178 : vector<8x128xf32> to vector<8x128xbf16>
    %180 = arith.index_cast %148 : i32 to index
    %c0_92 = arith.constant 0 : index
    %181 = vector.load %arg15[%180, %c0_92] : memref<64x128xbf16, #tpu.memory_space<vmem>>, vector<8x128xbf16>
    tpu.vector_store %arg15[%180, %c0_92], %179 {strides = array<i32>} : memref<64x128xbf16, #tpu.memory_space<vmem>>, vector<8x128xbf16>,
    %c3_i32 = arith.constant 3 : i32
    %c8_i32_93 = arith.constant 8 : i32
    %182 = arith.muli %c3_i32, %c8_i32_93 : i32
    %183 = tpu.assume_multiple %182, 8 : i32
    %184 = arith.index_cast %183 : i32 to index
    %c0_94 = arith.constant 0 : index
    %185 = vector.load %arg14[%184, %c0_94] : memref<64x512xf32, #tpu.memory_space<vmem>>, vector<8x512xf32>
    %186 = arith.truncf %178 : vector<8x128xf32> to vector<8x128xbf16>
    %cst_95 = arith.constant dense<0.000000e+00> : vector<8x512xf32>
    %187 = tpu.matmul %186, %69, %cst_95 {dimension_numbers = #tpu.dot_dimension_numbers<[1], [0], [0], [1], [0, 0, 1, 1], [], []>} : vector<8x128xbf16>, vector<128x512xbf16>, vector<8x512xf32> -> vector<8x512xf32>
    %188 = arith.addf %185, %187 : vector<8x512xf32>
    %189 = vector.extract_strided_slice %188 {offsets = [0, 0], sizes = [8, 128], strides = [1, 1]} : vector<8x512xf32> to vector<8x128xf32>
    %190 = arith.negf %189 : vector<8x128xf32>
    %191 = math.exp %190 : vector<8x128xf32>
    %cst_96 = arith.constant 1.000000e+00 : f32
    %192 = vector.broadcast %cst_96 : f32 to vector<8x128xf32>
    %193 = arith.addf %192, %191 : vector<8x128xf32>
    %194 = arith.divf %192, %193 : vector<8x128xf32>
    %195 = vector.extract_strided_slice %188 {offsets = [0, 128], sizes = [8, 128], strides = [1, 1]} : vector<8x512xf32> to vector<8x128xf32>
    %196 = arith.negf %195 : vector<8x128xf32>
    %197 = math.exp %196 : vector<8x128xf32>
    %cst_97 = arith.constant 1.000000e+00 : f32
    %198 = vector.broadcast %cst_97 : f32 to vector<8x128xf32>
    %199 = arith.addf %198, %197 : vector<8x128xf32>
    %200 = arith.divf %198, %199 : vector<8x128xf32>
    %201 = vector.extract_strided_slice %188 {offsets = [0, 256], sizes = [8, 128], strides = [1, 1]} : vector<8x512xf32> to vector<8x128xf32>
    %202 = math.tanh %201 : vector<8x128xf32>
    %203 = vector.extract_strided_slice %188 {offsets = [0, 384], sizes = [8, 128], strides = [1, 1]} : vector<8x512xf32> to vector<8x128xf32>
    %204 = arith.negf %203 : vector<8x128xf32>
    %205 = math.exp %204 : vector<8x128xf32>
    %cst_98 = arith.constant 1.000000e+00 : f32
    %206 = vector.broadcast %cst_98 : f32 to vector<8x128xf32>
    %207 = arith.addf %206, %205 : vector<8x128xf32>
    %208 = arith.divf %206, %207 : vector<8x128xf32>
    %209 = arith.mulf %200, %176 : vector<8x128xf32>
    %210 = arith.mulf %194, %202 : vector<8x128xf32>
    %211 = arith.addf %209, %210 : vector<8x128xf32>
    %212 = math.tanh %211 : vector<8x128xf32>
    %213 = arith.mulf %208, %212 : vector<8x128xf32>
    %214 = arith.truncf %213 : vector<8x128xf32> to vector<8x128xbf16>
    %215 = arith.index_cast %183 : i32 to index
    %c0_99 = arith.constant 0 : index
    %216 = vector.load %arg15[%215, %c0_99] : memref<64x128xbf16, #tpu.memory_space<vmem>>, vector<8x128xbf16>
    tpu.vector_store %arg15[%215, %c0_99], %214 {strides = array<i32>} : memref<64x128xbf16, #tpu.memory_space<vmem>>, vector<8x128xbf16>,
    %c4_i32 = arith.constant 4 : i32
    %c8_i32_100 = arith.constant 8 : i32
    %217 = arith.muli %c4_i32, %c8_i32_100 : i32
    %218 = tpu.assume_multiple %217, 8 : i32
    %219 = arith.index_cast %218 : i32 to index
    %c0_101 = arith.constant 0 : index
    %220 = vector.load %arg14[%219, %c0_101] : memref<64x512xf32, #tpu.memory_space<vmem>>, vector<8x512xf32>
    %221 = arith.truncf %213 : vector<8x128xf32> to vector<8x128xbf16>
    %cst_102 = arith.constant dense<0.000000e+00> : vector<8x512xf32>
    %222 = tpu.matmul %221, %69, %cst_102 {dimension_numbers = #tpu.dot_dimension_numbers<[1], [0], [0], [1], [0, 0, 1, 1], [], []>} : vector<8x128xbf16>, vector<128x512xbf16>, vector<8x512xf32> -> vector<8x512xf32>
    %223 = arith.addf %220, %222 : vector<8x512xf32>
    %224 = vector.extract_strided_slice %223 {offsets = [0, 0], sizes = [8, 128], strides = [1, 1]} : vector<8x512xf32> to vector<8x128xf32>
    %225 = arith.negf %224 : vector<8x128xf32>
    %226 = math.exp %225 : vector<8x128xf32>
    %cst_103 = arith.constant 1.000000e+00 : f32
    %227 = vector.broadcast %cst_103 : f32 to vector<8x128xf32>
    %228 = arith.addf %227, %226 : vector<8x128xf32>
    %229 = arith.divf %227, %228 : vector<8x128xf32>
    %230 = vector.extract_strided_slice %223 {offsets = [0, 128], sizes = [8, 128], strides = [1, 1]} : vector<8x512xf32> to vector<8x128xf32>
    %231 = arith.negf %230 : vector<8x128xf32>
    %232 = math.exp %231 : vector<8x128xf32>
    %cst_104 = arith.constant 1.000000e+00 : f32
    %233 = vector.broadcast %cst_104 : f32 to vector<8x128xf32>
    %234 = arith.addf %233, %232 : vector<8x128xf32>
    %235 = arith.divf %233, %234 : vector<8x128xf32>
    %236 = vector.extract_strided_slice %223 {offsets = [0, 256], sizes = [8, 128], strides = [1, 1]} : vector<8x512xf32> to vector<8x128xf32>
    %237 = math.tanh %236 : vector<8x128xf32>
    %238 = vector.extract_strided_slice %223 {offsets = [0, 384], sizes = [8, 128], strides = [1, 1]} : vector<8x512xf32> to vector<8x128xf32>
    %239 = arith.negf %238 : vector<8x128xf32>
    %240 = math.exp %239 : vector<8x128xf32>
    %cst_105 = arith.constant 1.000000e+00 : f32
    %241 = vector.broadcast %cst_105 : f32 to vector<8x128xf32>
    %242 = arith.addf %241, %240 : vector<8x128xf32>
    %243 = arith.divf %241, %242 : vector<8x128xf32>
    %244 = arith.mulf %235, %211 : vector<8x128xf32>
    %245 = arith.mulf %229, %237 : vector<8x128xf32>
    %246 = arith.addf %244, %245 : vector<8x128xf32>
    %247 = math.tanh %246 : vector<8x128xf32>
    %248 = arith.mulf %243, %247 : vector<8x128xf32>
    %249 = arith.truncf %248 : vector<8x128xf32> to vector<8x128xbf16>
    %250 = arith.index_cast %218 : i32 to index
    %c0_106 = arith.constant 0 : index
    %251 = vector.load %arg15[%250, %c0_106] : memref<64x128xbf16, #tpu.memory_space<vmem>>, vector<8x128xbf16>
    tpu.vector_store %arg15[%250, %c0_106], %249 {strides = array<i32>} : memref<64x128xbf16, #tpu.memory_space<vmem>>, vector<8x128xbf16>,
    %c5_i32 = arith.constant 5 : i32
    %c8_i32_107 = arith.constant 8 : i32
    %252 = arith.muli %c5_i32, %c8_i32_107 : i32
    %253 = tpu.assume_multiple %252, 8 : i32
    %254 = arith.index_cast %253 : i32 to index
    %c0_108 = arith.constant 0 : index
    %255 = vector.load %arg14[%254, %c0_108] : memref<64x512xf32, #tpu.memory_space<vmem>>, vector<8x512xf32>
    %256 = arith.truncf %248 : vector<8x128xf32> to vector<8x128xbf16>
    %cst_109 = arith.constant dense<0.000000e+00> : vector<8x512xf32>
    %257 = tpu.matmul %256, %69, %cst_109 {dimension_numbers = #tpu.dot_dimension_numbers<[1], [0], [0], [1], [0, 0, 1, 1], [], []>} : vector<8x128xbf16>, vector<128x512xbf16>, vector<8x512xf32> -> vector<8x512xf32>
    %258 = arith.addf %255, %257 : vector<8x512xf32>
    %259 = vector.extract_strided_slice %258 {offsets = [0, 0], sizes = [8, 128], strides = [1, 1]} : vector<8x512xf32> to vector<8x128xf32>
    %260 = arith.negf %259 : vector<8x128xf32>
    %261 = math.exp %260 : vector<8x128xf32>
    %cst_110 = arith.constant 1.000000e+00 : f32
    %262 = vector.broadcast %cst_110 : f32 to vector<8x128xf32>
    %263 = arith.addf %262, %261 : vector<8x128xf32>
    %264 = arith.divf %262, %263 : vector<8x128xf32>
    %265 = vector.extract_strided_slice %258 {offsets = [0, 128], sizes = [8, 128], strides = [1, 1]} : vector<8x512xf32> to vector<8x128xf32>
    %266 = arith.negf %265 : vector<8x128xf32>
    %267 = math.exp %266 : vector<8x128xf32>
    %cst_111 = arith.constant 1.000000e+00 : f32
    %268 = vector.broadcast %cst_111 : f32 to vector<8x128xf32>
    %269 = arith.addf %268, %267 : vector<8x128xf32>
    %270 = arith.divf %268, %269 : vector<8x128xf32>
    %271 = vector.extract_strided_slice %258 {offsets = [0, 256], sizes = [8, 128], strides = [1, 1]} : vector<8x512xf32> to vector<8x128xf32>
    %272 = math.tanh %271 : vector<8x128xf32>
    %273 = vector.extract_strided_slice %258 {offsets = [0, 384], sizes = [8, 128], strides = [1, 1]} : vector<8x512xf32> to vector<8x128xf32>
    %274 = arith.negf %273 : vector<8x128xf32>
    %275 = math.exp %274 : vector<8x128xf32>
    %cst_112 = arith.constant 1.000000e+00 : f32
    %276 = vector.broadcast %cst_112 : f32 to vector<8x128xf32>
    %277 = arith.addf %276, %275 : vector<8x128xf32>
    %278 = arith.divf %276, %277 : vector<8x128xf32>
    %279 = arith.mulf %270, %246 : vector<8x128xf32>
    %280 = arith.mulf %264, %272 : vector<8x128xf32>
    %281 = arith.addf %279, %280 : vector<8x128xf32>
    %282 = math.tanh %281 : vector<8x128xf32>
    %283 = arith.mulf %278, %282 : vector<8x128xf32>
    %284 = arith.truncf %283 : vector<8x128xf32> to vector<8x128xbf16>
    %285 = arith.index_cast %253 : i32 to index
    %c0_113 = arith.constant 0 : index
    %286 = vector.load %arg15[%285, %c0_113] : memref<64x128xbf16, #tpu.memory_space<vmem>>, vector<8x128xbf16>
    tpu.vector_store %arg15[%285, %c0_113], %284 {strides = array<i32>} : memref<64x128xbf16, #tpu.memory_space<vmem>>, vector<8x128xbf16>,
    %c6_i32 = arith.constant 6 : i32
    %c8_i32_114 = arith.constant 8 : i32
    %287 = arith.muli %c6_i32, %c8_i32_114 : i32
    %288 = tpu.assume_multiple %287, 8 : i32
    %289 = arith.index_cast %288 : i32 to index
    %c0_115 = arith.constant 0 : index
    %290 = vector.load %arg14[%289, %c0_115] : memref<64x512xf32, #tpu.memory_space<vmem>>, vector<8x512xf32>
    %291 = arith.truncf %283 : vector<8x128xf32> to vector<8x128xbf16>
    %cst_116 = arith.constant dense<0.000000e+00> : vector<8x512xf32>
    %292 = tpu.matmul %291, %69, %cst_116 {dimension_numbers = #tpu.dot_dimension_numbers<[1], [0], [0], [1], [0, 0, 1, 1], [], []>} : vector<8x128xbf16>, vector<128x512xbf16>, vector<8x512xf32> -> vector<8x512xf32>
    %293 = arith.addf %290, %292 : vector<8x512xf32>
    %294 = vector.extract_strided_slice %293 {offsets = [0, 0], sizes = [8, 128], strides = [1, 1]} : vector<8x512xf32> to vector<8x128xf32>
    %295 = arith.negf %294 : vector<8x128xf32>
    %296 = math.exp %295 : vector<8x128xf32>
    %cst_117 = arith.constant 1.000000e+00 : f32
    %297 = vector.broadcast %cst_117 : f32 to vector<8x128xf32>
    %298 = arith.addf %297, %296 : vector<8x128xf32>
    %299 = arith.divf %297, %298 : vector<8x128xf32>
    %300 = vector.extract_strided_slice %293 {offsets = [0, 128], sizes = [8, 128], strides = [1, 1]} : vector<8x512xf32> to vector<8x128xf32>
    %301 = arith.negf %300 : vector<8x128xf32>
    %302 = math.exp %301 : vector<8x128xf32>
    %cst_118 = arith.constant 1.000000e+00 : f32
    %303 = vector.broadcast %cst_118 : f32 to vector<8x128xf32>
    %304 = arith.addf %303, %302 : vector<8x128xf32>
    %305 = arith.divf %303, %304 : vector<8x128xf32>
    %306 = vector.extract_strided_slice %293 {offsets = [0, 256], sizes = [8, 128], strides = [1, 1]} : vector<8x512xf32> to vector<8x128xf32>
    %307 = math.tanh %306 : vector<8x128xf32>
    %308 = vector.extract_strided_slice %293 {offsets = [0, 384], sizes = [8, 128], strides = [1, 1]} : vector<8x512xf32> to vector<8x128xf32>
    %309 = arith.negf %308 : vector<8x128xf32>
    %310 = math.exp %309 : vector<8x128xf32>
    %cst_119 = arith.constant 1.000000e+00 : f32
    %311 = vector.broadcast %cst_119 : f32 to vector<8x128xf32>
    %312 = arith.addf %311, %310 : vector<8x128xf32>
    %313 = arith.divf %311, %312 : vector<8x128xf32>
    %314 = arith.mulf %305, %281 : vector<8x128xf32>
    %315 = arith.mulf %299, %307 : vector<8x128xf32>
    %316 = arith.addf %314, %315 : vector<8x128xf32>
    %317 = math.tanh %316 : vector<8x128xf32>
    %318 = arith.mulf %313, %317 : vector<8x128xf32>
    %319 = arith.truncf %318 : vector<8x128xf32> to vector<8x128xbf16>
    %320 = arith.index_cast %288 : i32 to index
    %c0_120 = arith.constant 0 : index
    %321 = vector.load %arg15[%320, %c0_120] : memref<64x128xbf16, #tpu.memory_space<vmem>>, vector<8x128xbf16>
    tpu.vector_store %arg15[%320, %c0_120], %319 {strides = array<i32>} : memref<64x128xbf16, #tpu.memory_space<vmem>>, vector<8x128xbf16>,
    %c7_i32 = arith.constant 7 : i32
    %c8_i32_121 = arith.constant 8 : i32
    %322 = arith.muli %c7_i32, %c8_i32_121 : i32
    %323 = tpu.assume_multiple %322, 8 : i32
    %324 = arith.index_cast %323 : i32 to index
    %c0_122 = arith.constant 0 : index
    %325 = vector.load %arg14[%324, %c0_122] : memref<64x512xf32, #tpu.memory_space<vmem>>, vector<8x512xf32>
    %326 = arith.truncf %318 : vector<8x128xf32> to vector<8x128xbf16>
    %cst_123 = arith.constant dense<0.000000e+00> : vector<8x512xf32>
    %327 = tpu.matmul %326, %69, %cst_123 {dimension_numbers = #tpu.dot_dimension_numbers<[1], [0], [0], [1], [0, 0, 1, 1], [], []>} : vector<8x128xbf16>, vector<128x512xbf16>, vector<8x512xf32> -> vector<8x512xf32>
    %328 = arith.addf %325, %327 : vector<8x512xf32>
    %329 = vector.extract_strided_slice %328 {offsets = [0, 0], sizes = [8, 128], strides = [1, 1]} : vector<8x512xf32> to vector<8x128xf32>
    %330 = arith.negf %329 : vector<8x128xf32>
    %331 = math.exp %330 : vector<8x128xf32>
    %cst_124 = arith.constant 1.000000e+00 : f32
    %332 = vector.broadcast %cst_124 : f32 to vector<8x128xf32>
    %333 = arith.addf %332, %331 : vector<8x128xf32>
    %334 = arith.divf %332, %333 : vector<8x128xf32>
    %335 = vector.extract_strided_slice %328 {offsets = [0, 128], sizes = [8, 128], strides = [1, 1]} : vector<8x512xf32> to vector<8x128xf32>
    %336 = arith.negf %335 : vector<8x128xf32>
    %337 = math.exp %336 : vector<8x128xf32>
    %cst_125 = arith.constant 1.000000e+00 : f32
    %338 = vector.broadcast %cst_125 : f32 to vector<8x128xf32>
    %339 = arith.addf %338, %337 : vector<8x128xf32>
    %340 = arith.divf %338, %339 : vector<8x128xf32>
    %341 = vector.extract_strided_slice %328 {offsets = [0, 256], sizes = [8, 128], strides = [1, 1]} : vector<8x512xf32> to vector<8x128xf32>
    %342 = math.tanh %341 : vector<8x128xf32>
    %343 = vector.extract_strided_slice %328 {offsets = [0, 384], sizes = [8, 128], strides = [1, 1]} : vector<8x512xf32> to vector<8x128xf32>
    %344 = arith.negf %343 : vector<8x128xf32>
    %345 = math.exp %344 : vector<8x128xf32>
    %cst_126 = arith.constant 1.000000e+00 : f32
    %346 = vector.broadcast %cst_126 : f32 to vector<8x128xf32>
    %347 = arith.addf %346, %345 : vector<8x128xf32>
    %348 = arith.divf %346, %347 : vector<8x128xf32>
    %349 = arith.mulf %340, %316 : vector<8x128xf32>
    %350 = arith.mulf %334, %342 : vector<8x128xf32>
    %351 = arith.addf %349, %350 : vector<8x128xf32>
    %352 = math.tanh %351 : vector<8x128xf32>
    %353 = arith.mulf %348, %352 : vector<8x128xf32>
    %354 = arith.truncf %353 : vector<8x128xf32> to vector<8x128xbf16>
    %355 = arith.index_cast %323 : i32 to index
    %c0_127 = arith.constant 0 : index
    %356 = vector.load %arg15[%355, %c0_127] : memref<64x128xbf16, #tpu.memory_space<vmem>>, vector<8x128xbf16>
    tpu.vector_store %arg15[%355, %c0_127], %354 {strides = array<i32>} : memref<64x128xbf16, #tpu.memory_space<vmem>>, vector<8x128xbf16>,
    %c8_i32_128 = arith.constant 8 : i32
    %c0_129 = arith.constant 0 : index
    %c0_130 = arith.constant 0 : index
    %c0_131 = arith.constant 0 : index
    %357 = vector.load %arg11[%c0_129, %c0_130, %c0_131] : memref<2x8x128xf32, #tpu.memory_space<vmem>>, vector<1x8x128xf32>
    %358 = vector.shape_cast %357 : vector<1x8x128xf32> to vector<8x128xf32>
    %359 = vector.shape_cast %353 : vector<8x128xf32> to vector<1x8x128xf32>
    tpu.vector_store %arg11[%c0_129, %c0_130, %c0_131], %359 {strides = array<i32>} : memref<2x8x128xf32, #tpu.memory_space<vmem>>, vector<1x8x128xf32>,
    %c0_132 = arith.constant 0 : index
    %c0_133 = arith.constant 0 : index
    %c0_134 = arith.constant 0 : index
    %360 = vector.load %arg12[%c0_132, %c0_133, %c0_134] : memref<2x8x128xf32, #tpu.memory_space<vmem>>, vector<1x8x128xf32>
    %361 = vector.shape_cast %360 : vector<1x8x128xf32> to vector<8x128xf32>
    %362 = vector.shape_cast %351 : vector<8x128xf32> to vector<1x8x128xf32>
    tpu.vector_store %arg12[%c0_132, %c0_133, %c0_134], %362 {strides = array<i32>} : memref<2x8x128xf32, #tpu.memory_space<vmem>>, vector<1x8x128xf32>,
    %c0_135 = arith.constant 0 : index
    %c0_136 = arith.constant 0 : index
    %363 = vector.load %arg15[%c0_135, %c0_136] : memref<64x128xbf16, #tpu.memory_space<vmem>>, vector<64x128xbf16>
    %c0_137 = arith.constant 0 : index
    %c0_138 = arith.constant 0 : index
    %364 = vector.load %arg5[%c0_137, %c0_138] : memref<128x512xbf16, #tpu.memory_space<vmem>>, vector<128x512xbf16>
    %c0_139 = arith.constant 0 : index
    %c0_140 = arith.constant 0 : index
    %365 = vector.load %arg6[%c0_139, %c0_140] : memref<128x512xbf16, #tpu.memory_space<vmem>>, vector<128x512xbf16>
    %c0_141 = arith.constant 0 : index
    %c0_142 = arith.constant 0 : index
    %366 = vector.load %arg7[%c0_141, %c0_142] : memref<1x512xf32, #tpu.memory_space<vmem>>, vector<1x512xf32>
    %cst_143 = arith.constant dense<0.000000e+00> : vector<64x512xf32>
    %367 = tpu.matmul %363, %364, %cst_143 {dimension_numbers = #tpu.dot_dimension_numbers<[1], [0], [0], [1], [0, 0, 1, 1], [], []>} : vector<64x128xbf16>, vector<128x512xbf16>, vector<64x512xf32> -> vector<64x512xf32>
    %368 = vector.broadcast %366 : vector<1x512xf32> to vector<64x512xf32>
    %369 = arith.addf %367, %368 : vector<64x512xf32>
    %c0_144 = arith.constant 0 : index
    %c0_145 = arith.constant 0 : index
    %370 = vector.load %arg14[%c0_144, %c0_145] : memref<64x512xf32, #tpu.memory_space<vmem>>, vector<64x512xf32>
    tpu.vector_store %arg14[%c0_144, %c0_145], %369 {strides = array<i32>} : memref<64x512xf32, #tpu.memory_space<vmem>>, vector<64x512xf32>,
    %cst_146 = arith.constant 0.000000e+00 : f32
    %371 = vector.broadcast %cst_146 : f32 to vector<8x128xf32>
    %cst_147 = arith.constant 0.000000e+00 : f32
    %372 = vector.broadcast %cst_147 : f32 to vector<8x128xf32>
    %c0_i32_148 = arith.constant 0 : i32
    %c8_i32_149 = arith.constant 8 : i32
    %373 = arith.muli %c0_i32_148, %c8_i32_149 : i32
    %374 = tpu.assume_multiple %373, 8 : i32
    %375 = arith.index_cast %374 : i32 to index
    %c0_150 = arith.constant 0 : index
    %376 = vector.load %arg14[%375, %c0_150] : memref<64x512xf32, #tpu.memory_space<vmem>>, vector<8x512xf32>
    %377 = arith.truncf %371 : vector<8x128xf32> to vector<8x128xbf16>
    %cst_151 = arith.constant dense<0.000000e+00> : vector<8x512xf32>
    %378 = tpu.matmul %377, %365, %cst_151 {dimension_numbers = #tpu.dot_dimension_numbers<[1], [0], [0], [1], [0, 0, 1, 1], [], []>} : vector<8x128xbf16>, vector<128x512xbf16>, vector<8x512xf32> -> vector<8x512xf32>
    %379 = arith.addf %376, %378 : vector<8x512xf32>
    %380 = vector.extract_strided_slice %379 {offsets = [0, 0], sizes = [8, 128], strides = [1, 1]} : vector<8x512xf32> to vector<8x128xf32>
    %381 = arith.negf %380 : vector<8x128xf32>
    %382 = math.exp %381 : vector<8x128xf32>
    %cst_152 = arith.constant 1.000000e+00 : f32
    %383 = vector.broadcast %cst_152 : f32 to vector<8x128xf32>
    %384 = arith.addf %383, %382 : vector<8x128xf32>
    %385 = arith.divf %383, %384 : vector<8x128xf32>
    %386 = vector.extract_strided_slice %379 {offsets = [0, 128], sizes = [8, 128], strides = [1, 1]} : vector<8x512xf32> to vector<8x128xf32>
    %387 = arith.negf %386 : vector<8x128xf32>
    %388 = math.exp %387 : vector<8x128xf32>
    %cst_153 = arith.constant 1.000000e+00 : f32
    %389 = vector.broadcast %cst_153 : f32 to vector<8x128xf32>
    %390 = arith.addf %389, %388 : vector<8x128xf32>
    %391 = arith.divf %389, %390 : vector<8x128xf32>
    %392 = vector.extract_strided_slice %379 {offsets = [0, 256], sizes = [8, 128], strides = [1, 1]} : vector<8x512xf32> to vector<8x128xf32>
    %393 = math.tanh %392 : vector<8x128xf32>
    %394 = vector.extract_strided_slice %379 {offsets = [0, 384], sizes = [8, 128], strides = [1, 1]} : vector<8x512xf32> to vector<8x128xf32>
    %395 = arith.negf %394 : vector<8x128xf32>
    %396 = math.exp %395 : vector<8x128xf32>
    %cst_154 = arith.constant 1.000000e+00 : f32
    %397 = vector.broadcast %cst_154 : f32 to vector<8x128xf32>
    %398 = arith.addf %397, %396 : vector<8x128xf32>
    %399 = arith.divf %397, %398 : vector<8x128xf32>
    %400 = arith.mulf %391, %372 : vector<8x128xf32>
    %401 = arith.mulf %385, %393 : vector<8x128xf32>
    %402 = arith.addf %400, %401 : vector<8x128xf32>
    %403 = math.tanh %402 : vector<8x128xf32>
    %404 = arith.mulf %399, %403 : vector<8x128xf32>
    %405 = arith.truncf %404 : vector<8x128xf32> to vector<8x128xbf16>
    %406 = arith.index_cast %374 : i32 to index
    %c0_155 = arith.constant 0 : index
    %407 = vector.load %arg15[%406, %c0_155] : memref<64x128xbf16, #tpu.memory_space<vmem>>, vector<8x128xbf16>
    tpu.vector_store %arg15[%406, %c0_155], %405 {strides = array<i32>} : memref<64x128xbf16, #tpu.memory_space<vmem>>, vector<8x128xbf16>,
    %c1_i32_156 = arith.constant 1 : i32
    %c8_i32_157 = arith.constant 8 : i32
    %408 = arith.muli %c1_i32_156, %c8_i32_157 : i32
    %409 = tpu.assume_multiple %408, 8 : i32
    %410 = arith.index_cast %409 : i32 to index
    %c0_158 = arith.constant 0 : index
    %411 = vector.load %arg14[%410, %c0_158] : memref<64x512xf32, #tpu.memory_space<vmem>>, vector<8x512xf32>
    %412 = arith.truncf %404 : vector<8x128xf32> to vector<8x128xbf16>
    %cst_159 = arith.constant dense<0.000000e+00> : vector<8x512xf32>
    %413 = tpu.matmul %412, %365, %cst_159 {dimension_numbers = #tpu.dot_dimension_numbers<[1], [0], [0], [1], [0, 0, 1, 1], [], []>} : vector<8x128xbf16>, vector<128x512xbf16>, vector<8x512xf32> -> vector<8x512xf32>
    %414 = arith.addf %411, %413 : vector<8x512xf32>
    %415 = vector.extract_strided_slice %414 {offsets = [0, 0], sizes = [8, 128], strides = [1, 1]} : vector<8x512xf32> to vector<8x128xf32>
    %416 = arith.negf %415 : vector<8x128xf32>
    %417 = math.exp %416 : vector<8x128xf32>
    %cst_160 = arith.constant 1.000000e+00 : f32
    %418 = vector.broadcast %cst_160 : f32 to vector<8x128xf32>
    %419 = arith.addf %418, %417 : vector<8x128xf32>
    %420 = arith.divf %418, %419 : vector<8x128xf32>
    %421 = vector.extract_strided_slice %414 {offsets = [0, 128], sizes = [8, 128], strides = [1, 1]} : vector<8x512xf32> to vector<8x128xf32>
    %422 = arith.negf %421 : vector<8x128xf32>
    %423 = math.exp %422 : vector<8x128xf32>
    %cst_161 = arith.constant 1.000000e+00 : f32
    %424 = vector.broadcast %cst_161 : f32 to vector<8x128xf32>
    %425 = arith.addf %424, %423 : vector<8x128xf32>
    %426 = arith.divf %424, %425 : vector<8x128xf32>
    %427 = vector.extract_strided_slice %414 {offsets = [0, 256], sizes = [8, 128], strides = [1, 1]} : vector<8x512xf32> to vector<8x128xf32>
    %428 = math.tanh %427 : vector<8x128xf32>
    %429 = vector.extract_strided_slice %414 {offsets = [0, 384], sizes = [8, 128], strides = [1, 1]} : vector<8x512xf32> to vector<8x128xf32>
    %430 = arith.negf %429 : vector<8x128xf32>
    %431 = math.exp %430 : vector<8x128xf32>
    %cst_162 = arith.constant 1.000000e+00 : f32
    %432 = vector.broadcast %cst_162 : f32 to vector<8x128xf32>
    %433 = arith.addf %432, %431 : vector<8x128xf32>
    %434 = arith.divf %432, %433 : vector<8x128xf32>
    %435 = arith.mulf %426, %402 : vector<8x128xf32>
    %436 = arith.mulf %420, %428 : vector<8x128xf32>
    %437 = arith.addf %435, %436 : vector<8x128xf32>
    %438 = math.tanh %437 : vector<8x128xf32>
    %439 = arith.mulf %434, %438 : vector<8x128xf32>
    %440 = arith.truncf %439 : vector<8x128xf32> to vector<8x128xbf16>
    %441 = arith.index_cast %409 : i32 to index
    %c0_163 = arith.constant 0 : index
    %442 = vector.load %arg15[%441, %c0_163] : memref<64x128xbf16, #tpu.memory_space<vmem>>, vector<8x128xbf16>
    tpu.vector_store %arg15[%441, %c0_163], %440 {strides = array<i32>} : memref<64x128xbf16, #tpu.memory_space<vmem>>, vector<8x128xbf16>,
    %c2_i32_164 = arith.constant 2 : i32
    %c8_i32_165 = arith.constant 8 : i32
    %443 = arith.muli %c2_i32_164, %c8_i32_165 : i32
    %444 = tpu.assume_multiple %443, 8 : i32
    %445 = arith.index_cast %444 : i32 to index
    %c0_166 = arith.constant 0 : index
    %446 = vector.load %arg14[%445, %c0_166] : memref<64x512xf32, #tpu.memory_space<vmem>>, vector<8x512xf32>
    %447 = arith.truncf %439 : vector<8x128xf32> to vector<8x128xbf16>
    %cst_167 = arith.constant dense<0.000000e+00> : vector<8x512xf32>
    %448 = tpu.matmul %447, %365, %cst_167 {dimension_numbers = #tpu.dot_dimension_numbers<[1], [0], [0], [1], [0, 0, 1, 1], [], []>} : vector<8x128xbf16>, vector<128x512xbf16>, vector<8x512xf32> -> vector<8x512xf32>
    %449 = arith.addf %446, %448 : vector<8x512xf32>
    %450 = vector.extract_strided_slice %449 {offsets = [0, 0], sizes = [8, 128], strides = [1, 1]} : vector<8x512xf32> to vector<8x128xf32>
    %451 = arith.negf %450 : vector<8x128xf32>
    %452 = math.exp %451 : vector<8x128xf32>
    %cst_168 = arith.constant 1.000000e+00 : f32
    %453 = vector.broadcast %cst_168 : f32 to vector<8x128xf32>
    %454 = arith.addf %453, %452 : vector<8x128xf32>
    %455 = arith.divf %453, %454 : vector<8x128xf32>
    %456 = vector.extract_strided_slice %449 {offsets = [0, 128], sizes = [8, 128], strides = [1, 1]} : vector<8x512xf32> to vector<8x128xf32>
    %457 = arith.negf %456 : vector<8x128xf32>
    %458 = math.exp %457 : vector<8x128xf32>
    %cst_169 = arith.constant 1.000000e+00 : f32
    %459 = vector.broadcast %cst_169 : f32 to vector<8x128xf32>
    %460 = arith.addf %459, %458 : vector<8x128xf32>
    %461 = arith.divf %459, %460 : vector<8x128xf32>
    %462 = vector.extract_strided_slice %449 {offsets = [0, 256], sizes = [8, 128], strides = [1, 1]} : vector<8x512xf32> to vector<8x128xf32>
    %463 = math.tanh %462 : vector<8x128xf32>
    %464 = vector.extract_strided_slice %449 {offsets = [0, 384], sizes = [8, 128], strides = [1, 1]} : vector<8x512xf32> to vector<8x128xf32>
    %465 = arith.negf %464 : vector<8x128xf32>
    %466 = math.exp %465 : vector<8x128xf32>
    %cst_170 = arith.constant 1.000000e+00 : f32
    %467 = vector.broadcast %cst_170 : f32 to vector<8x128xf32>
    %468 = arith.addf %467, %466 : vector<8x128xf32>
    %469 = arith.divf %467, %468 : vector<8x128xf32>
    %470 = arith.mulf %461, %437 : vector<8x128xf32>
    %471 = arith.mulf %455, %463 : vector<8x128xf32>
    %472 = arith.addf %470, %471 : vector<8x128xf32>
    %473 = math.tanh %472 : vector<8x128xf32>
    %474 = arith.mulf %469, %473 : vector<8x128xf32>
    %475 = arith.truncf %474 : vector<8x128xf32> to vector<8x128xbf16>
    %476 = arith.index_cast %444 : i32 to index
    %c0_171 = arith.constant 0 : index
    %477 = vector.load %arg15[%476, %c0_171] : memref<64x128xbf16, #tpu.memory_space<vmem>>, vector<8x128xbf16>
    tpu.vector_store %arg15[%476, %c0_171], %475 {strides = array<i32>} : memref<64x128xbf16, #tpu.memory_space<vmem>>, vector<8x128xbf16>,
    %c3_i32_172 = arith.constant 3 : i32
    %c8_i32_173 = arith.constant 8 : i32
    %478 = arith.muli %c3_i32_172, %c8_i32_173 : i32
    %479 = tpu.assume_multiple %478, 8 : i32
    %480 = arith.index_cast %479 : i32 to index
    %c0_174 = arith.constant 0 : index
    %481 = vector.load %arg14[%480, %c0_174] : memref<64x512xf32, #tpu.memory_space<vmem>>, vector<8x512xf32>
    %482 = arith.truncf %474 : vector<8x128xf32> to vector<8x128xbf16>
    %cst_175 = arith.constant dense<0.000000e+00> : vector<8x512xf32>
    %483 = tpu.matmul %482, %365, %cst_175 {dimension_numbers = #tpu.dot_dimension_numbers<[1], [0], [0], [1], [0, 0, 1, 1], [], []>} : vector<8x128xbf16>, vector<128x512xbf16>, vector<8x512xf32> -> vector<8x512xf32>
    %484 = arith.addf %481, %483 : vector<8x512xf32>
    %485 = vector.extract_strided_slice %484 {offsets = [0, 0], sizes = [8, 128], strides = [1, 1]} : vector<8x512xf32> to vector<8x128xf32>
    %486 = arith.negf %485 : vector<8x128xf32>
    %487 = math.exp %486 : vector<8x128xf32>
    %cst_176 = arith.constant 1.000000e+00 : f32
    %488 = vector.broadcast %cst_176 : f32 to vector<8x128xf32>
    %489 = arith.addf %488, %487 : vector<8x128xf32>
    %490 = arith.divf %488, %489 : vector<8x128xf32>
    %491 = vector.extract_strided_slice %484 {offsets = [0, 128], sizes = [8, 128], strides = [1, 1]} : vector<8x512xf32> to vector<8x128xf32>
    %492 = arith.negf %491 : vector<8x128xf32>
    %493 = math.exp %492 : vector<8x128xf32>
    %cst_177 = arith.constant 1.000000e+00 : f32
    %494 = vector.broadcast %cst_177 : f32 to vector<8x128xf32>
    %495 = arith.addf %494, %493 : vector<8x128xf32>
    %496 = arith.divf %494, %495 : vector<8x128xf32>
    %497 = vector.extract_strided_slice %484 {offsets = [0, 256], sizes = [8, 128], strides = [1, 1]} : vector<8x512xf32> to vector<8x128xf32>
    %498 = math.tanh %497 : vector<8x128xf32>
    %499 = vector.extract_strided_slice %484 {offsets = [0, 384], sizes = [8, 128], strides = [1, 1]} : vector<8x512xf32> to vector<8x128xf32>
    %500 = arith.negf %499 : vector<8x128xf32>
    %501 = math.exp %500 : vector<8x128xf32>
    %cst_178 = arith.constant 1.000000e+00 : f32
    %502 = vector.broadcast %cst_178 : f32 to vector<8x128xf32>
    %503 = arith.addf %502, %501 : vector<8x128xf32>
    %504 = arith.divf %502, %503 : vector<8x128xf32>
    %505 = arith.mulf %496, %472 : vector<8x128xf32>
    %506 = arith.mulf %490, %498 : vector<8x128xf32>
    %507 = arith.addf %505, %506 : vector<8x128xf32>
    %508 = math.tanh %507 : vector<8x128xf32>
    %509 = arith.mulf %504, %508 : vector<8x128xf32>
    %510 = arith.truncf %509 : vector<8x128xf32> to vector<8x128xbf16>
    %511 = arith.index_cast %479 : i32 to index
    %c0_179 = arith.constant 0 : index
    %512 = vector.load %arg15[%511, %c0_179] : memref<64x128xbf16, #tpu.memory_space<vmem>>, vector<8x128xbf16>
    tpu.vector_store %arg15[%511, %c0_179], %510 {strides = array<i32>} : memref<64x128xbf16, #tpu.memory_space<vmem>>, vector<8x128xbf16>,
    %c4_i32_180 = arith.constant 4 : i32
    %c8_i32_181 = arith.constant 8 : i32
    %513 = arith.muli %c4_i32_180, %c8_i32_181 : i32
    %514 = tpu.assume_multiple %513, 8 : i32
    %515 = arith.index_cast %514 : i32 to index
    %c0_182 = arith.constant 0 : index
    %516 = vector.load %arg14[%515, %c0_182] : memref<64x512xf32, #tpu.memory_space<vmem>>, vector<8x512xf32>
    %517 = arith.truncf %509 : vector<8x128xf32> to vector<8x128xbf16>
    %cst_183 = arith.constant dense<0.000000e+00> : vector<8x512xf32>
    %518 = tpu.matmul %517, %365, %cst_183 {dimension_numbers = #tpu.dot_dimension_numbers<[1], [0], [0], [1], [0, 0, 1, 1], [], []>} : vector<8x128xbf16>, vector<128x512xbf16>, vector<8x512xf32> -> vector<8x512xf32>
    %519 = arith.addf %516, %518 : vector<8x512xf32>
    %520 = vector.extract_strided_slice %519 {offsets = [0, 0], sizes = [8, 128], strides = [1, 1]} : vector<8x512xf32> to vector<8x128xf32>
    %521 = arith.negf %520 : vector<8x128xf32>
    %522 = math.exp %521 : vector<8x128xf32>
    %cst_184 = arith.constant 1.000000e+00 : f32
    %523 = vector.broadcast %cst_184 : f32 to vector<8x128xf32>
    %524 = arith.addf %523, %522 : vector<8x128xf32>
    %525 = arith.divf %523, %524 : vector<8x128xf32>
    %526 = vector.extract_strided_slice %519 {offsets = [0, 128], sizes = [8, 128], strides = [1, 1]} : vector<8x512xf32> to vector<8x128xf32>
    %527 = arith.negf %526 : vector<8x128xf32>
    %528 = math.exp %527 : vector<8x128xf32>
    %cst_185 = arith.constant 1.000000e+00 : f32
    %529 = vector.broadcast %cst_185 : f32 to vector<8x128xf32>
    %530 = arith.addf %529, %528 : vector<8x128xf32>
    %531 = arith.divf %529, %530 : vector<8x128xf32>
    %532 = vector.extract_strided_slice %519 {offsets = [0, 256], sizes = [8, 128], strides = [1, 1]} : vector<8x512xf32> to vector<8x128xf32>
    %533 = math.tanh %532 : vector<8x128xf32>
    %534 = vector.extract_strided_slice %519 {offsets = [0, 384], sizes = [8, 128], strides = [1, 1]} : vector<8x512xf32> to vector<8x128xf32>
    %535 = arith.negf %534 : vector<8x128xf32>
    %536 = math.exp %535 : vector<8x128xf32>
    %cst_186 = arith.constant 1.000000e+00 : f32
    %537 = vector.broadcast %cst_186 : f32 to vector<8x128xf32>
    %538 = arith.addf %537, %536 : vector<8x128xf32>
    %539 = arith.divf %537, %538 : vector<8x128xf32>
    %540 = arith.mulf %531, %507 : vector<8x128xf32>
    %541 = arith.mulf %525, %533 : vector<8x128xf32>
    %542 = arith.addf %540, %541 : vector<8x128xf32>
    %543 = math.tanh %542 : vector<8x128xf32>
    %544 = arith.mulf %539, %543 : vector<8x128xf32>
    %545 = arith.truncf %544 : vector<8x128xf32> to vector<8x128xbf16>
    %546 = arith.index_cast %514 : i32 to index
    %c0_187 = arith.constant 0 : index
    %547 = vector.load %arg15[%546, %c0_187] : memref<64x128xbf16, #tpu.memory_space<vmem>>, vector<8x128xbf16>
    tpu.vector_store %arg15[%546, %c0_187], %545 {strides = array<i32>} : memref<64x128xbf16, #tpu.memory_space<vmem>>, vector<8x128xbf16>,
    %c5_i32_188 = arith.constant 5 : i32
    %c8_i32_189 = arith.constant 8 : i32
    %548 = arith.muli %c5_i32_188, %c8_i32_189 : i32
    %549 = tpu.assume_multiple %548, 8 : i32
    %550 = arith.index_cast %549 : i32 to index
    %c0_190 = arith.constant 0 : index
    %551 = vector.load %arg14[%550, %c0_190] : memref<64x512xf32, #tpu.memory_space<vmem>>, vector<8x512xf32>
    %552 = arith.truncf %544 : vector<8x128xf32> to vector<8x128xbf16>
    %cst_191 = arith.constant dense<0.000000e+00> : vector<8x512xf32>
    %553 = tpu.matmul %552, %365, %cst_191 {dimension_numbers = #tpu.dot_dimension_numbers<[1], [0], [0], [1], [0, 0, 1, 1], [], []>} : vector<8x128xbf16>, vector<128x512xbf16>, vector<8x512xf32> -> vector<8x512xf32>
    %554 = arith.addf %551, %553 : vector<8x512xf32>
    %555 = vector.extract_strided_slice %554 {offsets = [0, 0], sizes = [8, 128], strides = [1, 1]} : vector<8x512xf32> to vector<8x128xf32>
    %556 = arith.negf %555 : vector<8x128xf32>
    %557 = math.exp %556 : vector<8x128xf32>
    %cst_192 = arith.constant 1.000000e+00 : f32
    %558 = vector.broadcast %cst_192 : f32 to vector<8x128xf32>
    %559 = arith.addf %558, %557 : vector<8x128xf32>
    %560 = arith.divf %558, %559 : vector<8x128xf32>
    %561 = vector.extract_strided_slice %554 {offsets = [0, 128], sizes = [8, 128], strides = [1, 1]} : vector<8x512xf32> to vector<8x128xf32>
    %562 = arith.negf %561 : vector<8x128xf32>
    %563 = math.exp %562 : vector<8x128xf32>
    %cst_193 = arith.constant 1.000000e+00 : f32
    %564 = vector.broadcast %cst_193 : f32 to vector<8x128xf32>
    %565 = arith.addf %564, %563 : vector<8x128xf32>
    %566 = arith.divf %564, %565 : vector<8x128xf32>
    %567 = vector.extract_strided_slice %554 {offsets = [0, 256], sizes = [8, 128], strides = [1, 1]} : vector<8x512xf32> to vector<8x128xf32>
    %568 = math.tanh %567 : vector<8x128xf32>
    %569 = vector.extract_strided_slice %554 {offsets = [0, 384], sizes = [8, 128], strides = [1, 1]} : vector<8x512xf32> to vector<8x128xf32>
    %570 = arith.negf %569 : vector<8x128xf32>
    %571 = math.exp %570 : vector<8x128xf32>
    %cst_194 = arith.constant 1.000000e+00 : f32
    %572 = vector.broadcast %cst_194 : f32 to vector<8x128xf32>
    %573 = arith.addf %572, %571 : vector<8x128xf32>
    %574 = arith.divf %572, %573 : vector<8x128xf32>
    %575 = arith.mulf %566, %542 : vector<8x128xf32>
    %576 = arith.mulf %560, %568 : vector<8x128xf32>
    %577 = arith.addf %575, %576 : vector<8x128xf32>
    %578 = math.tanh %577 : vector<8x128xf32>
    %579 = arith.mulf %574, %578 : vector<8x128xf32>
    %580 = arith.truncf %579 : vector<8x128xf32> to vector<8x128xbf16>
    %581 = arith.index_cast %549 : i32 to index
    %c0_195 = arith.constant 0 : index
    %582 = vector.load %arg15[%581, %c0_195] : memref<64x128xbf16, #tpu.memory_space<vmem>>, vector<8x128xbf16>
    tpu.vector_store %arg15[%581, %c0_195], %580 {strides = array<i32>} : memref<64x128xbf16, #tpu.memory_space<vmem>>, vector<8x128xbf16>,
    %c6_i32_196 = arith.constant 6 : i32
    %c8_i32_197 = arith.constant 8 : i32
    %583 = arith.muli %c6_i32_196, %c8_i32_197 : i32
    %584 = tpu.assume_multiple %583, 8 : i32
    %585 = arith.index_cast %584 : i32 to index
    %c0_198 = arith.constant 0 : index
    %586 = vector.load %arg14[%585, %c0_198] : memref<64x512xf32, #tpu.memory_space<vmem>>, vector<8x512xf32>
    %587 = arith.truncf %579 : vector<8x128xf32> to vector<8x128xbf16>
    %cst_199 = arith.constant dense<0.000000e+00> : vector<8x512xf32>
    %588 = tpu.matmul %587, %365, %cst_199 {dimension_numbers = #tpu.dot_dimension_numbers<[1], [0], [0], [1], [0, 0, 1, 1], [], []>} : vector<8x128xbf16>, vector<128x512xbf16>, vector<8x512xf32> -> vector<8x512xf32>
    %589 = arith.addf %586, %588 : vector<8x512xf32>
    %590 = vector.extract_strided_slice %589 {offsets = [0, 0], sizes = [8, 128], strides = [1, 1]} : vector<8x512xf32> to vector<8x128xf32>
    %591 = arith.negf %590 : vector<8x128xf32>
    %592 = math.exp %591 : vector<8x128xf32>
    %cst_200 = arith.constant 1.000000e+00 : f32
    %593 = vector.broadcast %cst_200 : f32 to vector<8x128xf32>
    %594 = arith.addf %593, %592 : vector<8x128xf32>
    %595 = arith.divf %593, %594 : vector<8x128xf32>
    %596 = vector.extract_strided_slice %589 {offsets = [0, 128], sizes = [8, 128], strides = [1, 1]} : vector<8x512xf32> to vector<8x128xf32>
    %597 = arith.negf %596 : vector<8x128xf32>
    %598 = math.exp %597 : vector<8x128xf32>
    %cst_201 = arith.constant 1.000000e+00 : f32
    %599 = vector.broadcast %cst_201 : f32 to vector<8x128xf32>
    %600 = arith.addf %599, %598 : vector<8x128xf32>
    %601 = arith.divf %599, %600 : vector<8x128xf32>
    %602 = vector.extract_strided_slice %589 {offsets = [0, 256], sizes = [8, 128], strides = [1, 1]} : vector<8x512xf32> to vector<8x128xf32>
    %603 = math.tanh %602 : vector<8x128xf32>
    %604 = vector.extract_strided_slice %589 {offsets = [0, 384], sizes = [8, 128], strides = [1, 1]} : vector<8x512xf32> to vector<8x128xf32>
    %605 = arith.negf %604 : vector<8x128xf32>
    %606 = math.exp %605 : vector<8x128xf32>
    %cst_202 = arith.constant 1.000000e+00 : f32
    %607 = vector.broadcast %cst_202 : f32 to vector<8x128xf32>
    %608 = arith.addf %607, %606 : vector<8x128xf32>
    %609 = arith.divf %607, %608 : vector<8x128xf32>
    %610 = arith.mulf %601, %577 : vector<8x128xf32>
    %611 = arith.mulf %595, %603 : vector<8x128xf32>
    %612 = arith.addf %610, %611 : vector<8x128xf32>
    %613 = math.tanh %612 : vector<8x128xf32>
    %614 = arith.mulf %609, %613 : vector<8x128xf32>
    %615 = arith.truncf %614 : vector<8x128xf32> to vector<8x128xbf16>
    %616 = arith.index_cast %584 : i32 to index
    %c0_203 = arith.constant 0 : index
    %617 = vector.load %arg15[%616, %c0_203] : memref<64x128xbf16, #tpu.memory_space<vmem>>, vector<8x128xbf16>
    tpu.vector_store %arg15[%616, %c0_203], %615 {strides = array<i32>} : memref<64x128xbf16, #tpu.memory_space<vmem>>, vector<8x128xbf16>,
    %c7_i32_204 = arith.constant 7 : i32
    %c8_i32_205 = arith.constant 8 : i32
    %618 = arith.muli %c7_i32_204, %c8_i32_205 : i32
    %619 = tpu.assume_multiple %618, 8 : i32
    %620 = arith.index_cast %619 : i32 to index
    %c0_206 = arith.constant 0 : index
    %621 = vector.load %arg14[%620, %c0_206] : memref<64x512xf32, #tpu.memory_space<vmem>>, vector<8x512xf32>
    %622 = arith.truncf %614 : vector<8x128xf32> to vector<8x128xbf16>
    %cst_207 = arith.constant dense<0.000000e+00> : vector<8x512xf32>
    %623 = tpu.matmul %622, %365, %cst_207 {dimension_numbers = #tpu.dot_dimension_numbers<[1], [0], [0], [1], [0, 0, 1, 1], [], []>} : vector<8x128xbf16>, vector<128x512xbf16>, vector<8x512xf32> -> vector<8x512xf32>
    %624 = arith.addf %621, %623 : vector<8x512xf32>
    %625 = vector.extract_strided_slice %624 {offsets = [0, 0], sizes = [8, 128], strides = [1, 1]} : vector<8x512xf32> to vector<8x128xf32>
    %626 = arith.negf %625 : vector<8x128xf32>
    %627 = math.exp %626 : vector<8x128xf32>
    %cst_208 = arith.constant 1.000000e+00 : f32
    %628 = vector.broadcast %cst_208 : f32 to vector<8x128xf32>
    %629 = arith.addf %628, %627 : vector<8x128xf32>
    %630 = arith.divf %628, %629 : vector<8x128xf32>
    %631 = vector.extract_strided_slice %624 {offsets = [0, 128], sizes = [8, 128], strides = [1, 1]} : vector<8x512xf32> to vector<8x128xf32>
    %632 = arith.negf %631 : vector<8x128xf32>
    %633 = math.exp %632 : vector<8x128xf32>
    %cst_209 = arith.constant 1.000000e+00 : f32
    %634 = vector.broadcast %cst_209 : f32 to vector<8x128xf32>
    %635 = arith.addf %634, %633 : vector<8x128xf32>
    %636 = arith.divf %634, %635 : vector<8x128xf32>
    %637 = vector.extract_strided_slice %624 {offsets = [0, 256], sizes = [8, 128], strides = [1, 1]} : vector<8x512xf32> to vector<8x128xf32>
    %638 = math.tanh %637 : vector<8x128xf32>
    %639 = vector.extract_strided_slice %624 {offsets = [0, 384], sizes = [8, 128], strides = [1, 1]} : vector<8x512xf32> to vector<8x128xf32>
    %640 = arith.negf %639 : vector<8x128xf32>
    %641 = math.exp %640 : vector<8x128xf32>
    %cst_210 = arith.constant 1.000000e+00 : f32
    %642 = vector.broadcast %cst_210 : f32 to vector<8x128xf32>
    %643 = arith.addf %642, %641 : vector<8x128xf32>
    %644 = arith.divf %642, %643 : vector<8x128xf32>
    %645 = arith.mulf %636, %612 : vector<8x128xf32>
    %646 = arith.mulf %630, %638 : vector<8x128xf32>
    %647 = arith.addf %645, %646 : vector<8x128xf32>
    %648 = math.tanh %647 : vector<8x128xf32>
    %649 = arith.mulf %644, %648 : vector<8x128xf32>
    %650 = arith.truncf %649 : vector<8x128xf32> to vector<8x128xbf16>
    %651 = arith.index_cast %619 : i32 to index
    %c0_211 = arith.constant 0 : index
    %652 = vector.load %arg15[%651, %c0_211] : memref<64x128xbf16, #tpu.memory_space<vmem>>, vector<8x128xbf16>
    tpu.vector_store %arg15[%651, %c0_211], %650 {strides = array<i32>} : memref<64x128xbf16, #tpu.memory_space<vmem>>, vector<8x128xbf16>,
    %c8_i32_212 = arith.constant 8 : i32
    %c1_213 = arith.constant 1 : index
    %c0_214 = arith.constant 0 : index
    %c0_215 = arith.constant 0 : index
    %653 = vector.load %arg11[%c1_213, %c0_214, %c0_215] : memref<2x8x128xf32, #tpu.memory_space<vmem>>, vector<1x8x128xf32>
    %654 = vector.shape_cast %653 : vector<1x8x128xf32> to vector<8x128xf32>
    %655 = vector.shape_cast %649 : vector<8x128xf32> to vector<1x8x128xf32>
    tpu.vector_store %arg11[%c1_213, %c0_214, %c0_215], %655 {strides = array<i32>} : memref<2x8x128xf32, #tpu.memory_space<vmem>>, vector<1x8x128xf32>,
    %c1_216 = arith.constant 1 : index
    %c0_217 = arith.constant 0 : index
    %c0_218 = arith.constant 0 : index
    %656 = vector.load %arg12[%c1_216, %c0_217, %c0_218] : memref<2x8x128xf32, #tpu.memory_space<vmem>>, vector<1x8x128xf32>
    %657 = vector.shape_cast %656 : vector<1x8x128xf32> to vector<8x128xf32>
    %658 = vector.shape_cast %647 : vector<8x128xf32> to vector<1x8x128xf32>
    tpu.vector_store %arg12[%c1_216, %c0_217, %c0_218], %658 {strides = array<i32>} : memref<2x8x128xf32, #tpu.memory_space<vmem>>, vector<1x8x128xf32>,
    %c0_219 = arith.constant 0 : index
    %c0_220 = arith.constant 0 : index
    %659 = vector.load %arg15[%c0_219, %c0_220] : memref<64x128xbf16, #tpu.memory_space<vmem>>, vector<64x128xbf16>
    %c0_221 = arith.constant 0 : index
    %c0_222 = arith.constant 0 : index
    %660 = vector.load %arg8[%c0_221, %c0_222] : memref<128x128xbf16, #tpu.memory_space<vmem>>, vector<128x128xbf16>
    %cst_223 = arith.constant dense<0.000000e+00> : vector<64x128xf32>
    %661 = tpu.matmul %659, %660, %cst_223 {dimension_numbers = #tpu.dot_dimension_numbers<[1], [0], [0], [1], [0, 0, 1, 1], [], []>} : vector<64x128xbf16>, vector<128x128xbf16>, vector<64x128xf32> -> vector<64x128xf32>
    %c0_224 = arith.constant 0 : index
    %c0_225 = arith.constant 0 : index
    %662 = vector.load %arg9[%c0_224, %c0_225] : memref<1x128xf32, #tpu.memory_space<vmem>>, vector<1x128xf32>
    %663 = vector.broadcast %662 : vector<1x128xf32> to vector<64x128xf32>
    %664 = arith.addf %661, %663 : vector<64x128xf32>
    %c0_226 = arith.constant 0 : index
    %c0_227 = arith.constant 0 : index
    %665 = vector.load %arg10[%c0_226, %c0_227] : memref<64x128xf32, #tpu.memory_space<vmem>>, vector<64x128xf32>
    tpu.vector_store %arg10[%c0_226, %c0_227], %664 {strides = array<i32>} : memref<64x128xf32, #tpu.memory_space<vmem>>, vector<64x128xf32>,
    return
  }
}

</mosaic_0001>

<llo_original>
// kernel: char_lstm_forward.1
$region0: #{char_lstm_forward.1}
  #allocation0 [shape = 'u32[]', space=smem, size = 0x4, offset = 0x4, fixed_abs, tag = 'smem constant byte address 0x4 - core index']
  #allocation1 [shape = 'u32[144,128]{1,0:T(1,128)}', space=vmem, size = 0x12000, scoped, tag = 'internal scratch']
  #allocation2 [shape = 'f32[64,128]{1,0:T(8,128)}', space=vmem, size = 0x8000, scoped, tag = 'scratch operand']
  #allocation3 [shape = 'f32[64,512]{1,0:T(8,128)}', space=vmem, size = 0x20000, scoped, tag = 'scratch operand']
  #allocation4 [shape = 'bf16[64,128]{1,0:T(8,128)(2,1)}', space=vmem, size = 0x4000, scoped, tag = 'scratch operand']
  %s0 = inlined_call_operand.hbm [shape: s32[2,8], index: 0, kind: input, shape index: {}]
  %s1 = inlined_call_operand.hbm [shape: f32[16,128], index: 1, kind: input, shape index: {}]
  %s2 = inlined_call_operand.hbm [shape: bf16[128,512], index: 2, kind: input, shape index: {}]
  %s3 = inlined_call_operand.hbm [shape: bf16[128,512], index: 3, kind: input, shape index: {}]
  %s4 = inlined_call_operand.hbm [shape: f32[1,512], index: 4, kind: input, shape index: {}]
  %s5 = inlined_call_operand.hbm [shape: bf16[128,512], index: 5, kind: input, shape index: {}]
  %s6 = inlined_call_operand.hbm [shape: bf16[128,512], index: 6, kind: input, shape index: {}]
  %s7 = inlined_call_operand.vmem [shape: f32[1,512], index: 7, kind: input, shape index: {}]
  %s8 = inlined_call_operand.hbm [shape: bf16[128,128], index: 8, kind: input, shape index: {}]
  %s9 = inlined_call_operand.vmem [shape: f32[1,128], index: 9, kind: input, shape index: {}]
  %s10 = inlined_call_operand.vmem [shape: f32[64,128], index: 10, kind: output, shape index: {0}]
  %s11 = inlined_call_operand.vmem [shape: f32[2,8,128], index: 11, kind: output, shape index: {1}]
  %s12 = inlined_call_operand.vmem [shape: f32[2,8,128], index: 12, kind: output, shape index: {2}]
  %13 = xla_tuple %s10, %s11, %s12
  %s14 = sld [smem:[#allocation0]]
  $region98: #{char_lstm_forward.1} parent=0
    _
  %s16 = ssub.s32 1, %s14
  %s17 = scalar_select 0, %s16, %s14
  $region1: #{char_lstm_forward.1} parent=0
    #allocation5 [shape = 'u8[1024]{0}', space=smem, size = 0x400, scoped, tag = 'input window, operand 0, single buffered']
    #allocation6 [shape = 's32[1]{0}', space=sflag, size = 0x4, scoped, tag = 'scoped memory for char_lstm_forward.1']
    #allocation7 [shape = 's32[1]{0}', space=sflag, size = 0x4, scoped, tag = 'scoped memory for char_lstm_forward.1']
    #allocation8 [shape = 'u8[8192]{0}', space=vmem, size = 0x2000, scoped, tag = 'input window, operand 1, single buffered']
    #allocation9 [shape = 'u8[131072]{0}', space=vmem, size = 0x20000, scoped, tag = 'input window, operand 2, single buffered']
    #allocation10 [shape = 's32[1]{0}', space=sflag, size = 0x4, scoped, tag = 'scoped memory for char_lstm_forward.1']
    #allocation11 [shape = 'u8[131072]{0}', space=vmem, size = 0x20000, scoped, tag = 'input window, operand 3, single buffered']
    #allocation12 [shape = 'u8[2048]{0}', space=vmem, size = 0x800, scoped, tag = 'input window, operand 4, single buffered']
    #allocation13 [shape = 's32[1]{0}', space=sflag, size = 0x4, scoped, tag = 'scoped memory for char_lstm_forward.1']
    #allocation14 [shape = 'u8[131072]{0}', space=vmem, size = 0x20000, scoped, tag = 'input window, operand 5, single buffered']
    #allocation15 [shape = 'u8[131072]{0}', space=vmem, size = 0x20000, scoped, tag = 'input window, operand 6, single buffered']
    #allocation16 [shape = 's32[1]{0}', space=sflag, size = 0x4, scoped, tag = 'scoped memory for char_lstm_forward.1']
    #allocation17 [shape = 'u8[32768]{0}', space=vmem, size = 0x8000, scoped, tag = 'input window, operand 8, single buffered']
    %18 = vsyncpa [#allocation7], 0
    %19 = vsyncpa [#allocation6], 0
    %20 = vsyncpa [#allocation10], 0
    %21 = vsyncpa [#allocation13], 0
    %22 = vsyncpa [#allocation16], 0
    // Predicated region
    $region2: #{char_lstm_forward.1} parent=1 // pred_check
      _
    $region3: #{char_lstm_forward.1} parent=1 // pred_check_branch
      %24 = sbr.rel (0) target = $region5
    $region4: #{char_lstm_forward.1} parent=1 // pred_region
      %s26 = ssub.s32 32, 32
      %27 = vsyncadd [#allocation7], %s26
      %30 = dma.hbm_to_smem %s0, 32, [#allocation5], [#allocation7]
    $region5: #{char_lstm_forward.1} parent=1 // pred_fallthru
      _
    // Predicated region
    $region6: #{char_lstm_forward.1} parent=1 // pred_check
      _
    $region7: #{char_lstm_forward.1} parent=1 // pred_check_branch
      %32 = sbr.rel (0) target = $region9
    $region8: #{char_lstm_forward.1} parent=1 // pred_region
      %s34 = ssub.s32 256, 256
      %35 = vsyncadd [#allocation6], %s34
      %s36 = sshll.u32 [#allocation8], 4
      %s37 = int_to_ptr.vmem [resolvable:$true] %s36
      %42 = dma.hbm_to_vmem [thread:$0]  %s1, 256, %s37, [#allocation6], 128, 128, 8
    $region9: #{char_lstm_forward.1} parent=1 // pred_fallthru
      _
    // Predicated region
    $region10: #{char_lstm_forward.1} parent=1 // pred_check
      _
    $region11: #{char_lstm_forward.1} parent=1 // pred_check_branch
      %44 = sbr.rel (0) target = $region13
    $region12: #{char_lstm_forward.1} parent=1 // pred_region
      %s46 = ssub.s32 4096, 4096
      %47 = vsyncadd [#allocation10], %s46
      %s48 = sshll.u32 [#allocation9], 4
      %s49 = int_to_ptr.vmem [resolvable:$true] %s48
      %54 = dma.hbm_to_vmem [thread:$0]  %s2, 4096, %s49, [#allocation10], 256, 256, 16
    $region13: #{char_lstm_forward.1} parent=1 // pred_fallthru
      _
    // Predicated region
    $region14: #{char_lstm_forward.1} parent=1 // pred_check
      _
    $region15: #{char_lstm_forward.1} parent=1 // pred_check_branch
      %56 = sbr.rel (0) target = $region17
    $region16: #{char_lstm_forward.1} parent=1 // pred_region
      %s58 = ssub.s32 4096, 4096
      %59 = vsyncadd [#allocation10], %s58
      %s60 = sshll.u32 [#allocation11], 4
      %s61 = int_to_ptr.vmem [resolvable:$true] %s60
      %66 = dma.hbm_to_vmem [thread:$0]  %s3, 4096, %s61, [#allocation10], 256, 256, 16
    $region17: #{char_lstm_forward.1} parent=1 // pred_fallthru
      _
    // Predicated region
    $region18: #{char_lstm_forward.1} parent=1 // pred_check
      _
    $region19: #{char_lstm_forward.1} parent=1 // pred_check_branch
      %68 = sbr.rel (0) target = $region21
    $region20: #{char_lstm_forward.1} parent=1 // pred_region
      %s70 = ssub.s32 64, 64
      %71 = vsyncadd [#allocation13], %s70
      %s73 = sshll.u32 [#allocation12], 4
      %s74 = int_to_ptr.vmem [resolvable:$true] %s73
      %76 = dma.hbm_to_vmem [thread:$0]  %s4, 64, %s74, [#allocation13]
    $region21: #{char_lstm_forward.1} parent=1 // pred_fallthru
      _
    // Predicated region
    $region22: #{char_lstm_forward.1} parent=1 // pred_check
      _
    $region23: #{char_lstm_forward.1} parent=1 // pred_check_branch
      %78 = sbr.rel (0) target = $region25
    $region24: #{char_lstm_forward.1} parent=1 // pred_region
      %s80 = ssub.s32 4096, 4096
      %81 = vsyncadd [#allocation13], %s80
      %s82 = sshll.u32 [#allocation14], 4
      %s83 = int_to_ptr.vmem [resolvable:$true] %s82
      %88 = dma.hbm_to_vmem [thread:$0]  %s5, 4096, %s83, [#allocation13], 256, 256, 16
    $region25: #{char_lstm_forward.1} parent=1 // pred_fallthru
      _
    // Predicated region
    $region26: #{char_lstm_forward.1} parent=1 // pred_check
      _
    $region27: #{char_lstm_forward.1} parent=1 // pred_check_branch
      %90 = sbr.rel (0) target = $region29
    $region28: #{char_lstm_forward.1} parent=1 // pred_region
      %s92 = ssub.s32 4096, 4096
      %93 = vsyncadd [#allocation16], %s92
      %s94 = sshll.u32 [#allocation15], 4
      %s95 = int_to_ptr.vmem [resolvable:$true] %s94
      %100 = dma.hbm_to_vmem [thread:$0]  %s6, 4096, %s95, [#allocation16], 256, 256, 16
    $region29: #{char_lstm_forward.1} parent=1 // pred_fallthru
      _
    // Predicated region
    $region30: #{char_lstm_forward.1} parent=1 // pred_check
      _
    $region31: #{char_lstm_forward.1} parent=1 // pred_check_branch
      %102 = sbr.rel (0) target = $region33
    $region32: #{char_lstm_forward.1} parent=1 // pred_region
      _
    $region33: #{char_lstm_forward.1} parent=1 // pred_fallthru
      _
    // Predicated region
    $region34: #{char_lstm_forward.1} parent=1 // pred_check
      _
    $region35: #{char_lstm_forward.1} parent=1 // pred_check_branch
      %104 = sbr.rel (0) target = $region37
    $region36: #{char_lstm_forward.1} parent=1 // pred_region
      %s106 = ssub.s32 1024, 1024
      %107 = vsyncadd [#allocation16], %s106
      %s108 = sshll.u32 [#allocation17], 4
      %s109 = int_to_ptr.vmem [resolvable:$true] %s108
      %114 = dma.hbm_to_vmem [thread:$0]  %s8, 1024, %s109, [#allocation16], 64, 64, 4
    $region37: #{char_lstm_forward.1} parent=1 // pred_fallthru
      _
    // Predicated region
    $region38: #{char_lstm_forward.1} parent=1 // pred_check
      _
    $region39: #{char_lstm_forward.1} parent=1 // pred_check_branch
      %116 = sbr.rel (0) target = $region41
    $region40: #{char_lstm_forward.1} parent=1 // pred_region
      _
    $region41: #{char_lstm_forward.1} parent=1 // pred_fallthru
      _
    // Predicated region
    $region42: #{char_lstm_forward.1} parent=1 // pred_check
      _
    $region43: #{char_lstm_forward.1} parent=1 // pred_check_branch
      %118 = sbr.rel (0) target = $region45
    $region44: #{char_lstm_forward.1} parent=1 // pred_region
      %119 = dma.done [#allocation7], 32
    $region45: #{char_lstm_forward.1} parent=1 // pred_fallthru
      _
    // Predicated region
    $region46: #{char_lstm_forward.1} parent=1 // pred_check
      _
    $region47: #{char_lstm_forward.1} parent=1 // pred_check_branch
      %121 = sbr.rel (0) target = $region49
    $region48: #{char_lstm_forward.1} parent=1 // pred_region
      %122 = dma.done [#allocation6], 256
    $region49: #{char_lstm_forward.1} parent=1 // pred_fallthru
      _
    // Predicated region
    $region50: #{char_lstm_forward.1} parent=1 // pred_check
      _
    $region51: #{char_lstm_forward.1} parent=1 // pred_check_branch
      %124 = sbr.rel (0) target = $region53
    $region52: #{char_lstm_forward.1} parent=1 // pred_region
      %125 = dma.done [#allocation10], 4096
    $region53: #{char_lstm_forward.1} parent=1 // pred_fallthru
      _
    // Predicated region
    $region54: #{char_lstm_forward.1} parent=1 // pred_check
      _
    $region55: #{char_lstm_forward.1} parent=1 // pred_check_branch
      %127 = sbr.rel (0) target = $region57
    $region56: #{char_lstm_forward.1} parent=1 // pred_region
      %128 = dma.done [#allocation10], 4096
    $region57: #{char_lstm_forward.1} parent=1 // pred_fallthru
      _
    // Predicated region
    $region58: #{char_lstm_forward.1} parent=1 // pred_check
      _
    $region59: #{char_lstm_forward.1} parent=1 // pred_check_branch
      %130 = sbr.rel (0) target = $region61
    $region60: #{char_lstm_forward.1} parent=1 // pred_region
      %131 = dma.done [#allocation13], 64
    $region61: #{char_lstm_forward.1} parent=1 // pred_fallthru
      _
    // Predicated region
    $region62: #{char_lstm_forward.1} parent=1 // pred_check
      _
    $region63: #{char_lstm_forward.1} parent=1 // pred_check_branch
      %133 = sbr.rel (0) target = $region65
    $region64: #{char_lstm_forward.1} parent=1 // pred_region
      %134 = dma.done [#allocation13], 4096
    $region65: #{char_lstm_forward.1} parent=1 // pred_fallthru
      _
    // Predicated region
    $region66: #{char_lstm_forward.1} parent=1 // pred_check
      _
    $region67: #{char_lstm_forward.1} parent=1 // pred_check_branch
      %136 = sbr.rel (0) target = $region69
    $region68: #{char_lstm_forward.1} parent=1 // pred_region
      %137 = dma.done [#allocation16], 4096
    $region69: #{char_lstm_forward.1} parent=1 // pred_fallthru
      _
    // Predicated region
    $region70: #{char_lstm_forward.1} parent=1 // pred_check
      _
    $region71: #{char_lstm_forward.1} parent=1 // pred_check_branch
      %139 = sbr.rel (0) target = $region73
    $region72: #{char_lstm_forward.1} parent=1 // pred_region
      %140 = dma.done [#allocation16], 1024
    $region73: #{char_lstm_forward.1} parent=1 // pred_fallthru
      _
    %141 = sfence
    %143 = vst [vmem:[#allocation2] sm:$0xff] 0.0
    %144 = vst [vmem:[#allocation2 + $0x8] sm:$0xff] 0.0
    %145 = vst [vmem:[#allocation2 + $0x10] sm:$0xff] 0.0
    %146 = vst [vmem:[#allocation2 + $0x18] sm:$0xff] 0.0
    %147 = vst [vmem:[#allocation2 + $0x20] sm:$0xff] 0.0
    %148 = vst [vmem:[#allocation2 + $0x28] sm:$0xff] 0.0
    %149 = vst [vmem:[#allocation2 + $0x30] sm:$0xff] 0.0
    %150 = vst [vmem:[#allocation2 + $0x38] sm:$0xff] 0.0
    %s151 = sld [smem:[#allocation5]]
    %s152 = scalar_lea.vmem [#allocation8], %s151
    %v153 = vld [vmem:[%s152] sm:$0x1]
    %154 = vst [vmem:[#allocation2] sm:$0x1] %v153
    %s155 = sld [smem:[#allocation5 + $0x80]]
    %s156 = scalar_lea.vmem [#allocation8], %s155
    %v157 = vld [vmem:[%s156] sm:$0x1]
    %158 = vst [vmem:[#allocation2 + $0x1] sm:$0x1] %v157
    %s159 = sld [smem:[#allocation5 + $0x1]]
    %s160 = scalar_lea.vmem [#allocation8], %s159
    %v161 = vld [vmem:[%s160] sm:$0x1]
    %162 = vst [vmem:[#allocation2 + $0x8] sm:$0x1] %v161
    %s163 = sld [smem:[#allocation5 + $0x81]]
    %s164 = scalar_lea.vmem [#allocation8], %s163
    %v165 = vld [vmem:[%s164] sm:$0x1]
    %166 = vst [vmem:[#allocation2 + $0x9] sm:$0x1] %v165
    %s167 = sld [smem:[#allocation5 + $0x2]]
    %s168 = scalar_lea.vmem [#allocation8], %s167
    %v169 = vld [vmem:[%s168] sm:$0x1]
    %170 = vst [vmem:[#allocation2 + $0x10] sm:$0x1] %v169
    %s171 = sld [smem:[#allocation5 + $0x82]]
    %s172 = scalar_lea.vmem [#allocation8], %s171
    %v173 = vld [vmem:[%s172] sm:$0x1]
    %174 = vst [vmem:[#allocation2 + $0x11] sm:$0x1] %v173
    %s175 = sld [smem:[#allocation5 + $0x3]]
    %s176 = scalar_lea.vmem [#allocation8], %s175
    %v177 = vld [vmem:[%s176] sm:$0x1]
    %178 = vst [vmem:[#allocation2 + $0x18] sm:$0x1] %v177
    %s179 = sld [smem:[#allocation5 + $0x83]]
    %s180 = scalar_lea.vmem [#allocation8], %s179
    %v181 = vld [vmem:[%s180] sm:$0x1]
    %182 = vst [vmem:[#allocation2 + $0x19] sm:$0x1] %v181
    %s183 = sld [smem:[#allocation5 + $0x4]]
    %s184 = scalar_lea.vmem [#allocation8], %s183
    %v185 = vld [vmem:[%s184] sm:$0x1]
    %186 = vst [vmem:[#allocation2 + $0x20] sm:$0x1] %v185
    %s187 = sld [smem:[#allocation5 + $0x84]]
    %s188 = scalar_lea.vmem [#allocation8], %s187
    %v189 = vld [vmem:[%s188] sm:$0x1]
    %190 = vst [vmem:[#allocation2 + $0x21] sm:$0x1] %v189
    %s191 = sld [smem:[#allocation5 + $0x5]]
    %s192 = scalar_lea.vmem [#allocation8], %s191
    %v193 = vld [vmem:[%s192] sm:$0x1]
    %194 = vst [vmem:[#allocation2 + $0x28] sm:$0x1] %v193
    %s195 = sld [smem:[#allocation5 + $0x85]]
    %s196 = scalar_lea.vmem [#allocation8], %s195
    %v197 = vld [vmem:[%s196] sm:$0x1]
    %198 = vst [vmem:[#allocation2 + $0x29] sm:$0x1] %v197
    %s199 = sld [smem:[#allocation5 + $0x6]]
    %s200 = scalar_lea.vmem [#allocation8], %s199
    %v201 = vld [vmem:[%s200] sm:$0x1]
    %202 = vst [vmem:[#allocation2 + $0x30] sm:$0x1] %v201
    %s203 = sld [smem:[#allocation5 + $0x86]]
    %s204 = scalar_lea.vmem [#allocation8], %s203
    %v205 = vld [vmem:[%s204] sm:$0x1]
    %206 = vst [vmem:[#allocation2 + $0x31] sm:$0x1] %v205
    %s207 = sld [smem:[#allocation5 + $0x7]]
    %s208 = scalar_lea.vmem [#allocation8], %s207
    %v209 = vld [vmem:[%s208] sm:$0x1]
    %210 = vst [vmem:[#allocation2 + $0x38] sm:$0x1] %v209
    %s211 = sld [smem:[#allocation5 + $0x87]]
    %s212 = scalar_lea.vmem [#allocation8], %s211
    %v213 = vld [vmem:[%s212] sm:$0x1]
    %214 = vst [vmem:[#allocation2 + $0x39] sm:$0x1] %v213
    %v215 = vld [vmem:[#allocation2] sm:$0xff]
    %v216 = vld [vmem:[#allocation2 + $0x8] sm:$0xff]
    %v217 = vld [vmem:[#allocation2 + $0x10] sm:$0xff]
    %v218 = vld [vmem:[#allocation2 + $0x18] sm:$0xff]
    %v219 = vld [vmem:[#allocation2 + $0x20] sm:$0xff]
    %v220 = vld [vmem:[#allocation2 + $0x28] sm:$0xff]
    %v221 = vld [vmem:[#allocation2 + $0x30] sm:$0xff]
    %v222 = vld [vmem:[#allocation2 + $0x38] sm:$0xff]
    %v223 = vpack.c.bf16 %v216, %v215
    %v224 = vpack.c.bf16 %v218, %v217
    %v225 = vpack.c.bf16 %v220, %v219
    %v226 = vpack.c.bf16 %v222, %v221
    %v227 = vld [vmem:[#allocation9] sm:$0xff]
    %v228 = vld [vmem:[#allocation9 + $0x8] sm:$0xff]
    %v229 = vld [vmem:[#allocation9 + $0x10] sm:$0xff]
    %v230 = vld [vmem:[#allocation9 + $0x18] sm:$0xff]
    %v231 = vld [vmem:[#allocation9 + $0x20] sm:$0xff]
    %v232 = vld [vmem:[#allocation9 + $0x28] sm:$0xff]
    %v233 = vld [vmem:[#allocation9 + $0x30] sm:$0xff]
    %v234 = vld [vmem:[#allocation9 + $0x38] sm:$0xff]
    %v235 = vld [vmem:[#allocation9 + $0x40] sm:$0xff]
    %v236 = vld [vmem:[#allocation9 + $0x48] sm:$0xff]
    %v237 = vld [vmem:[#allocation9 + $0x50] sm:$0xff]
    %v238 = vld [vmem:[#allocation9 + $0x58] sm:$0xff]
    %v239 = vld [vmem:[#allocation9 + $0x60] sm:$0xff]
    %v240 = vld [vmem:[#allocation9 + $0x68] sm:$0xff]
    %v241 = vld [vmem:[#allocation9 + $0x70] sm:$0xff]
    %v242 = vld [vmem:[#allocation9 + $0x78] sm:$0xff]
    %v243 = vld [vmem:[#allocation9 + $0x80] sm:$0xff]
    %v244 = vld [vmem:[#allocation9 + $0x88] sm:$0xff]
    %v245 = vld [vmem:[#allocation9 + $0x90] sm:$0xff]
    %v246 = vld [vmem:[#allocation9 + $0x98] sm:$0xff]
    %v247 = vld [vmem:[#allocation9 + $0xa0] sm:$0xff]
    %v248 = vld [vmem:[#allocation9 + $0xa8] sm:$0xff]
    %v249 = vld [vmem:[#allocation9 + $0xb0] sm:$0xff]
    %v250 = vld [vmem:[#allocation9 + $0xb8] sm:$0xff]
    %v251 = vld [vmem:[#allocation9 + $0xc0] sm:$0xff]
    %v252 = vld [vmem:[#allocation9 + $0xc8] sm:$0xff]
    %v253 = vld [vmem:[#allocation9 + $0xd0] sm:$0xff]
    %v254 = vld [vmem:[#allocation9 + $0xd8] sm:$0xff]
    %v255 = vld [vmem:[#allocation9 + $0xe0] sm:$0xff]
    %v256 = vld [vmem:[#allocation9 + $0xe8] sm:$0xff]
    %v257 = vld [vmem:[#allocation9 + $0xf0] sm:$0xff]
    %v258 = vld [vmem:[#allocation9 + $0xf8] sm:$0xff]
    %v259 = vld [vmem:[#allocation11] sm:$0xff]
    %v260 = vld [vmem:[#allocation11 + $0x8] sm:$0xff]
    %v261 = vld [vmem:[#allocation11 + $0x10] sm:$0xff]
    %v262 = vld [vmem:[#allocation11 + $0x18] sm:$0xff]
    %v263 = vld [vmem:[#allocation11 + $0x20] sm:$0xff]
    %v264 = vld [vmem:[#allocation11 + $0x28] sm:$0xff]
    %v265 = vld [vmem:[#allocation11 + $0x30] sm:$0xff]
    %v266 = vld [vmem:[#allocation11 + $0x38] sm:$0xff]
    %v267 = vld [vmem:[#allocation11 + $0x40] sm:$0xff]
    %v268 = vld [vmem:[#allocation11 + $0x48] sm:$0xff]
    %v269 = vld [vmem:[#allocation11 + $0x50] sm:$0xff]
    %v270 = vld [vmem:[#allocation11 + $0x58] sm:$0xff]
    %v271 = vld [vmem:[#allocation11 + $0x60] sm:$0xff]
    %v272 = vld [vmem:[#allocation11 + $0x68] sm:$0xff]
    %v273 = vld [vmem:[#allocation11 + $0x70] sm:$0xff]
    %v274 = vld [vmem:[#allocation11 + $0x78] sm:$0xff]
    %v275 = vld [vmem:[#allocation11 + $0x80] sm:$0xff]
    %v276 = vld [vmem:[#allocation11 + $0x88] sm:$0xff]
    %v277 = vld [vmem:[#allocation11 + $0x90] sm:$0xff]
    %v278 = vld [vmem:[#allocation11 + $0x98] sm:$0xff]
    %v279 = vld [vmem:[#allocation11 + $0xa0] sm:$0xff]
    %v280 = vld [vmem:[#allocation11 + $0xa8] sm:$0xff]
    %v281 = vld [vmem:[#allocation11 + $0xb0] sm:$0xff]
    %v282 = vld [vmem:[#allocation11 + $0xb8] sm:$0xff]
    %v283 = vld [vmem:[#allocation11 + $0xc0] sm:$0xff]
    %v284 = vld [vmem:[#allocation11 + $0xc8] sm:$0xff]
    %v285 = vld [vmem:[#allocation11 + $0xd0] sm:$0xff]
    %v286 = vld [vmem:[#allocation11 + $0xd8] sm:$0xff]
    %v287 = vld [vmem:[#allocation11 + $0xe0] sm:$0xff]
    %v288 = vld [vmem:[#allocation11 + $0xe8] sm:$0xff]
    %v289 = vld [vmem:[#allocation11 + $0xf0] sm:$0xff]
    %v290 = vld [vmem:[#allocation11 + $0xf8] sm:$0xff]
    %v291 = vld [vmem:[#allocation12] sm:$0xf]
    %v293 = vlaneseq
    %v294 = vshrl.u32 %v293, 7
    %v295 = vsub.s32 0, %v294
    %v296 = vrot.slane %v291, %v295
    %v297 = vlaneseq
    %v298 = vshrl.u32 %v297, 7
    %v299 = vsub.s32 1, %v298
    %v300 = vrot.slane %v291, %v299
    %v301 = vlaneseq
    %v302 = vshrl.u32 %v301, 7
    %v303 = vsub.s32 2, %v302
    %v304 = vrot.slane %v291, %v303
    %v305 = vlaneseq
    %v306 = vshrl.u32 %v305, 7
    %v307 = vsub.s32 3, %v306
    %v308 = vrot.slane %v291, %v307
    %v345 = vunpack.c.l.b16 %v227
    %v346 = vunpack.c.h.b16 %v227
    %v347 = vunpack.c.l.b16 %v228
    %v348 = vunpack.c.h.b16 %v228
    %v349 = vunpack.c.l.b16 %v229
    %v350 = vunpack.c.h.b16 %v229
    %v351 = vunpack.c.l.b16 %v230
    %v352 = vunpack.c.h.b16 %v230
    %v353 = vunpack.c.l.b16 %v231
    %v354 = vunpack.c.h.b16 %v231
    %v355 = vunpack.c.l.b16 %v232
    %v356 = vunpack.c.h.b16 %v232
    %v357 = vunpack.c.l.b16 %v233
    %v358 = vunpack.c.h.b16 %v233
    %v359 = vunpack.c.l.b16 %v234
    %v360 = vunpack.c.h.b16 %v234
    %v361 = vunpack.c.l.b16 %v235
    %v362 = vunpack.c.h.b16 %v235
    %v363 = vunpack.c.l.b16 %v236
    %v364 = vunpack.c.h.b16 %v236
    %v365 = vunpack.c.l.b16 %v237
    %v366 = vunpack.c.h.b16 %v237
    %v367 = vunpack.c.l.b16 %v238
    %v368 = vunpack.c.h.b16 %v238
    %v369 = vunpack.c.l.b16 %v239
    %v370 = vunpack.c.h.b16 %v239
    %v371 = vunpack.c.l.b16 %v240
    %v372 = vunpack.c.h.b16 %v240
    %v373 = vunpack.c.l.b16 %v241
    %v374 = vunpack.c.h.b16 %v241
    %v375 = vunpack.c.l.b16 %v242
    %v376 = vunpack.c.h.b16 %v242
    %v377 = vunpack.c.l.b16 %v243
    %v378 = vunpack.c.h.b16 %v243
    %v379 = vunpack.c.l.b16 %v244
    %v380 = vunpack.c.h.b16 %v244
    %v381 = vunpack.c.l.b16 %v245
    %v382 = vunpack.c.h.b16 %v245
    %v383 = vunpack.c.l.b16 %v246
    %v384 = vunpack.c.h.b16 %v246
    %v385 = vunpack.c.l.b16 %v247
    %v386 = vunpack.c.h.b16 %v247
    %v387 = vunpack.c.l.b16 %v248
    %v388 = vunpack.c.h.b16 %v248
    %v389 = vunpack.c.l.b16 %v249
    %v390 = vunpack.c.h.b16 %v249
    %v391 = vunpack.c.l.b16 %v250
    %v392 = vunpack.c.h.b16 %v250
    %v393 = vunpack.c.l.b16 %v251
    %v394 = vunpack.c.h.b16 %v251
    %v395 = vunpack.c.l.b16 %v252
    %v396 = vunpack.c.h.b16 %v252
    %v397 = vunpack.c.l.b16 %v253
    %v398 = vunpack.c.h.b16 %v253
    %v399 = vunpack.c.l.b16 %v254
    %v400 = vunpack.c.h.b16 %v254
    %v401 = vunpack.c.l.b16 %v255
    %v402 = vunpack.c.h.b16 %v255
    %v403 = vunpack.c.l.b16 %v256
    %v404 = vunpack.c.h.b16 %v256
    %v405 = vunpack.c.l.b16 %v257
    %v406 = vunpack.c.h.b16 %v257
    %v407 = vunpack.c.l.b16 %v258
    %v408 = vunpack.c.h.b16 %v258
    %v409 = vpack.c.b16 %v349, %v345
    %v410 = vpack.c.b16 %v350, %v346
    %v411 = vpack.c.b16 %v351, %v347
    %v412 = vpack.c.b16 %v352, %v348
    %v413 = vpack.c.b16 %v357, %v353
    %v414 = vpack.c.b16 %v358, %v354
    %v415 = vpack.c.b16 %v359, %v355
    %v416 = vpack.c.b16 %v360, %v356
    %v417 = vpack.c.b16 %v365, %v361
    %v418 = vpack.c.b16 %v366, %v362
    %v419 = vpack.c.b16 %v367, %v363
    %v420 = vpack.c.b16 %v368, %v364
    %v421 = vpack.c.b16 %v373, %v369
    %v422 = vpack.c.b16 %v374, %v370
    %v423 = vpack.c.b16 %v375, %v371
    %v424 = vpack.c.b16 %v376, %v372
    %v425 = vpack.c.b16 %v381, %v377
    %v426 = vpack.c.b16 %v382, %v378
    %v427 = vpack.c.b16 %v383, %v379
    %v428 = vpack.c.b16 %v384, %v380
    %v429 = vpack.c.b16 %v389, %v385
    %v430 = vpack.c.b16 %v390, %v386
    %v431 = vpack.c.b16 %v391, %v387
    %v432 = vpack.c.b16 %v392, %v388
    %v433 = vpack.c.b16 %v397, %v393
    %v434 = vpack.c.b16 %v398, %v394
    %v435 = vpack.c.b16 %v399, %v395
    %v436 = vpack.c.b16 %v400, %v396
    %v437 = vpack.c.b16 %v405, %v401
    %v438 = vpack.c.b16 %v406, %v402
    %v439 = vpack.c.b16 %v407, %v403
    %v440 = vpack.c.b16 %v408, %v404
    %473 = vmatprep.subr.bf16.mxu0 %v438
    %474 = vmatpush1.bf16.msra.mxu0 %v437
    %475 = vmatprep.subr.bf16.mxu0 %v434
    %476 = vmatpush1.bf16.msra.mxu0 %v433
    %477 = vmatprep.subr.bf16.mxu0 %v430
    %478 = vmatpush1.bf16.msra.mxu0 %v429
    %479 = vmatprep.subr.bf16.mxu0 %v426
    %480 = vmatpush1.bf16.msra.mxu0 %v425
    %481 = vmatprep.subr.bf16.mxu0 %v422
    %482 = vmatpush1.bf16.msra.mxu0 %v421
    %483 = vmatprep.subr.bf16.mxu0 %v418
    %484 = vmatpush1.bf16.msra.mxu0 %v417
    %485 = vmatprep.subr.bf16.mxu0 %v414
    %486 = vmatpush1.bf16.msra.mxu0 %v413
    %487 = vmatprep.subr.bf16.mxu0 %v410
    %488 = vmatpush1.bf16.msra.mxu0 %v409
    %489 = vmatprep.subr.bf16.mxu0 0
    %490 = vmatpush2.bf16.msra.mxu0 0
    %491 = vmatprep.subr.bf16.mxu0 0
    %492 = vmatpush2.bf16.msra.mxu0 0
    %493 = vmatprep.subr.bf16.mxu0 0
    %494 = vmatpush2.bf16.msra.mxu0 0
    %495 = vmatprep.subr.bf16.mxu0 0
    %496 = vmatpush2.bf16.msra.mxu0 0
    %497 = vmatprep.subr.bf16.mxu0 0
    %498 = vmatpush2.bf16.msra.mxu0 0
    %499 = vmatprep.subr.bf16.mxu0 0
    %500 = vmatpush2.bf16.msra.mxu0 0
    %501 = vmatprep.subr.bf16.mxu0 0
    %502 = vmatpush2.bf16.msra.mxu0 0
    %503 = vmatprep.subr.bf16.mxu0 0
    %504 = vmatpush2.bf16.msra.mxu0 0
    %505 = vmatprep.mubr.bf16.mxu0 0
    %506 = vmatmul.mubr.bf16.gmra.mxu0 %v223
    %v507 = vpop.f32.mrf.mxu0
    %v508 = vadd.f32 %v296, %v507
    %v509 = vpop.f32.mrf.mxu0
    %v510 = vadd.f32 %v300, %v509
    %v511 = vpop.f32.mrf.mxu0
    %v512 = vadd.f32 %v296, %v511
    %v513 = vpop.f32.mrf.mxu0
    %v514 = vadd.f32 %v300, %v513
    %515 = vmatprep.mubr.bf16.mxu0 0
    %516 = vmatmul.mubr.bf16.gmra.mxu0 %v224
    %v517 = vpop.f32.mrf.mxu0
    %v518 = vadd.f32 %v296, %v517
    %v519 = vpop.f32.mrf.mxu0
    %v520 = vadd.f32 %v300, %v519
    %v521 = vpop.f32.mrf.mxu0
    %v522 = vadd.f32 %v296, %v521
    %v523 = vpop.f32.mrf.mxu0
    %v524 = vadd.f32 %v300, %v523
    %525 = vmatprep.mubr.bf16.mxu0 0
    %526 = vmatmul.mubr.bf16.gmra.mxu0 %v225
    %v527 = vpop.f32.mrf.mxu0
    %v528 = vadd.f32 %v296, %v527
    %v529 = vpop.f32.mrf.mxu0
    %v530 = vadd.f32 %v300, %v529
    %v531 = vpop.f32.mrf.mxu0
    %v532 = vadd.f32 %v296, %v531
    %v533 = vpop.f32.mrf.mxu0
    %v534 = vadd.f32 %v300, %v533
    %535 = vmatprep.mubr.bf16.mxu0 0
    %536 = vmatmul.mubr.bf16.gmra.mxu0 %v226
    %v537 = vpop.f32.mrf.mxu0
    %v538 = vadd.f32 %v296, %v537
    %v539 = vpop.f32.mrf.mxu0
    %v540 = vadd.f32 %v300, %v539
    %v541 = vpop.f32.mrf.mxu0
    %v542 = vadd.f32 %v296, %v541
    %v543 = vpop.f32.mrf.mxu0
    %v544 = vadd.f32 %v300, %v543
    %545 = vdwg.mxu0
    %546 = vmatprep.subr.bf16.mxu0 %v440
    %547 = vmatpush1.bf16.msra.mxu0 %v439
    %548 = vmatprep.subr.bf16.mxu0 %v436
    %549 = vmatpush1.bf16.msra.mxu0 %v435
    %550 = vmatprep.subr.bf16.mxu0 %v432
    %551 = vmatpush1.bf16.msra.mxu0 %v431
    %552 = vmatprep.subr.bf16.mxu0 %v428
    %553 = vmatpush1.bf16.msra.mxu0 %v427
    %554 = vmatprep.subr.bf16.mxu0 %v424
    %555 = vmatpush1.bf16.msra.mxu0 %v423
    %556 = vmatprep.subr.bf16.mxu0 %v420
    %557 = vmatpush1.bf16.msra.mxu0 %v419
    %558 = vmatprep.subr.bf16.mxu0 %v416
    %559 = vmatpush1.bf16.msra.mxu0 %v415
    %560 = vmatprep.subr.bf16.mxu0 %v412
    %561 = vmatpush1.bf16.msra.mxu0 %v411
    %562 = vmatprep.subr.bf16.mxu0 0
    %563 = vmatpush2.bf16.msra.mxu0 0
    %564 = vmatprep.subr.bf16.mxu0 0
    %565 = vmatpush2.bf16.msra.mxu0 0
    %566 = vmatprep.subr.bf16.mxu0 0
    %567 = vmatpush2.bf16.msra.mxu0 0
    %568 = vmatprep.subr.bf16.mxu0 0
    %569 = vmatpush2.bf16.msra.mxu0 0
    %570 = vmatprep.subr.bf16.mxu0 0
    %571 = vmatpush2.bf16.msra.mxu0 0
    %572 = vmatprep.subr.bf16.mxu0 0
    %573 = vmatpush2.bf16.msra.mxu0 0
    %574 = vmatprep.subr.bf16.mxu0 0
    %575 = vmatpush2.bf16.msra.mxu0 0
    %576 = vmatprep.subr.bf16.mxu0 0
    %577 = vmatpush2.bf16.msra.mxu0 0
    %578 = vmatprep.mubr.bf16.mxu0 0
    %579 = vmatmul.mubr.bf16.gmra.mxu0 %v223
    %v580 = vpop.f32.mrf.mxu0
    %v581 = vadd.f32 %v304, %v580
    %v582 = vpop.f32.mrf.mxu0
    %v583 = vadd.f32 %v308, %v582
    %v584 = vpop.f32.mrf.mxu0
    %v585 = vadd.f32 %v304, %v584
    %v586 = vpop.f32.mrf.mxu0
    %v587 = vadd.f32 %v308, %v586
    %588 = vmatprep.mubr.bf16.mxu0 0
    %589 = vmatmul.mubr.bf16.gmra.mxu0 %v224
    %v590 = vpop.f32.mrf.mxu0
    %v591 = vadd.f32 %v304, %v590
    %v592 = vpop.f32.mrf.mxu0
    %v593 = vadd.f32 %v308, %v592
    %v594 = vpop.f32.mrf.mxu0
    %v595 = vadd.f32 %v304, %v594
    %v596 = vpop.f32.mrf.mxu0
    %v597 = vadd.f32 %v308, %v596
    %598 = vmatprep.mubr.bf16.mxu0 0
    %599 = vmatmul.mubr.bf16.gmra.mxu0 %v225
    %v600 = vpop.f32.mrf.mxu0
    %v601 = vadd.f32 %v304, %v600
    %v602 = vpop.f32.mrf.mxu0
    %v603 = vadd.f32 %v308, %v602
    %v604 = vpop.f32.mrf.mxu0
    %v605 = vadd.f32 %v304, %v604
    %v606 = vpop.f32.mrf.mxu0
    %v607 = vadd.f32 %v308, %v606
    %608 = vmatprep.mubr.bf16.mxu0 0
    %609 = vmatmul.mubr.bf16.gmra.mxu0 %v226
    %v610 = vpop.f32.mrf.mxu0
    %v611 = vadd.f32 %v304, %v610
    %v612 = vpop.f32.mrf.mxu0
    %v613 = vadd.f32 %v308, %v612
    %v614 = vpop.f32.mrf.mxu0
    %v615 = vadd.f32 %v304, %v614
    %v616 = vpop.f32.mrf.mxu0
    %v617 = vadd.f32 %v308, %v616
    %618 = vdwg.mxu0
    %619 = vst [vmem:[#allocation3] sm:$0xff] %v508
    %620 = vst [vmem:[#allocation3 + $0x8] sm:$0xff] %v510
    %621 = vst [vmem:[#allocation3 + $0x10] sm:$0xff] %v581
    %622 = vst [vmem:[#allocation3 + $0x18] sm:$0xff] %v583
    %623 = vst [vmem:[#allocation3 + $0x20] sm:$0xff] %v512
    %624 = vst [vmem:[#allocation3 + $0x28] sm:$0xff] %v514
    %625 = vst [vmem:[#allocation3 + $0x30] sm:$0xff] %v585
    %626 = vst [vmem:[#allocation3 + $0x38] sm:$0xff] %v587
    %627 = vst [vmem:[#allocation3 + $0x40] sm:$0xff] %v518
    %628 = vst [vmem:[#allocation3 + $0x48] sm:$0xff] %v520
    %629 = vst [vmem:[#allocation3 + $0x50] sm:$0xff] %v591
    %630 = vst [vmem:[#allocation3 + $0x58] sm:$0xff] %v593
    %631 = vst [vmem:[#allocation3 + $0x60] sm:$0xff] %v522
    %632 = vst [vmem:[#allocation3 + $0x68] sm:$0xff] %v524
    %633 = vst [vmem:[#allocation3 + $0x70] sm:$0xff] %v595
    %634 = vst [vmem:[#allocation3 + $0x78] sm:$0xff] %v597
    %635 = vst [vmem:[#allocation3 + $0x80] sm:$0xff] %v528
    %636 = vst [vmem:[#allocation3 + $0x88] sm:$0xff] %v530
    %637 = vst [vmem:[#allocation3 + $0x90] sm:$0xff] %v601
    %638 = vst [vmem:[#allocation3 + $0x98] sm:$0xff] %v603
    %639 = vst [vmem:[#allocation3 + $0xa0] sm:$0xff] %v532
    %640 = vst [vmem:[#allocation3 + $0xa8] sm:$0xff] %v534
    %641 = vst [vmem:[#allocation3 + $0xb0] sm:$0xff] %v605
    %642 = vst [vmem:[#allocation3 + $0xb8] sm:$0xff] %v607
    %643 = vst [vmem:[#allocation3 + $0xc0] sm:$0xff] %v538
    %644 = vst [vmem:[#allocation3 + $0xc8] sm:$0xff] %v540
    %645 = vst [vmem:[#allocation3 + $0xd0] sm:$0xff] %v611
    %646 = vst [vmem:[#allocation3 + $0xd8] sm:$0xff] %v613
    %647 = vst [vmem:[#allocation3 + $0xe0] sm:$0xff] %v542
    %648 = vst [vmem:[#allocation3 + $0xe8] sm:$0xff] %v544
    %649 = vst [vmem:[#allocation3 + $0xf0] sm:$0xff] %v615
    %650 = vst [vmem:[#allocation3 + $0xf8] sm:$0xff] %v617
    %s651 = smul.u32 0, 4
    %s652 = smul.addr %s651, 8
    %s653 = scalar_lea.vmem [#allocation3], %s652
    %v654 = vld [vmem:[%s653] sm:$0xff]
    %v655 = vld [vmem:[%s653 + $0x8] sm:$0xff]
    %v656 = vld [vmem:[%s653 + $0x10] sm:$0xff]
    %v657 = vld [vmem:[%s653 + $0x18] sm:$0xff]
    %v690 = vunpack.c.l.b16 %v259
    %v691 = vunpack.c.h.b16 %v259
    %v692 = vunpack.c.l.b16 %v260
    %v693 = vunpack.c.h.b16 %v260
    %v694 = vunpack.c.l.b16 %v261
    %v695 = vunpack.c.h.b16 %v261
    %v696 = vunpack.c.l.b16 %v262
    %v697 = vunpack.c.h.b16 %v262
    %v698 = vunpack.c.l.b16 %v263
    %v699 = vunpack.c.h.b16 %v263
    %v700 = vunpack.c.l.b16 %v264
    %v701 = vunpack.c.h.b16 %v264
    %v702 = vunpack.c.l.b16 %v265
    %v703 = vunpack.c.h.b16 %v265
    %v704 = vunpack.c.l.b16 %v266
    %v705 = vunpack.c.h.b16 %v266
    %v706 = vunpack.c.l.b16 %v267
    %v707 = vunpack.c.h.b16 %v267
    %v708 = vunpack.c.l.b16 %v268
    %v709 = vunpack.c.h.b16 %v268
    %v710 = vunpack.c.l.b16 %v269
    %v711 = vunpack.c.h.b16 %v269
    %v712 = vunpack.c.l.b16 %v270
    %v713 = vunpack.c.h.b16 %v270
    %v714 = vunpack.c.l.b16 %v271
    %v715 = vunpack.c.h.b16 %v271
    %v716 = vunpack.c.l.b16 %v272
    %v717 = vunpack.c.h.b16 %v272
    %v718 = vunpack.c.l.b16 %v273
    %v719 = vunpack.c.h.b16 %v273
    %v720 = vunpack.c.l.b16 %v274
    %v721 = vunpack.c.h.b16 %v274
    %v722 = vunpack.c.l.b16 %v275
    %v723 = vunpack.c.h.b16 %v275
    %v724 = vunpack.c.l.b16 %v276
    %v725 = vunpack.c.h.b16 %v276
    %v726 = vunpack.c.l.b16 %v277
    %v727 = vunpack.c.h.b16 %v277
    %v728 = vunpack.c.l.b16 %v278
    %v729 = vunpack.c.h.b16 %v278
    %v730 = vunpack.c.l.b16 %v279
    %v731 = vunpack.c.h.b16 %v279
    %v732 = vunpack.c.l.b16 %v280
    %v733 = vunpack.c.h.b16 %v280
    %v734 = vunpack.c.l.b16 %v281
    %v735 = vunpack.c.h.b16 %v281
    %v736 = vunpack.c.l.b16 %v282
    %v737 = vunpack.c.h.b16 %v282
    %v738 = vunpack.c.l.b16 %v283
    %v739 = vunpack.c.h.b16 %v283
    %v740 = vunpack.c.l.b16 %v284
    %v741 = vunpack.c.h.b16 %v284
    %v742 = vunpack.c.l.b16 %v285
    %v743 = vunpack.c.h.b16 %v285
    %v744 = vunpack.c.l.b16 %v286
    %v745 = vunpack.c.h.b16 %v286
    %v746 = vunpack.c.l.b16 %v287
    %v747 = vunpack.c.h.b16 %v287
    %v748 = vunpack.c.l.b16 %v288
    %v749 = vunpack.c.h.b16 %v288
    %v750 = vunpack.c.l.b16 %v289
    %v751 = vunpack.c.h.b16 %v289
    %v752 = vunpack.c.l.b16 %v290
    %v753 = vunpack.c.h.b16 %v290
    %v754 = vpack.c.b16 %v694, %v690
    %v755 = vpack.c.b16 %v695, %v691
    %v756 = vpack.c.b16 %v696, %v692
    %v757 = vpack.c.b16 %v697, %v693
    %v758 = vpack.c.b16 %v702, %v698
    %v759 = vpack.c.b16 %v703, %v699
    %v760 = vpack.c.b16 %v704, %v700
    %v761 = vpack.c.b16 %v705, %v701
    %v762 = vpack.c.b16 %v710, %v706
    %v763 = vpack.c.b16 %v711, %v707
    %v764 = vpack.c.b16 %v712, %v708
    %v765 = vpack.c.b16 %v713, %v709
    %v766 = vpack.c.b16 %v718, %v714
    %v767 = vpack.c.b16 %v719, %v715
    %v768 = vpack.c.b16 %v720, %v716
    %v769 = vpack.c.b16 %v721, %v717
    %v770 = vpack.c.b16 %v726, %v722
    %v771 = vpack.c.b16 %v727, %v723
    %v772 = vpack.c.b16 %v728, %v724
    %v773 = vpack.c.b16 %v729, %v725
    %v774 = vpack.c.b16 %v734, %v730
    %v775 = vpack.c.b16 %v735, %v731
    %v776 = vpack.c.b16 %v736, %v732
    %v777 = vpack.c.b16 %v737, %v733
    %v778 = vpack.c.b16 %v742, %v738
    %v779 = vpack.c.b16 %v743, %v739
    %v780 = vpack.c.b16 %v744, %v740
    %v781 = vpack.c.b16 %v745, %v741
    %v782 = vpack.c.b16 %v750, %v746
    %v783 = vpack.c.b16 %v751, %v747
    %v784 = vpack.c.b16 %v752, %v748
    %v785 = vpack.c.b16 %v753, %v749
    %818 = vmatprep.subr.bf16.mxu0 %v783
    %819 = vmatpush1.bf16.msra.mxu0 %v782
    %820 = vmatprep.subr.bf16.mxu0 %v779
    %821 = vmatpush1.bf16.msra.mxu0 %v778
    %822 = vmatprep.subr.bf16.mxu0 %v775
    %823 = vmatpush1.bf16.msra.mxu0 %v774
    %824 = vmatprep.subr.bf16.mxu0 %v771
    %825 = vmatpush1.bf16.msra.mxu0 %v770
    %826 = vmatprep.subr.bf16.mxu0 %v767
    %827 = vmatpush1.bf16.msra.mxu0 %v766
    %828 = vmatprep.subr.bf16.mxu0 %v763
    %829 = vmatpush1.bf16.msra.mxu0 %v762
    %830 = vmatprep.subr.bf16.mxu0 %v759
    %831 = vmatpush1.bf16.msra.mxu0 %v758
    %832 = vmatprep.subr.bf16.mxu0 %v755
    %833 = vmatpush1.bf16.msra.mxu0 %v754
    %834 = vmatprep.subr.bf16.mxu0 0
    %835 = vmatpush2.bf16.msra.mxu0 0
    %836 = vmatprep.subr.bf16.mxu0 0
    %837 = vmatpush2.bf16.msra.mxu0 0
    %838 = vmatprep.subr.bf16.mxu0 0
    %839 = vmatpush2.bf16.msra.mxu0 0
    %840 = vmatprep.subr.bf16.mxu0 0
    %841 = vmatpush2.bf16.msra.mxu0 0
    %842 = vmatprep.subr.bf16.mxu0 0
    %843 = vmatpush2.bf16.msra.mxu0 0
    %844 = vmatprep.subr.bf16.mxu0 0
    %845 = vmatpush2.bf16.msra.mxu0 0
    %846 = vmatprep.subr.bf16.mxu0 0
    %847 = vmatpush2.bf16.msra.mxu0 0
    %848 = vmatprep.subr.bf16.mxu0 0
    %849 = vmatpush2.bf16.msra.mxu0 0
    %850 = vmatprep.mubr.bf16.mxu0 0
    %851 = vmatmul.mubr.bf16.gmra.mxu0 0
    %v852 = vpop.f32.mrf.mxu0
    %v853 = vadd.f32 0.0, %v852
    %v854 = vpop.f32.mrf.mxu0
    %v855 = vadd.f32 0.0, %v854
    %v856 = vpop.f32.mrf.mxu0
    %v857 = vpop.f32.mrf.mxu0
    %858 = vdwg.mxu0
    %859 = vmatprep.subr.bf16.mxu0 %v785
    %860 = vmatpush1.bf16.msra.mxu0 %v784
    %861 = vmatprep.subr.bf16.mxu0 %v781
    %862 = vmatpush1.bf16.msra.mxu0 %v780
    %863 = vmatprep.subr.bf16.mxu0 %v777
    %864 = vmatpush1.bf16.msra.mxu0 %v776
    %865 = vmatprep.subr.bf16.mxu0 %v773
    %866 = vmatpush1.bf16.msra.mxu0 %v772
    %867 = vmatprep.subr.bf16.mxu0 %v769
    %868 = vmatpush1.bf16.msra.mxu0 %v768
    %869 = vmatprep.subr.bf16.mxu0 %v765
    %870 = vmatpush1.bf16.msra.mxu0 %v764
    %871 = vmatprep.subr.bf16.mxu0 %v761
    %872 = vmatpush1.bf16.msra.mxu0 %v760
    %873 = vmatprep.subr.bf16.mxu0 %v757
    %874 = vmatpush1.bf16.msra.mxu0 %v756
    %875 = vmatprep.subr.bf16.mxu0 0
    %876 = vmatpush2.bf16.msra.mxu0 0
    %877 = vmatprep.subr.bf16.mxu0 0
    %878 = vmatpush2.bf16.msra.mxu0 0
    %879 = vmatprep.subr.bf16.mxu0 0
    %880 = vmatpush2.bf16.msra.mxu0 0
    %881 = vmatprep.subr.bf16.mxu0 0
    %882 = vmatpush2.bf16.msra.mxu0 0
    %883 = vmatprep.subr.bf16.mxu0 0
    %884 = vmatpush2.bf16.msra.mxu0 0
    %885 = vmatprep.subr.bf16.mxu0 0
    %886 = vmatpush2.bf16.msra.mxu0 0
    %887 = vmatprep.subr.bf16.mxu0 0
    %888 = vmatpush2.bf16.msra.mxu0 0
    %889 = vmatprep.subr.bf16.mxu0 0
    %890 = vmatpush2.bf16.msra.mxu0 0
    %891 = vmatprep.mubr.bf16.mxu0 0
    %892 = vmatmul.mubr.bf16.gmra.mxu0 0
    %v893 = vpop.f32.mrf.mxu0
    %v894 = vadd.f32 0.0, %v893
    %v895 = vpop.f32.mrf.mxu0
    %v896 = vadd.f32 0.0, %v895
    %v897 = vpop.f32.mrf.mxu0
    %v898 = vpop.f32.mrf.mxu0
    %899 = vdwg.mxu0
    %v900 = vadd.f32 %v654, %v853
    %v901 = vadd.f32 %v655, %v855
    %v902 = vadd.f32 %v656, %v894
    %v903 = vadd.f32 %v657, %v896
    %v904 = vxor.u32 %v900, 2147483648
    %v905 = vmul.f32 %v904, 1.442695
    %v906 = vpow.pop %v905
    %v907 = vadd.f32 %v906, 1.0
    %v908 = vrcp.pop %v907
    %v909 = vmul.f32 1.0, %v908
    %v910 = vxor.u32 %v901, 2147483648
    %v911 = vmul.f32 %v910, 1.442695
    %v912 = vpow.pop %v911
    %v913 = vadd.f32 %v912, 1.0
    %v914 = vrcp.pop %v913
    %v915 = vmul.f32 1.0, %v914
    %v916 = vtanh.pop %v902
    %v917 = vxor.u32 %v903, 2147483648
    %v918 = vmul.f32 %v917, 1.442695
    %v919 = vpow.pop %v918
    %v920 = vadd.f32 %v919, 1.0
    %v921 = vrcp.pop %v920
    %v922 = vmul.f32 1.0, %v921
    %v923 = vmul.f32 %v915, 0.0
    %v924 = vmul.f32 %v909, %v916
    %v925 = vadd.f32 %v923, %v924
    %v926 = vtanh.pop %v925
    %v927 = vmul.f32 %v922, %v926
    %v928 = vpack.c.bf16 %v927, %v927
    %929 = vst [vmem:[#allocation4] sm:$0xf] %v928
    %s930 = smul.u32 1, 4
    %s931 = smul.addr %s930, 8
    %s932 = scalar_lea.vmem [#allocation3], %s931
    %v933 = vld [vmem:[%s932] sm:$0xff]
    %v934 = vld [vmem:[%s932 + $0x8] sm:$0xff]
    %v935 = vld [vmem:[%s932 + $0x10] sm:$0xff]
    %v936 = vld [vmem:[%s932 + $0x18] sm:$0xff]
    %937 = vmatprep.subr.bf16.mxu0 %v783
    %938 = vmatpush1.bf16.msra.mxu0 %v782
    %939 = vmatprep.subr.bf16.mxu0 %v779
    %940 = vmatpush1.bf16.msra.mxu0 %v778
    %941 = vmatprep.subr.bf16.mxu0 %v775
    %942 = vmatpush1.bf16.msra.mxu0 %v774
    %943 = vmatprep.subr.bf16.mxu0 %v771
    %944 = vmatpush1.bf16.msra.mxu0 %v770
    %945 = vmatprep.subr.bf16.mxu0 %v767
    %946 = vmatpush1.bf16.msra.mxu0 %v766
    %947 = vmatprep.subr.bf16.mxu0 %v763
    %948 = vmatpush1.bf16.msra.mxu0 %v762
    %949 = vmatprep.subr.bf16.mxu0 %v759
    %950 = vmatpush1.bf16.msra.mxu0 %v758
    %951 = vmatprep.subr.bf16.mxu0 %v755
    %952 = vmatpush1.bf16.msra.mxu0 %v754
    %953 = vmatprep.subr.bf16.mxu0 0
    %954 = vmatpush2.bf16.msra.mxu0 0
    %955 = vmatprep.subr.bf16.mxu0 0
    %956 = vmatpush2.bf16.msra.mxu0 0
    %957 = vmatprep.subr.bf16.mxu0 0
    %958 = vmatpush2.bf16.msra.mxu0 0
    %959 = vmatprep.subr.bf16.mxu0 0
    %960 = vmatpush2.bf16.msra.mxu0 0
    %961 = vmatprep.subr.bf16.mxu0 0
    %962 = vmatpush2.bf16.msra.mxu0 0
    %963 = vmatprep.subr.bf16.mxu0 0
    %964 = vmatpush2.bf16.msra.mxu0 0
    %965 = vmatprep.subr.bf16.mxu0 0
    %966 = vmatpush2.bf16.msra.mxu0 0
    %967 = vmatprep.subr.bf16.mxu0 0
    %968 = vmatpush2.bf16.msra.mxu0 0
    %969 = vmatprep.mubr.bf16.mxu0 0
    %970 = vmatmul.mubr.bf16.gmra.mxu0 %v928
    %v971 = vpop.f32.mrf.mxu0
    %v972 = vadd.f32 0.0, %v971
    %v973 = vpop.f32.mrf.mxu0
    %v974 = vadd.f32 0.0, %v973
    %v975 = vpop.f32.mrf.mxu0
    %v976 = vpop.f32.mrf.mxu0
    %977 = vdwg.mxu0
    %978 = vmatprep.subr.bf16.mxu0 %v785
    %979 = vmatpush1.bf16.msra.mxu0 %v784
    %980 = vmatprep.subr.bf16.mxu0 %v781
    %981 = vmatpush1.bf16.msra.mxu0 %v780
    %982 = vmatprep.subr.bf16.mxu0 %v777
    %983 = vmatpush1.bf16.msra.mxu0 %v776
    %984 = vmatprep.subr.bf16.mxu0 %v773
    %985 = vmatpush1.bf16.msra.mxu0 %v772
    %986 = vmatprep.subr.bf16.mxu0 %v769
    %987 = vmatpush1.bf16.msra.mxu0 %v768
    %988 = vmatprep.subr.bf16.mxu0 %v765
    %989 = vmatpush1.bf16.msra.mxu0 %v764
    %990 = vmatprep.subr.bf16.mxu0 %v761
    %991 = vmatpush1.bf16.msra.mxu0 %v760
    %992 = vmatprep.subr.bf16.mxu0 %v757
    %993 = vmatpush1.bf16.msra.mxu0 %v756
    %994 = vmatprep.subr.bf16.mxu0 0
    %995 = vmatpush2.bf16.msra.mxu0 0
    %996 = vmatprep.subr.bf16.mxu0 0
    %997 = vmatpush2.bf16.msra.mxu0 0
    %998 = vmatprep.subr.bf16.mxu0 0
    %999 = vmatpush2.bf16.msra.mxu0 0
    %1000 = vmatprep.subr.bf16.mxu0 0
    %1001 = vmatpush2.bf16.msra.mxu0 0
    %1002 = vmatprep.subr.bf16.mxu0 0
    %1003 = vmatpush2.bf16.msra.mxu0 0
    %1004 = vmatprep.subr.bf16.mxu0 0
    %1005 = vmatpush2.bf16.msra.mxu0 0
    %1006 = vmatprep.subr.bf16.mxu0 0
    %1007 = vmatpush2.bf16.msra.mxu0 0
    %1008 = vmatprep.subr.bf16.mxu0 0
    %1009 = vmatpush2.bf16.msra.mxu0 0
    %1010 = vmatprep.mubr.bf16.mxu0 0
    %1011 = vmatmul.mubr.bf16.gmra.mxu0 %v928
    %v1012 = vpop.f32.mrf.mxu0
    %v1013 = vadd.f32 0.0, %v1012
    %v1014 = vpop.f32.mrf.mxu0
    %v1015 = vadd.f32 0.0, %v1014
    %v1016 = vpop.f32.mrf.mxu0
    %v1017 = vpop.f32.mrf.mxu0
    %1018 = vdwg.mxu0
    %v1019 = vadd.f32 %v933, %v972
    %v1020 = vadd.f32 %v934, %v974
    %v1021 = vadd.f32 %v935, %v1013
    %v1022 = vadd.f32 %v936, %v1015
    %v1023 = vxor.u32 %v1019, 2147483648
    %v1024 = vmul.f32 %v1023, 1.442695
    %v1025 = vpow.pop %v1024
    %v1026 = vadd.f32 %v1025, 1.0
    %v1027 = vrcp.pop %v1026
    %v1028 = vmul.f32 1.0, %v1027
    %v1029 = vxor.u32 %v1020, 2147483648
    %v1030 = vmul.f32 %v1029, 1.442695
    %v1031 = vpow.pop %v1030
    %v1032 = vadd.f32 %v1031, 1.0
    %v1033 = vrcp.pop %v1032
    %v1034 = vmul.f32 1.0, %v1033
    %v1035 = vtanh.pop %v1021
    %v1036 = vxor.u32 %v1022, 2147483648
    %v1037 = vmul.f32 %v1036, 1.442695
    %v1038 = vpow.pop %v1037
    %v1039 = vadd.f32 %v1038, 1.0
    %v1040 = vrcp.pop %v1039
    %v1041 = vmul.f32 1.0, %v1040
    %v1042 = vmul.f32 %v1034, %v925
    %v1043 = vmul.f32 %v1028, %v1035
    %v1044 = vadd.f32 %v1042, %v1043
    %v1045 = vtanh.pop %v1044
    %v1046 = vmul.f32 %v1041, %v1045
    %v1047 = vpack.c.bf16 %v1046, %v1046
    %s1048 = scalar_lea.vmem [#allocation4], 4
    %1049 = vst [vmem:[%s1048] sm:$0xf] %v1047
    %s1050 = smul.u32 2, 4
    %s1051 = smul.addr %s1050, 8
    %s1052 = scalar_lea.vmem [#allocation3], %s1051
    %v1053 = vld [vmem:[%s1052] sm:$0xff]
    %v1054 = vld [vmem:[%s1052 + $0x8] sm:$0xff]
    %v1055 = vld [vmem:[%s1052 + $0x10] sm:$0xff]
    %v1056 = vld [vmem:[%s1052 + $0x18] sm:$0xff]
    %1057 = vmatprep.subr.bf16.mxu0 %v783
    %1058 = vmatpush1.bf16.msra.mxu0 %v782
    %1059 = vmatprep.subr.bf16.mxu0 %v779
    %1060 = vmatpush1.bf16.msra.mxu0 %v778
    %1061 = vmatprep.subr.bf16.mxu0 %v775
    %1062 = vmatpush1.bf16.msra.mxu0 %v774
    %1063 = vmatprep.subr.bf16.mxu0 %v771
    %1064 = vmatpush1.bf16.msra.mxu0 %v770
    %1065 = vmatprep.subr.bf16.mxu0 %v767
    %1066 = vmatpush1.bf16.msra.mxu0 %v766
    %1067 = vmatprep.subr.bf16.mxu0 %v763
    %1068 = vmatpush1.bf16.msra.mxu0 %v762
    %1069 = vmatprep.subr.bf16.mxu0 %v759
    %1070 = vmatpush1.bf16.msra.mxu0 %v758
    %1071 = vmatprep.subr.bf16.mxu0 %v755
    %1072 = vmatpush1.bf16.msra.mxu0 %v754
    %1073 = vmatprep.subr.bf16.mxu0 0
    %1074 = vmatpush2.bf16.msra.mxu0 0
    %1075 = vmatprep.subr.bf16.mxu0 0
    %1076 = vmatpush2.bf16.msra.mxu0 0
    %1077 = vmatprep.subr.bf16.mxu0 0
    %1078 = vmatpush2.bf16.msra.mxu0 0
    %1079 = vmatprep.subr.bf16.mxu0 0
    %1080 = vmatpush2.bf16.msra.mxu0 0
    %1081 = vmatprep.subr.bf16.mxu0 0
    %1082 = vmatpush2.bf16.msra.mxu0 0
    %1083 = vmatprep.subr.bf16.mxu0 0
    %1084 = vmatpush2.bf16.msra.mxu0 0
    %1085 = vmatprep.subr.bf16.mxu0 0
    %1086 = vmatpush2.bf16.msra.mxu0 0
    %1087 = vmatprep.subr.bf16.mxu0 0
    %1088 = vmatpush2.bf16.msra.mxu0 0
    %1089 = vmatprep.mubr.bf16.mxu0 0
    %1090 = vmatmul.mubr.bf16.gmra.mxu0 %v1047
    %v1091 = vpop.f32.mrf.mxu0
    %v1092 = vadd.f32 0.0, %v1091
    %v1093 = vpop.f32.mrf.mxu0
    %v1094 = vadd.f32 0.0, %v1093
    %v1095 = vpop.f32.mrf.mxu0
    %v1096 = vpop.f32.mrf.mxu0
    %1097 = vdwg.mxu0
    %1098 = vmatprep.subr.bf16.mxu0 %v785
    %1099 = vmatpush1.bf16.msra.mxu0 %v784
    %1100 = vmatprep.subr.bf16.mxu0 %v781
    %1101 = vmatpush1.bf16.msra.mxu0 %v780
    %1102 = vmatprep.subr.bf16.mxu0 %v777
    %1103 = vmatpush1.bf16.msra.mxu0 %v776
    %1104 = vmatprep.subr.bf16.mxu0 %v773
    %1105 = vmatpush1.bf16.msra.mxu0 %v772
    %1106 = vmatprep.subr.bf16.mxu0 %v769
    %1107 = vmatpush1.bf16.msra.mxu0 %v768
    %1108 = vmatprep.subr.bf16.mxu0 %v765
    %1109 = vmatpush1.bf16.msra.mxu0 %v764
    %1110 = vmatprep.subr.bf16.mxu0 %v761
    %1111 = vmatpush1.bf16.msra.mxu0 %v760
    %1112 = vmatprep.subr.bf16.mxu0 %v757
    %1113 = vmatpush1.bf16.msra.mxu0 %v756
    %1114 = vmatprep.subr.bf16.mxu0 0
    %1115 = vmatpush2.bf16.msra.mxu0 0
    %1116 = vmatprep.subr.bf16.mxu0 0
    %1117 = vmatpush2.bf16.msra.mxu0 0
    %1118 = vmatprep.subr.bf16.mxu0 0
    %1119 = vmatpush2.bf16.msra.mxu0 0
    %1120 = vmatprep.subr.bf16.mxu0 0
    %1121 = vmatpush2.bf16.msra.mxu0 0
    %1122 = vmatprep.subr.bf16.mxu0 0
    %1123 = vmatpush2.bf16.msra.mxu0 0
    %1124 = vmatprep.subr.bf16.mxu0 0
    %1125 = vmatpush2.bf16.msra.mxu0 0
    %1126 = vmatprep.subr.bf16.mxu0 0
    %1127 = vmatpush2.bf16.msra.mxu0 0
    %1128 = vmatprep.subr.bf16.mxu0 0
    %1129 = vmatpush2.bf16.msra.mxu0 0
    %1130 = vmatprep.mubr.bf16.mxu0 0
    %1131 = vmatmul.mubr.bf16.gmra.mxu0 %v1047
    %v1132 = vpop.f32.mrf.mxu0
    %v1133 = vadd.f32 0.0, %v1132
    %v1134 = vpop.f32.mrf.mxu0
    %v1135 = vadd.f32 0.0, %v1134
    %v1136 = vpop.f32.mrf.mxu0
    %v1137 = vpop.f32.mrf.mxu0
    %1138 = vdwg.mxu0
    %v1139 = vadd.f32 %v1053, %v1092
    %v1140 = vadd.f32 %v1054, %v1094
    %v1141 = vadd.f32 %v1055, %v1133
    %v1142 = vadd.f32 %v1056, %v1135
    %v1143 = vxor.u32 %v1139, 2147483648
    %v1144 = vmul.f32 %v1143, 1.442695
    %v1145 = vpow.pop %v1144
    %v1146 = vadd.f32 %v1145, 1.0
    %v1147 = vrcp.pop %v1146
    %v1148 = vmul.f32 1.0, %v1147
    %v1149 = vxor.u32 %v1140, 2147483648
    %v1150 = vmul.f32 %v1149, 1.442695
    %v1151 = vpow.pop %v1150
    %v1152 = vadd.f32 %v1151, 1.0
    %v1153 = vrcp.pop %v1152
    %v1154 = vmul.f32 1.0, %v1153
    %v1155 = vtanh.pop %v1141
    %v1156 = vxor.u32 %v1142, 2147483648
    %v1157 = vmul.f32 %v1156, 1.442695
    %v1158 = vpow.pop %v1157
    %v1159 = vadd.f32 %v1158, 1.0
    %v1160 = vrcp.pop %v1159
    %v1161 = vmul.f32 1.0, %v1160
    %v1162 = vmul.f32 %v1154, %v1044
    %v1163 = vmul.f32 %v1148, %v1155
    %v1164 = vadd.f32 %v1162, %v1163
    %v1165 = vtanh.pop %v1164
    %v1166 = vmul.f32 %v1161, %v1165
    %v1167 = vpack.c.bf16 %v1166, %v1166
    %s1168 = scalar_lea.vmem [#allocation4], 8
    %1169 = vst [vmem:[%s1168] sm:$0xf] %v1167
    %s1170 = smul.u32 3, 4
    %s1171 = smul.addr %s1170, 8
    %s1172 = scalar_lea.vmem [#allocation3], %s1171
    %v1173 = vld [vmem:[%s1172] sm:$0xff]
    %v1174 = vld [vmem:[%s1172 + $0x8] sm:$0xff]
    %v1175 = vld [vmem:[%s1172 + $0x10] sm:$0xff]
    %v1176 = vld [vmem:[%s1172 + $0x18] sm:$0xff]
    %1177 = vmatprep.subr.bf16.mxu0 %v783
    %1178 = vmatpush1.bf16.msra.mxu0 %v782
    %1179 = vmatprep.subr.bf16.mxu0 %v779
    %1180 = vmatpush1.bf16.msra.mxu0 %v778
    %1181 = vmatprep.subr.bf16.mxu0 %v775
    %1182 = vmatpush1.bf16.msra.mxu0 %v774
    %1183 = vmatprep.subr.bf16.mxu0 %v771
    %1184 = vmatpush1.bf16.msra.mxu0 %v770
    %1185 = vmatprep.subr.bf16.mxu0 %v767
    %1186 = vmatpush1.bf16.msra.mxu0 %v766
    %1187 = vmatprep.subr.bf16.mxu0 %v763
    %1188 = vmatpush1.bf16.msra.mxu0 %v762
    %1189 = vmatprep.subr.bf16.mxu0 %v759
    %1190 = vmatpush1.bf16.msra.mxu0 %v758
    %1191 = vmatprep.subr.bf16.mxu0 %v755
    %1192 = vmatpush1.bf16.msra.mxu0 %v754
    %1193 = vmatprep.subr.bf16.mxu0 0
    %1194 = vmatpush2.bf16.msra.mxu0 0
    %1195 = vmatprep.subr.bf16.mxu0 0
    %1196 = vmatpush2.bf16.msra.mxu0 0
    %1197 = vmatprep.subr.bf16.mxu0 0
    %1198 = vmatpush2.bf16.msra.mxu0 0
    %1199 = vmatprep.subr.bf16.mxu0 0
    %1200 = vmatpush2.bf16.msra.mxu0 0
    %1201 = vmatprep.subr.bf16.mxu0 0
    %1202 = vmatpush2.bf16.msra.mxu0 0
    %1203 = vmatprep.subr.bf16.mxu0 0
    %1204 = vmatpush2.bf16.msra.mxu0 0
    %1205 = vmatprep.subr.bf16.mxu0 0
    %1206 = vmatpush2.bf16.msra.mxu0 0
    %1207 = vmatprep.subr.bf16.mxu0 0
    %1208 = vmatpush2.bf16.msra.mxu0 0
    %1209 = vmatprep.mubr.bf16.mxu0 0
    %1210 = vmatmul.mubr.bf16.gmra.mxu0 %v1167
    %v1211 = vpop.f32.mrf.mxu0
    %v1212 = vadd.f32 0.0, %v1211
    %v1213 = vpop.f32.mrf.mxu0
    %v1214 = vadd.f32 0.0, %v1213
    %v1215 = vpop.f32.mrf.mxu0
    %v1216 = vpop.f32.mrf.mxu0
    %1217 = vdwg.mxu0
    %1218 = vmatprep.subr.bf16.mxu0 %v785
    %1219 = vmatpush1.bf16.msra.mxu0 %v784
    %1220 = vmatprep.subr.bf16.mxu0 %v781
    %1221 = vmatpush1.bf16.msra.mxu0 %v780
    %1222 = vmatprep.subr.bf16.mxu0 %v777
    %1223 = vmatpush1.bf16.msra.mxu0 %v776
    %1224 = vmatprep.subr.bf16.mxu0 %v773
    %1225 = vmatpush1.bf16.msra.mxu0 %v772
    %1226 = vmatprep.subr.bf16.mxu0 %v769
    %1227 = vmatpush1.bf16.msra.mxu0 %v768
    %1228 = vmatprep.subr.bf16.mxu0 %v765
    %1229 = vmatpush1.bf16.msra.mxu0 %v764
    %1230 = vmatprep.subr.bf16.mxu0 %v761
    %1231 = vmatpush1.bf16.msra.mxu0 %v760
    %1232 = vmatprep.subr.bf16.mxu0 %v757
    %1233 = vmatpush1.bf16.msra.mxu0 %v756
    %1234 = vmatprep.subr.bf16.mxu0 0
    %1235 = vmatpush2.bf16.msra.mxu0 0
    %1236 = vmatprep.subr.bf16.mxu0 0
    %1237 = vmatpush2.bf16.msra.mxu0 0
    %1238 = vmatprep.subr.bf16.mxu0 0
    %1239 = vmatpush2.bf16.msra.mxu0 0
    %1240 = vmatprep.subr.bf16.mxu0 0
    %1241 = vmatpush2.bf16.msra.mxu0 0
    %1242 = vmatprep.subr.bf16.mxu0 0
    %1243 = vmatpush2.bf16.msra.mxu0 0
    %1244 = vmatprep.subr.bf16.mxu0 0
    %1245 = vmatpush2.bf16.msra.mxu0 0
    %1246 = vmatprep.subr.bf16.mxu0 0
    %1247 = vmatpush2.bf16.msra.mxu0 0
    %1248 = vmatprep.subr.bf16.mxu0 0
    %1249 = vmatpush2.bf16.msra.mxu0 0
    %1250 = vmatprep.mubr.bf16.mxu0 0
    %1251 = vmatmul.mubr.bf16.gmra.mxu0 %v1167
    %v1252 = vpop.f32.mrf.mxu0
    %v1253 = vadd.f32 0.0, %v1252
    %v1254 = vpop.f32.mrf.mxu0
    %v1255 = vadd.f32 0.0, %v1254
    %v1256 = vpop.f32.mrf.mxu0
    %v1257 = vpop.f32.mrf.mxu0
    %1258 = vdwg.mxu0
    %v1259 = vadd.f32 %v1173, %v1212
    %v1260 = vadd.f32 %v1174, %v1214
    %v1261 = vadd.f32 %v1175, %v1253
    %v1262 = vadd.f32 %v1176, %v1255
    %v1263 = vxor.u32 %v1259, 2147483648
    %v1264 = vmul.f32 %v1263, 1.442695
    %v1265 = vpow.pop %v1264
    %v1266 = vadd.f32 %v1265, 1.0
    %v1267 = vrcp.pop %v1266
    %v1268 = vmul.f32 1.0, %v1267
    %v1269 = vxor.u32 %v1260, 2147483648
    %v1270 = vmul.f32 %v1269, 1.442695
    %v1271 = vpow.pop %v1270
    %v1272 = vadd.f32 %v1271, 1.0
    %v1273 = vrcp.pop %v1272
    %v1274 = vmul.f32 1.0, %v1273
    %v1275 = vtanh.pop %v1261
    %v1276 = vxor.u32 %v1262, 2147483648
    %v1277 = vmul.f32 %v1276, 1.442695
    %v1278 = vpow.pop %v1277
    %v1279 = vadd.f32 %v1278, 1.0
    %v1280 = vrcp.pop %v1279
    %v1281 = vmul.f32 1.0, %v1280
    %v1282 = vmul.f32 %v1274, %v1164
    %v1283 = vmul.f32 %v1268, %v1275
    %v1284 = vadd.f32 %v1282, %v1283
    %v1285 = vtanh.pop %v1284
    %v1286 = vmul.f32 %v1281, %v1285
    %v1287 = vpack.c.bf16 %v1286, %v1286
    %s1288 = scalar_lea.vmem [#allocation4], 12
    %1289 = vst [vmem:[%s1288] sm:$0xf] %v1287
    %s1290 = smul.u32 4, 4
    %s1291 = smul.addr %s1290, 8
    %s1292 = scalar_lea.vmem [#allocation3], %s1291
    %v1293 = vld [vmem:[%s1292] sm:$0xff]
    %v1294 = vld [vmem:[%s1292 + $0x8] sm:$0xff]
    %v1295 = vld [vmem:[%s1292 + $0x10] sm:$0xff]
    %v1296 = vld [vmem:[%s1292 + $0x18] sm:$0xff]
    %1297 = vmatprep.subr.bf16.mxu0 %v783
    %1298 = vmatpush1.bf16.msra.mxu0 %v782
    %1299 = vmatprep.subr.bf16.mxu0 %v779
    %1300 = vmatpush1.bf16.msra.mxu0 %v778
    %1301 = vmatprep.subr.bf16.mxu0 %v775
    %1302 = vmatpush1.bf16.msra.mxu0 %v774
    %1303 = vmatprep.subr.bf16.mxu0 %v771
    %1304 = vmatpush1.bf16.msra.mxu0 %v770
    %1305 = vmatprep.subr.bf16.mxu0 %v767
    %1306 = vmatpush1.bf16.msra.mxu0 %v766
    %1307 = vmatprep.subr.bf16.mxu0 %v763
    %1308 = vmatpush1.bf16.msra.mxu0 %v762
    %1309 = vmatprep.subr.bf16.mxu0 %v759
    %1310 = vmatpush1.bf16.msra.mxu0 %v758
    %1311 = vmatprep.subr.bf16.mxu0 %v755
    %1312 = vmatpush1.bf16.msra.mxu0 %v754
    %1313 = vmatprep.subr.bf16.mxu0 0
    %1314 = vmatpush2.bf16.msra.mxu0 0
    %1315 = vmatprep.subr.bf16.mxu0 0
    %1316 = vmatpush2.bf16.msra.mxu0 0
    %1317 = vmatprep.subr.bf16.mxu0 0
    %1318 = vmatpush2.bf16.msra.mxu0 0
    %1319 = vmatprep.subr.bf16.mxu0 0
    %1320 = vmatpush2.bf16.msra.mxu0 0
    %1321 = vmatprep.subr.bf16.mxu0 0
    %1322 = vmatpush2.bf16.msra.mxu0 0
    %1323 = vmatprep.subr.bf16.mxu0 0
    %1324 = vmatpush2.bf16.msra.mxu0 0
    %1325 = vmatprep.subr.bf16.mxu0 0
    %1326 = vmatpush2.bf16.msra.mxu0 0
    %1327 = vmatprep.subr.bf16.mxu0 0
    %1328 = vmatpush2.bf16.msra.mxu0 0
    %1329 = vmatprep.mubr.bf16.mxu0 0
    %1330 = vmatmul.mubr.bf16.gmra.mxu0 %v1287
    %v1331 = vpop.f32.mrf.mxu0
    %v1332 = vadd.f32 0.0, %v1331
    %v1333 = vpop.f32.mrf.mxu0
    %v1334 = vadd.f32 0.0, %v1333
    %v1335 = vpop.f32.mrf.mxu0
    %v1336 = vpop.f32.mrf.mxu0
    %1337 = vdwg.mxu0
    %1338 = vmatprep.subr.bf16.mxu0 %v785
    %1339 = vmatpush1.bf16.msra.mxu0 %v784
    %1340 = vmatprep.subr.bf16.mxu0 %v781
    %1341 = vmatpush1.bf16.msra.mxu0 %v780
    %1342 = vmatprep.subr.bf16.mxu0 %v777
    %1343 = vmatpush1.bf16.msra.mxu0 %v776
    %1344 = vmatprep.subr.bf16.mxu0 %v773
    %1345 = vmatpush1.bf16.msra.mxu0 %v772
    %1346 = vmatprep.subr.bf16.mxu0 %v769
    %1347 = vmatpush1.bf16.msra.mxu0 %v768
    %1348 = vmatprep.subr.bf16.mxu0 %v765
    %1349 = vmatpush1.bf16.msra.mxu0 %v764
    %1350 = vmatprep.subr.bf16.mxu0 %v761
    %1351 = vmatpush1.bf16.msra.mxu0 %v760
    %1352 = vmatprep.subr.bf16.mxu0 %v757
    %1353 = vmatpush1.bf16.msra.mxu0 %v756
    %1354 = vmatprep.subr.bf16.mxu0 0
    %1355 = vmatpush2.bf16.msra.mxu0 0
    %1356 = vmatprep.subr.bf16.mxu0 0
    %1357 = vmatpush2.bf16.msra.mxu0 0
    %1358 = vmatprep.subr.bf16.mxu0 0
    %1359 = vmatpush2.bf16.msra.mxu0 0
    %1360 = vmatprep.subr.bf16.mxu0 0
    %1361 = vmatpush2.bf16.msra.mxu0 0
    %1362 = vmatprep.subr.bf16.mxu0 0
    %1363 = vmatpush2.bf16.msra.mxu0 0
    %1364 = vmatprep.subr.bf16.mxu0 0
    %1365 = vmatpush2.bf16.msra.mxu0 0
    %1366 = vmatprep.subr.bf16.mxu0 0
    %1367 = vmatpush2.bf16.msra.mxu0 0
    %1368 = vmatprep.subr.bf16.mxu0 0
    %1369 = vmatpush2.bf16.msra.mxu0 0
    %1370 = vmatprep.mubr.bf16.mxu0 0
    %1371 = vmatmul.mubr.bf16.gmra.mxu0 %v1287
    %v1372 = vpop.f32.mrf.mxu0
    %v1373 = vadd.f32 0.0, %v1372
    %v1374 = vpop.f32.mrf.mxu0
    %v1375 = vadd.f32 0.0, %v1374
    %v1376 = vpop.f32.mrf.mxu0
    %v1377 = vpop.f32.mrf.mxu0
    %1378 = vdwg.mxu0
    %v1379 = vadd.f32 %v1293, %v1332
    %v1380 = vadd.f32 %v1294, %v1334
    %v1381 = vadd.f32 %v1295, %v1373
    %v1382 = vadd.f32 %v1296, %v1375
    %v1383 = vxor.u32 %v1379, 2147483648
    %v1384 = vmul.f32 %v1383, 1.442695
    %v1385 = vpow.pop %v1384
    %v1386 = vadd.f32 %v1385, 1.0
    %v1387 = vrcp.pop %v1386
    %v1388 = vmul.f32 1.0, %v1387
    %v1389 = vxor.u32 %v1380, 2147483648
    %v1390 = vmul.f32 %v1389, 1.442695
    %v1391 = vpow.pop %v1390
    %v1392 = vadd.f32 %v1391, 1.0
    %v1393 = vrcp.pop %v1392
    %v1394 = vmul.f32 1.0, %v1393
    %v1395 = vtanh.pop %v1381
    %v1396 = vxor.u32 %v1382, 2147483648
    %v1397 = vmul.f32 %v1396, 1.442695
    %v1398 = vpow.pop %v1397
    %v1399 = vadd.f32 %v1398, 1.0
    %v1400 = vrcp.pop %v1399
    %v1401 = vmul.f32 1.0, %v1400
    %v1402 = vmul.f32 %v1394, %v1284
    %v1403 = vmul.f32 %v1388, %v1395
    %v1404 = vadd.f32 %v1402, %v1403
    %v1405 = vtanh.pop %v1404
    %v1406 = vmul.f32 %v1401, %v1405
    %v1407 = vpack.c.bf16 %v1406, %v1406
    %s1408 = scalar_lea.vmem [#allocation4], 16
    %1409 = vst [vmem:[%s1408] sm:$0xf] %v1407
    %s1410 = smul.u32 5, 4
    %s1411 = smul.addr %s1410, 8
    %s1412 = scalar_lea.vmem [#allocation3], %s1411
    %v1413 = vld [vmem:[%s1412] sm:$0xff]
    %v1414 = vld [vmem:[%s1412 + $0x8] sm:$0xff]
    %v1415 = vld [vmem:[%s1412 + $0x10] sm:$0xff]
    %v1416 = vld [vmem:[%s1412 + $0x18] sm:$0xff]
    %1417 = vmatprep.subr.bf16.mxu0 %v783
    %1418 = vmatpush1.bf16.msra.mxu0 %v782
    %1419 = vmatprep.subr.bf16.mxu0 %v779
    %1420 = vmatpush1.bf16.msra.mxu0 %v778
    %1421 = vmatprep.subr.bf16.mxu0 %v775
    %1422 = vmatpush1.bf16.msra.mxu0 %v774
    %1423 = vmatprep.subr.bf16.mxu0 %v771
    %1424 = vmatpush1.bf16.msra.mxu0 %v770
    %1425 = vmatprep.subr.bf16.mxu0 %v767
    %1426 = vmatpush1.bf16.msra.mxu0 %v766
    %1427 = vmatprep.subr.bf16.mxu0 %v763
    %1428 = vmatpush1.bf16.msra.mxu0 %v762
    %1429 = vmatprep.subr.bf16.mxu0 %v759
    %1430 = vmatpush1.bf16.msra.mxu0 %v758
    %1431 = vmatprep.subr.bf16.mxu0 %v755
    %1432 = vmatpush1.bf16.msra.mxu0 %v754
    %1433 = vmatprep.subr.bf16.mxu0 0
    %1434 = vmatpush2.bf16.msra.mxu0 0
    %1435 = vmatprep.subr.bf16.mxu0 0
    %1436 = vmatpush2.bf16.msra.mxu0 0
    %1437 = vmatprep.subr.bf16.mxu0 0
    %1438 = vmatpush2.bf16.msra.mxu0 0
    %1439 = vmatprep.subr.bf16.mxu0 0
    %1440 = vmatpush2.bf16.msra.mxu0 0
    %1441 = vmatprep.subr.bf16.mxu0 0
    %1442 = vmatpush2.bf16.msra.mxu0 0
    %1443 = vmatprep.subr.bf16.mxu0 0
    %1444 = vmatpush2.bf16.msra.mxu0 0
    %1445 = vmatprep.subr.bf16.mxu0 0
    %1446 = vmatpush2.bf16.msra.mxu0 0
    %1447 = vmatprep.subr.bf16.mxu0 0
    %1448 = vmatpush2.bf16.msra.mxu0 0
    %1449 = vmatprep.mubr.bf16.mxu0 0
    %1450 = vmatmul.mubr.bf16.gmra.mxu0 %v1407
    %v1451 = vpop.f32.mrf.mxu0
    %v1452 = vadd.f32 0.0, %v1451
    %v1453 = vpop.f32.mrf.mxu0
    %v1454 = vadd.f32 0.0, %v1453
    %v1455 = vpop.f32.mrf.mxu0
    %v1456 = vpop.f32.mrf.mxu0
    %1457 = vdwg.mxu0
    %1458 = vmatprep.subr.bf16.mxu0 %v785
    %1459 = vmatpush1.bf16.msra.mxu0 %v784
    %1460 = vmatprep.subr.bf16.mxu0 %v781
    %1461 = vmatpush1.bf16.msra.mxu0 %v780
    %1462 = vmatprep.subr.bf16.mxu0 %v777
    %1463 = vmatpush1.bf16.msra.mxu0 %v776
    %1464 = vmatprep.subr.bf16.mxu0 %v773
    %1465 = vmatpush1.bf16.msra.mxu0 %v772
    %1466 = vmatprep.subr.bf16.mxu0 %v769
    %1467 = vmatpush1.bf16.msra.mxu0 %v768
    %1468 = vmatprep.subr.bf16.mxu0 %v765
    %1469 = vmatpush1.bf16.msra.mxu0 %v764
    %1470 = vmatprep.subr.bf16.mxu0 %v761
    %1471 = vmatpush1.bf16.msra.mxu0 %v760
    %1472 = vmatprep.subr.bf16.mxu0 %v757
    %1473 = vmatpush1.bf16.msra.mxu0 %v756
    %1474 = vmatprep.subr.bf16.mxu0 0
    %1475 = vmatpush2.bf16.msra.mxu0 0
    %1476 = vmatprep.subr.bf16.mxu0 0
    %1477 = vmatpush2.bf16.msra.mxu0 0
    %1478 = vmatprep.subr.bf16.mxu0 0
    %1479 = vmatpush2.bf16.msra.mxu0 0
    %1480 = vmatprep.subr.bf16.mxu0 0
    %1481 = vmatpush2.bf16.msra.mxu0 0
    %1482 = vmatprep.subr.bf16.mxu0 0
    %1483 = vmatpush2.bf16.msra.mxu0 0
    %1484 = vmatprep.subr.bf16.mxu0 0
    %1485 = vmatpush2.bf16.msra.mxu0 0
    %1486 = vmatprep.subr.bf16.mxu0 0
    %1487 = vmatpush2.bf16.msra.mxu0 0
    %1488 = vmatprep.subr.bf16.mxu0 0
    %1489 = vmatpush2.bf16.msra.mxu0 0
    %1490 = vmatprep.mubr.bf16.mxu0 0
    %1491 = vmatmul.mubr.bf16.gmra.mxu0 %v1407
    %v1492 = vpop.f32.mrf.mxu0
    %v1493 = vadd.f32 0.0, %v1492
    %v1494 = vpop.f32.mrf.mxu0
    %v1495 = vadd.f32 0.0, %v1494
    %v1496 = vpop.f32.mrf.mxu0
    %v1497 = vpop.f32.mrf.mxu0
    %1498 = vdwg.mxu0
    %v1499 = vadd.f32 %v1413, %v1452
    %v1500 = vadd.f32 %v1414, %v1454
    %v1501 = vadd.f32 %v1415, %v1493
    %v1502 = vadd.f32 %v1416, %v1495
    %v1503 = vxor.u32 %v1499, 2147483648
    %v1504 = vmul.f32 %v1503, 1.442695
    %v1505 = vpow.pop %v1504
    %v1506 = vadd.f32 %v1505, 1.0
    %v1507 = vrcp.pop %v1506
    %v1508 = vmul.f32 1.0, %v1507
    %v1509 = vxor.u32 %v1500, 2147483648
    %v1510 = vmul.f32 %v1509, 1.442695
    %v1511 = vpow.pop %v1510
    %v1512 = vadd.f32 %v1511, 1.0
    %v1513 = vrcp.pop %v1512
    %v1514 = vmul.f32 1.0, %v1513
    %v1515 = vtanh.pop %v1501
    %v1516 = vxor.u32 %v1502, 2147483648
    %v1517 = vmul.f32 %v1516, 1.442695
    %v1518 = vpow.pop %v1517
    %v1519 = vadd.f32 %v1518, 1.0
    %v1520 = vrcp.pop %v1519
    %v1521 = vmul.f32 1.0, %v1520
    %v1522 = vmul.f32 %v1514, %v1404
    %v1523 = vmul.f32 %v1508, %v1515
    %v1524 = vadd.f32 %v1522, %v1523
    %v1525 = vtanh.pop %v1524
    %v1526 = vmul.f32 %v1521, %v1525
    %v1527 = vpack.c.bf16 %v1526, %v1526
    %s1528 = scalar_lea.vmem [#allocation4], 20
    %1529 = vst [vmem:[%s1528] sm:$0xf] %v1527
    %s1530 = smul.u32 6, 4
    %s1531 = smul.addr %s1530, 8
    %s1532 = scalar_lea.vmem [#allocation3], %s1531
    %v1533 = vld [vmem:[%s1532] sm:$0xff]
    %v1534 = vld [vmem:[%s1532 + $0x8] sm:$0xff]
    %v1535 = vld [vmem:[%s1532 + $0x10] sm:$0xff]
    %v1536 = vld [vmem:[%s1532 + $0x18] sm:$0xff]
    %1537 = vmatprep.subr.bf16.mxu0 %v783
    %1538 = vmatpush1.bf16.msra.mxu0 %v782
    %1539 = vmatprep.subr.bf16.mxu0 %v779
    %1540 = vmatpush1.bf16.msra.mxu0 %v778
    %1541 = vmatprep.subr.bf16.mxu0 %v775
    %1542 = vmatpush1.bf16.msra.mxu0 %v774
    %1543 = vmatprep.subr.bf16.mxu0 %v771
    %1544 = vmatpush1.bf16.msra.mxu0 %v770
    %1545 = vmatprep.subr.bf16.mxu0 %v767
    %1546 = vmatpush1.bf16.msra.mxu0 %v766
    %1547 = vmatprep.subr.bf16.mxu0 %v763
    %1548 = vmatpush1.bf16.msra.mxu0 %v762
    %1549 = vmatprep.subr.bf16.mxu0 %v759
    %1550 = vmatpush1.bf16.msra.mxu0 %v758
    %1551 = vmatprep.subr.bf16.mxu0 %v755
    %1552 = vmatpush1.bf16.msra.mxu0 %v754
    %1553 = vmatprep.subr.bf16.mxu0 0
    %1554 = vmatpush2.bf16.msra.mxu0 0
    %1555 = vmatprep.subr.bf16.mxu0 0
    %1556 = vmatpush2.bf16.msra.mxu0 0
    %1557 = vmatprep.subr.bf16.mxu0 0
    %1558 = vmatpush2.bf16.msra.mxu0 0
    %1559 = vmatprep.subr.bf16.mxu0 0
    %1560 = vmatpush2.bf16.msra.mxu0 0
    %1561 = vmatprep.subr.bf16.mxu0 0
    %1562 = vmatpush2.bf16.msra.mxu0 0
    %1563 = vmatprep.subr.bf16.mxu0 0
    %1564 = vmatpush2.bf16.msra.mxu0 0
    %1565 = vmatprep.subr.bf16.mxu0 0
    %1566 = vmatpush2.bf16.msra.mxu0 0
    %1567 = vmatprep.subr.bf16.mxu0 0
    %1568 = vmatpush2.bf16.msra.mxu0 0
    %1569 = vmatprep.mubr.bf16.mxu0 0
    %1570 = vmatmul.mubr.bf16.gmra.mxu0 %v1527
    %v1571 = vpop.f32.mrf.mxu0
    %v1572 = vadd.f32 0.0, %v1571
    %v1573 = vpop.f32.mrf.mxu0
    %v1574 = vadd.f32 0.0, %v1573
    %v1575 = vpop.f32.mrf.mxu0
    %v1576 = vpop.f32.mrf.mxu0
    %1577 = vdwg.mxu0
    %1578 = vmatprep.subr.bf16.mxu0 %v785
    %1579 = vmatpush1.bf16.msra.mxu0 %v784
    %1580 = vmatprep.subr.bf16.mxu0 %v781
    %1581 = vmatpush1.bf16.msra.mxu0 %v780
    %1582 = vmatprep.subr.bf16.mxu0 %v777
    %1583 = vmatpush1.bf16.msra.mxu0 %v776
    %1584 = vmatprep.subr.bf16.mxu0 %v773
    %1585 = vmatpush1.bf16.msra.mxu0 %v772
    %1586 = vmatprep.subr.bf16.mxu0 %v769
    %1587 = vmatpush1.bf16.msra.mxu0 %v768
    %1588 = vmatprep.subr.bf16.mxu0 %v765
    %1589 = vmatpush1.bf16.msra.mxu0 %v764
    %1590 = vmatprep.subr.bf16.mxu0 %v761
    %1591 = vmatpush1.bf16.msra.mxu0 %v760
    %1592 = vmatprep.subr.bf16.mxu0 %v757
    %1593 = vmatpush1.bf16.msra.mxu0 %v756
    %1594 = vmatprep.subr.bf16.mxu0 0
    %1595 = vmatpush2.bf16.msra.mxu0 0
    %1596 = vmatprep.subr.bf16.mxu0 0
    %1597 = vmatpush2.bf16.msra.mxu0 0
    %1598 = vmatprep.subr.bf16.mxu0 0
    %1599 = vmatpush2.bf16.msra.mxu0 0
    %1600 = vmatprep.subr.bf16.mxu0 0
    %1601 = vmatpush2.bf16.msra.mxu0 0
    %1602 = vmatprep.subr.bf16.mxu0 0
    %1603 = vmatpush2.bf16.msra.mxu0 0
    %1604 = vmatprep.subr.bf16.mxu0 0
    %1605 = vmatpush2.bf16.msra.mxu0 0
    %1606 = vmatprep.subr.bf16.mxu0 0
    %1607 = vmatpush2.bf16.msra.mxu0 0
    %1608 = vmatprep.subr.bf16.mxu0 0
    %1609 = vmatpush2.bf16.msra.mxu0 0
    %1610 = vmatprep.mubr.bf16.mxu0 0
    %1611 = vmatmul.mubr.bf16.gmra.mxu0 %v1527
    %v1612 = vpop.f32.mrf.mxu0
    %v1613 = vadd.f32 0.0, %v1612
    %v1614 = vpop.f32.mrf.mxu0
    %v1615 = vadd.f32 0.0, %v1614
    %v1616 = vpop.f32.mrf.mxu0
    %v1617 = vpop.f32.mrf.mxu0
    %1618 = vdwg.mxu0
    %v1619 = vadd.f32 %v1533, %v1572
    %v1620 = vadd.f32 %v1534, %v1574
    %v1621 = vadd.f32 %v1535, %v1613
    %v1622 = vadd.f32 %v1536, %v1615
    %v1623 = vxor.u32 %v1619, 2147483648
    %v1624 = vmul.f32 %v1623, 1.442695
    %v1625 = vpow.pop %v1624
    %v1626 = vadd.f32 %v1625, 1.0
    %v1627 = vrcp.pop %v1626
    %v1628 = vmul.f32 1.0, %v1627
    %v1629 = vxor.u32 %v1620, 2147483648
    %v1630 = vmul.f32 %v1629, 1.442695
    %v1631 = vpow.pop %v1630
    %v1632 = vadd.f32 %v1631, 1.0
    %v1633 = vrcp.pop %v1632
    %v1634 = vmul.f32 1.0, %v1633
    %v1635 = vtanh.pop %v1621
    %v1636 = vxor.u32 %v1622, 2147483648
    %v1637 = vmul.f32 %v1636, 1.442695
    %v1638 = vpow.pop %v1637
    %v1639 = vadd.f32 %v1638, 1.0
    %v1640 = vrcp.pop %v1639
    %v1641 = vmul.f32 1.0, %v1640
    %v1642 = vmul.f32 %v1634, %v1524
    %v1643 = vmul.f32 %v1628, %v1635
    %v1644 = vadd.f32 %v1642, %v1643
    %v1645 = vtanh.pop %v1644
    %v1646 = vmul.f32 %v1641, %v1645
    %v1647 = vpack.c.bf16 %v1646, %v1646
    %s1648 = scalar_lea.vmem [#allocation4], 24
    %1649 = vst [vmem:[%s1648] sm:$0xf] %v1647
    %s1650 = smul.u32 7, 4
    %s1651 = smul.addr %s1650, 8
    %s1652 = scalar_lea.vmem [#allocation3], %s1651
    %v1653 = vld [vmem:[%s1652] sm:$0xff]
    %v1654 = vld [vmem:[%s1652 + $0x8] sm:$0xff]
    %v1655 = vld [vmem:[%s1652 + $0x10] sm:$0xff]
    %v1656 = vld [vmem:[%s1652 + $0x18] sm:$0xff]
    %1657 = vmatprep.subr.bf16.mxu0 %v783
    %1658 = vmatpush1.bf16.msra.mxu0 %v782
    %1659 = vmatprep.subr.bf16.mxu0 %v779
    %1660 = vmatpush1.bf16.msra.mxu0 %v778
    %1661 = vmatprep.subr.bf16.mxu0 %v775
    %1662 = vmatpush1.bf16.msra.mxu0 %v774
    %1663 = vmatprep.subr.bf16.mxu0 %v771
    %1664 = vmatpush1.bf16.msra.mxu0 %v770
    %1665 = vmatprep.subr.bf16.mxu0 %v767
    %1666 = vmatpush1.bf16.msra.mxu0 %v766
    %1667 = vmatprep.subr.bf16.mxu0 %v763
    %1668 = vmatpush1.bf16.msra.mxu0 %v762
    %1669 = vmatprep.subr.bf16.mxu0 %v759
    %1670 = vmatpush1.bf16.msra.mxu0 %v758
    %1671 = vmatprep.subr.bf16.mxu0 %v755
    %1672 = vmatpush1.bf16.msra.mxu0 %v754
    %1673 = vmatprep.subr.bf16.mxu0 0
    %1674 = vmatpush2.bf16.msra.mxu0 0
    %1675 = vmatprep.subr.bf16.mxu0 0
    %1676 = vmatpush2.bf16.msra.mxu0 0
    %1677 = vmatprep.subr.bf16.mxu0 0
    %1678 = vmatpush2.bf16.msra.mxu0 0
    %1679 = vmatprep.subr.bf16.mxu0 0
    %1680 = vmatpush2.bf16.msra.mxu0 0
    %1681 = vmatprep.subr.bf16.mxu0 0
    %1682 = vmatpush2.bf16.msra.mxu0 0
    %1683 = vmatprep.subr.bf16.mxu0 0
    %1684 = vmatpush2.bf16.msra.mxu0 0
    %1685 = vmatprep.subr.bf16.mxu0 0
    %1686 = vmatpush2.bf16.msra.mxu0 0
    %1687 = vmatprep.subr.bf16.mxu0 0
    %1688 = vmatpush2.bf16.msra.mxu0 0
    %1689 = vmatprep.mubr.bf16.mxu0 0
    %1690 = vmatmul.mubr.bf16.gmra.mxu0 %v1647
    %v1691 = vpop.f32.mrf.mxu0
    %v1692 = vadd.f32 0.0, %v1691
    %v1693 = vpop.f32.mrf.mxu0
    %v1694 = vadd.f32 0.0, %v1693
    %v1695 = vpop.f32.mrf.mxu0
    %v1696 = vpop.f32.mrf.mxu0
    %1697 = vdwg.mxu0
    %1698 = vmatprep.subr.bf16.mxu0 %v785
    %1699 = vmatpush1.bf16.msra.mxu0 %v784
    %1700 = vmatprep.subr.bf16.mxu0 %v781
    %1701 = vmatpush1.bf16.msra.mxu0 %v780
    %1702 = vmatprep.subr.bf16.mxu0 %v777
    %1703 = vmatpush1.bf16.msra.mxu0 %v776
    %1704 = vmatprep.subr.bf16.mxu0 %v773
    %1705 = vmatpush1.bf16.msra.mxu0 %v772
    %1706 = vmatprep.subr.bf16.mxu0 %v769
    %1707 = vmatpush1.bf16.msra.mxu0 %v768
    %1708 = vmatprep.subr.bf16.mxu0 %v765
    %1709 = vmatpush1.bf16.msra.mxu0 %v764
    %1710 = vmatprep.subr.bf16.mxu0 %v761
    %1711 = vmatpush1.bf16.msra.mxu0 %v760
    %1712 = vmatprep.subr.bf16.mxu0 %v757
    %1713 = vmatpush1.bf16.msra.mxu0 %v756
    %1714 = vmatprep.subr.bf16.mxu0 0
    %1715 = vmatpush2.bf16.msra.mxu0 0
    %1716 = vmatprep.subr.bf16.mxu0 0
    %1717 = vmatpush2.bf16.msra.mxu0 0
    %1718 = vmatprep.subr.bf16.mxu0 0
    %1719 = vmatpush2.bf16.msra.mxu0 0
    %1720 = vmatprep.subr.bf16.mxu0 0
    %1721 = vmatpush2.bf16.msra.mxu0 0
    %1722 = vmatprep.subr.bf16.mxu0 0
    %1723 = vmatpush2.bf16.msra.mxu0 0
    %1724 = vmatprep.subr.bf16.mxu0 0
    %1725 = vmatpush2.bf16.msra.mxu0 0
    %1726 = vmatprep.subr.bf16.mxu0 0
    %1727 = vmatpush2.bf16.msra.mxu0 0
    %1728 = vmatprep.subr.bf16.mxu0 0
    %1729 = vmatpush2.bf16.msra.mxu0 0
    %1730 = vmatprep.mubr.bf16.mxu0 0
    %1731 = vmatmul.mubr.bf16.gmra.mxu0 %v1647
    %v1732 = vpop.f32.mrf.mxu0
    %v1733 = vadd.f32 0.0, %v1732
    %v1734 = vpop.f32.mrf.mxu0
    %v1735 = vadd.f32 0.0, %v1734
    %v1736 = vpop.f32.mrf.mxu0
    %v1737 = vpop.f32.mrf.mxu0
    %1738 = vdwg.mxu0
    %v1739 = vadd.f32 %v1653, %v1692
    %v1740 = vadd.f32 %v1654, %v1694
    %v1741 = vadd.f32 %v1655, %v1733
    %v1742 = vadd.f32 %v1656, %v1735
    %v1743 = vxor.u32 %v1739, 2147483648
    %v1744 = vmul.f32 %v1743, 1.442695
    %v1745 = vpow.pop %v1744
    %v1746 = vadd.f32 %v1745, 1.0
    %v1747 = vrcp.pop %v1746
    %v1748 = vmul.f32 1.0, %v1747
    %v1749 = vxor.u32 %v1740, 2147483648
    %v1750 = vmul.f32 %v1749, 1.442695
    %v1751 = vpow.pop %v1750
    %v1752 = vadd.f32 %v1751, 1.0
    %v1753 = vrcp.pop %v1752
    %v1754 = vmul.f32 1.0, %v1753
    %v1755 = vtanh.pop %v1741
    %v1756 = vxor.u32 %v1742, 2147483648
    %v1757 = vmul.f32 %v1756, 1.442695
    %v1758 = vpow.pop %v1757
    %v1759 = vadd.f32 %v1758, 1.0
    %v1760 = vrcp.pop %v1759
    %v1761 = vmul.f32 1.0, %v1760
    %v1762 = vmul.f32 %v1754, %v1644
    %v1763 = vmul.f32 %v1748, %v1755
    %v1764 = vadd.f32 %v1762, %v1763
    %v1765 = vtanh.pop %v1764
    %v1766 = vmul.f32 %v1761, %v1765
    %v1767 = vpack.c.bf16 %v1766, %v1766
    %s1768 = scalar_lea.vmem [#allocation4], 28
    %1769 = vst [vmem:[%s1768] sm:$0xf] %v1767
    %1770 = vst [vmem:[%s11] sm:$0xff] %v1766
    %1771 = vst [vmem:[%s12] sm:$0xff] %v1764
    %v1772 = vld [vmem:[#allocation4] sm:$0xf]
    %v1773 = vld [vmem:[#allocation4 + $0x4] sm:$0xf]
    %v1774 = vld [vmem:[#allocation4 + $0x8] sm:$0xf]
    %v1775 = vld [vmem:[#allocation4 + $0xc] sm:$0xf]
    %v1776 = vld [vmem:[#allocation4 + $0x10] sm:$0xf]
    %v1777 = vld [vmem:[#allocation4 + $0x14] sm:$0xf]
    %v1778 = vld [vmem:[#allocation4 + $0x18] sm:$0xf]
    %v1779 = vld [vmem:[#allocation4 + $0x1c] sm:$0xf]
    %v1780 = vld [vmem:[#allocation14] sm:$0xff]
    %v1781 = vld [vmem:[#allocation14 + $0x8] sm:$0xff]
    %v1782 = vld [vmem:[#allocation14 + $0x10] sm:$0xff]
    %v1783 = vld [vmem:[#allocation14 + $0x18] sm:$0xff]
    %v1784 = vld [vmem:[#allocation14 + $0x20] sm:$0xff]
    %v1785 = vld [vmem:[#allocation14 + $0x28] sm:$0xff]
    %v1786 = vld [vmem:[#allocation14 + $0x30] sm:$0xff]
    %v1787 = vld [vmem:[#allocation14 + $0x38] sm:$0xff]
    %v1788 = vld [vmem:[#allocation14 + $0x40] sm:$0xff]
    %v1789 = vld [vmem:[#allocation14 + $0x48] sm:$0xff]
    %v1790 = vld [vmem:[#allocation14 + $0x50] sm:$0xff]
    %v1791 = vld [vmem:[#allocation14 + $0x58] sm:$0xff]
    %v1792 = vld [vmem:[#allocation14 + $0x60] sm:$0xff]
    %v1793 = vld [vmem:[#allocation14 + $0x68] sm:$0xff]
    %v1794 = vld [vmem:[#allocation14 + $0x70] sm:$0xff]
    %v1795 = vld [vmem:[#allocation14 + $0x78] sm:$0xff]
    %v1796 = vld [vmem:[#allocation14 + $0x80] sm:$0xff]
    %v1797 = vld [vmem:[#allocation14 + $0x88] sm:$0xff]
    %v1798 = vld [vmem:[#allocation14 + $0x90] sm:$0xff]
    %v1799 = vld [vmem:[#allocation14 + $0x98] sm:$0xff]
    %v1800 = vld [vmem:[#allocation14 + $0xa0] sm:$0xff]
    %v1801 = vld [vmem:[#allocation14 + $0xa8] sm:$0xff]
    %v1802 = vld [vmem:[#allocation14 + $0xb0] sm:$0xff]
    %v1803 = vld [vmem:[#allocation14 + $0xb8] sm:$0xff]
    %v1804 = vld [vmem:[#allocation14 + $0xc0] sm:$0xff]
    %v1805 = vld [vmem:[#allocation14 + $0xc8] sm:$0xff]
    %v1806 = vld [vmem:[#allocation14 + $0xd0] sm:$0xff]
    %v1807 = vld [vmem:[#allocation14 + $0xd8] sm:$0xff]
    %v1808 = vld [vmem:[#allocation14 + $0xe0] sm:$0xff]
    %v1809 = vld [vmem:[#allocation14 + $0xe8] sm:$0xff]
    %v1810 = vld [vmem:[#allocation14 + $0xf0] sm:$0xff]
    %v1811 = vld [vmem:[#allocation14 + $0xf8] sm:$0xff]
    %v1812 = vld [vmem:[#allocation15] sm:$0xff]
    %v1813 = vld [vmem:[#allocation15 + $0x8] sm:$0xff]
    %v1814 = vld [vmem:[#allocation15 + $0x10] sm:$0xff]
    %v1815 = vld [vmem:[#allocation15 + $0x18] sm:$0xff]
    %v1816 = vld [vmem:[#allocation15 + $0x20] sm:$0xff]
    %v1817 = vld [vmem:[#allocation15 + $0x28] sm:$0xff]
    %v1818 = vld [vmem:[#allocation15 + $0x30] sm:$0xff]
    %v1819 = vld [vmem:[#allocation15 + $0x38] sm:$0xff]
    %v1820 = vld [vmem:[#allocation15 + $0x40] sm:$0xff]
    %v1821 = vld [vmem:[#allocation15 + $0x48] sm:$0xff]
    %v1822 = vld [vmem:[#allocation15 + $0x50] sm:$0xff]
    %v1823 = vld [vmem:[#allocation15 + $0x58] sm:$0xff]
    %v1824 = vld [vmem:[#allocation15 + $0x60] sm:$0xff]
    %v1825 = vld [vmem:[#allocation15 + $0x68] sm:$0xff]
    %v1826 = vld [vmem:[#allocation15 + $0x70] sm:$0xff]
    %v1827 = vld [vmem:[#allocation15 + $0x78] sm:$0xff]
    %v1828 = vld [vmem:[#allocation15 + $0x80] sm:$0xff]
    %v1829 = vld [vmem:[#allocation15 + $0x88] sm:$0xff]
    %v1830 = vld [vmem:[#allocation15 + $0x90] sm:$0xff]
    %v1831 = vld [vmem:[#allocation15 + $0x98] sm:$0xff]
    %v1832 = vld [vmem:[#allocation15 + $0xa0] sm:$0xff]
    %v1833 = vld [vmem:[#allocation15 + $0xa8] sm:$0xff]
    %v1834 = vld [vmem:[#allocation15 + $0xb0] sm:$0xff]
    %v1835 = vld [vmem:[#allocation15 + $0xb8] sm:$0xff]
    %v1836 = vld [vmem:[#allocation15 + $0xc0] sm:$0xff]
    %v1837 = vld [vmem:[#allocation15 + $0xc8] sm:$0xff]
    %v1838 = vld [vmem:[#allocation15 + $0xd0] sm:$0xff]
    %v1839 = vld [vmem:[#allocation15 + $0xd8] sm:$0xff]
    %v1840 = vld [vmem:[#allocation15 + $0xe0] sm:$0xff]
    %v1841 = vld [vmem:[#allocation15 + $0xe8] sm:$0xff]
    %v1842 = vld [vmem:[#allocation15 + $0xf0] sm:$0xff]
    %v1843 = vld [vmem:[#allocation15 + $0xf8] sm:$0xff]
    %v1844 = vld [vmem:[%s7] sm:$0xf]
    %v1846 = vlaneseq
    %v1847 = vshrl.u32 %v1846, 7
    %v1848 = vsub.s32 0, %v1847
    %v1849 = vrot.slane %v1844, %v1848
    %v1850 = vlaneseq
    %v1851 = vshrl.u32 %v1850, 7
    %v1852 = vsub.s32 1, %v1851
    %v1853 = vrot.slane %v1844, %v1852
    %v1854 = vlaneseq
    %v1855 = vshrl.u32 %v1854, 7
    %v1856 = vsub.s32 2, %v1855
    %v1857 = vrot.slane %v1844, %v1856
    %v1858 = vlaneseq
    %v1859 = vshrl.u32 %v1858, 7
    %v1860 = vsub.s32 3, %v1859
    %v1861 = vrot.slane %v1844, %v1860
    %v1874 = vunpack.c.l.b16 %v1772
    %v1875 = vunpack.c.l.b16 %v1773
    %v1876 = vunpack.c.l.b16 %v1774
    %v1877 = vunpack.c.l.b16 %v1775
    %v1878 = vunpack.c.l.b16 %v1776
    %v1879 = vunpack.c.l.b16 %v1777
    %v1880 = vunpack.c.l.b16 %v1778
    %v1881 = vunpack.c.l.b16 %v1779
    %v1882 = vpack.c.b16 %v1875, %v1874
    %v1883 = vpack.c.b16 %v1877, %v1876
    %v1884 = vpack.c.b16 %v1879, %v1878
    %v1885 = vpack.c.b16 %v1881, %v1880
    %v1922 = vunpack.c.l.b16 %v1780
    %v1923 = vunpack.c.h.b16 %v1780
    %v1924 = vunpack.c.l.b16 %v1781
    %v1925 = vunpack.c.h.b16 %v1781
    %v1926 = vunpack.c.l.b16 %v1782
    %v1927 = vunpack.c.h.b16 %v1782
    %v1928 = vunpack.c.l.b16 %v1783
    %v1929 = vunpack.c.h.b16 %v1783
    %v1930 = vunpack.c.l.b16 %v1784
    %v1931 = vunpack.c.h.b16 %v1784
    %v1932 = vunpack.c.l.b16 %v1785
    %v1933 = vunpack.c.h.b16 %v1785
    %v1934 = vunpack.c.l.b16 %v1786
    %v1935 = vunpack.c.h.b16 %v1786
    %v1936 = vunpack.c.l.b16 %v1787
    %v1937 = vunpack.c.h.b16 %v1787
    %v1938 = vunpack.c.l.b16 %v1788
    %v1939 = vunpack.c.h.b16 %v1788
    %v1940 = vunpack.c.l.b16 %v1789
    %v1941 = vunpack.c.h.b16 %v1789
    %v1942 = vunpack.c.l.b16 %v1790
    %v1943 = vunpack.c.h.b16 %v1790
    %v1944 = vunpack.c.l.b16 %v1791
    %v1945 = vunpack.c.h.b16 %v1791
    %v1946 = vunpack.c.l.b16 %v1792
    %v1947 = vunpack.c.h.b16 %v1792
    %v1948 = vunpack.c.l.b16 %v1793
    %v1949 = vunpack.c.h.b16 %v1793
    %v1950 = vunpack.c.l.b16 %v1794
    %v1951 = vunpack.c.h.b16 %v1794
    %v1952 = vunpack.c.l.b16 %v1795
    %v1953 = vunpack.c.h.b16 %v1795
    %v1954 = vunpack.c.l.b16 %v1796
    %v1955 = vunpack.c.h.b16 %v1796
    %v1956 = vunpack.c.l.b16 %v1797
    %v1957 = vunpack.c.h.b16 %v1797
    %v1958 = vunpack.c.l.b16 %v1798
    %v1959 = vunpack.c.h.b16 %v1798
    %v1960 = vunpack.c.l.b16 %v1799
    %v1961 = vunpack.c.h.b16 %v1799
    %v1962 = vunpack.c.l.b16 %v1800
    %v1963 = vunpack.c.h.b16 %v1800
    %v1964 = vunpack.c.l.b16 %v1801
    %v1965 = vunpack.c.h.b16 %v1801
    %v1966 = vunpack.c.l.b16 %v1802
    %v1967 = vunpack.c.h.b16 %v1802
    %v1968 = vunpack.c.l.b16 %v1803
    %v1969 = vunpack.c.h.b16 %v1803
    %v1970 = vunpack.c.l.b16 %v1804
    %v1971 = vunpack.c.h.b16 %v1804
    %v1972 = vunpack.c.l.b16 %v1805
    %v1973 = vunpack.c.h.b16 %v1805
    %v1974 = vunpack.c.l.b16 %v1806
    %v1975 = vunpack.c.h.b16 %v1806
    %v1976 = vunpack.c.l.b16 %v1807
    %v1977 = vunpack.c.h.b16 %v1807
    %v1978 = vunpack.c.l.b16 %v1808
    %v1979 = vunpack.c.h.b16 %v1808
    %v1980 = vunpack.c.l.b16 %v1809
    %v1981 = vunpack.c.h.b16 %v1809
    %v1982 = vunpack.c.l.b16 %v1810
    %v1983 = vunpack.c.h.b16 %v1810
    %v1984 = vunpack.c.l.b16 %v1811
    %v1985 = vunpack.c.h.b16 %v1811
    %v1986 = vpack.c.b16 %v1926, %v1922
    %v1987 = vpack.c.b16 %v1927, %v1923
    %v1988 = vpack.c.b16 %v1928, %v1924
    %v1989 = vpack.c.b16 %v1929, %v1925
    %v1990 = vpack.c.b16 %v1934, %v1930
    %v1991 = vpack.c.b16 %v1935, %v1931
    %v1992 = vpack.c.b16 %v1936, %v1932
    %v1993 = vpack.c.b16 %v1937, %v1933
    %v1994 = vpack.c.b16 %v1942, %v1938
    %v1995 = vpack.c.b16 %v1943, %v1939
    %v1996 = vpack.c.b16 %v1944, %v1940
    %v1997 = vpack.c.b16 %v1945, %v1941
    %v1998 = vpack.c.b16 %v1950, %v1946
    %v1999 = vpack.c.b16 %v1951, %v1947
    %v2000 = vpack.c.b16 %v1952, %v1948
    %v2001 = vpack.c.b16 %v1953, %v1949
    %v2002 = vpack.c.b16 %v1958, %v1954
    %v2003 = vpack.c.b16 %v1959, %v1955
    %v2004 = vpack.c.b16 %v1960, %v1956
    %v2005 = vpack.c.b16 %v1961, %v1957
    %v2006 = vpack.c.b16 %v1966, %v1962
    %v2007 = vpack.c.b16 %v1967, %v1963
    %v2008 = vpack.c.b16 %v1968, %v1964
    %v2009 = vpack.c.b16 %v1969, %v1965
    %v2010 = vpack.c.b16 %v1974, %v1970
    %v2011 = vpack.c.b16 %v1975, %v1971
    %v2012 = vpack.c.b16 %v1976, %v1972
    %v2013 = vpack.c.b16 %v1977, %v1973
    %v2014 = vpack.c.b16 %v1982, %v1978
    %v2015 = vpack.c.b16 %v1983, %v1979
    %v2016 = vpack.c.b16 %v1984, %v1980
    %v2017 = vpack.c.b16 %v1985, %v1981
    %2050 = vmatprep.subr.bf16.mxu0 %v2015
    %2051 = vmatpush1.bf16.msra.mxu0 %v2014
    %2052 = vmatprep.subr.bf16.mxu0 %v2011
    %2053 = vmatpush1.bf16.msra.mxu0 %v2010
    %2054 = vmatprep.subr.bf16.mxu0 %v2007
    %2055 = vmatpush1.bf16.msra.mxu0 %v2006
    %2056 = vmatprep.subr.bf16.mxu0 %v2003
    %2057 = vmatpush1.bf16.msra.mxu0 %v2002
    %2058 = vmatprep.subr.bf16.mxu0 %v1999
    %2059 = vmatpush1.bf16.msra.mxu0 %v1998
    %2060 = vmatprep.subr.bf16.mxu0 %v1995
    %2061 = vmatpush1.bf16.msra.mxu0 %v1994
    %2062 = vmatprep.subr.bf16.mxu0 %v1991
    %2063 = vmatpush1.bf16.msra.mxu0 %v1990
    %2064 = vmatprep.subr.bf16.mxu0 %v1987
    %2065 = vmatpush1.bf16.msra.mxu0 %v1986
    %2066 = vmatprep.subr.bf16.mxu0 0
    %2067 = vmatpush2.bf16.msra.mxu0 0
    %2068 = vmatprep.subr.bf16.mxu0 0
    %2069 = vmatpush2.bf16.msra.mxu0 0
    %2070 = vmatprep.subr.bf16.mxu0 0
    %2071 = vmatpush2.bf16.msra.mxu0 0
    %2072 = vmatprep.subr.bf16.mxu0 0
    %2073 = vmatpush2.bf16.msra.mxu0 0
    %2074 = vmatprep.subr.bf16.mxu0 0
    %2075 = vmatpush2.bf16.msra.mxu0 0
    %2076 = vmatprep.subr.bf16.mxu0 0
    %2077 = vmatpush2.bf16.msra.mxu0 0
    %2078 = vmatprep.subr.bf16.mxu0 0
    %2079 = vmatpush2.bf16.msra.mxu0 0
    %2080 = vmatprep.subr.bf16.mxu0 0
    %2081 = vmatpush2.bf16.msra.mxu0 0
    %2082 = vmatprep.mubr.bf16.mxu0 0
    %2083 = vmatmul.mubr.bf16.gmra.mxu0 %v1882
    %v2084 = vpop.f32.mrf.mxu0
    %v2085 = vadd.f32 %v1849, %v2084
    %v2086 = vpop.f32.mrf.mxu0
    %v2087 = vadd.f32 %v1853, %v2086
    %v2088 = vpop.f32.mrf.mxu0
    %v2089 = vadd.f32 %v1849, %v2088
    %v2090 = vpop.f32.mrf.mxu0
    %v2091 = vadd.f32 %v1853, %v2090
    %2092 = vmatprep.mubr.bf16.mxu0 0
    %2093 = vmatmul.mubr.bf16.gmra.mxu0 %v1883
    %v2094 = vpop.f32.mrf.mxu0
    %v2095 = vadd.f32 %v1849, %v2094
    %v2096 = vpop.f32.mrf.mxu0
    %v2097 = vadd.f32 %v1853, %v2096
    %v2098 = vpop.f32.mrf.mxu0
    %v2099 = vadd.f32 %v1849, %v2098
    %v2100 = vpop.f32.mrf.mxu0
    %v2101 = vadd.f32 %v1853, %v2100
    %2102 = vmatprep.mubr.bf16.mxu0 0
    %2103 = vmatmul.mubr.bf16.gmra.mxu0 %v1884
    %v2104 = vpop.f32.mrf.mxu0
    %v2105 = vadd.f32 %v1849, %v2104
    %v2106 = vpop.f32.mrf.mxu0
    %v2107 = vadd.f32 %v1853, %v2106
    %v2108 = vpop.f32.mrf.mxu0
    %v2109 = vadd.f32 %v1849, %v2108
    %v2110 = vpop.f32.mrf.mxu0
    %v2111 = vadd.f32 %v1853, %v2110
    %2112 = vmatprep.mubr.bf16.mxu0 0
    %2113 = vmatmul.mubr.bf16.gmra.mxu0 %v1885
    %v2114 = vpop.f32.mrf.mxu0
    %v2115 = vadd.f32 %v1849, %v2114
    %v2116 = vpop.f32.mrf.mxu0
    %v2117 = vadd.f32 %v1853, %v2116
    %v2118 = vpop.f32.mrf.mxu0
    %v2119 = vadd.f32 %v1849, %v2118
    %v2120 = vpop.f32.mrf.mxu0
    %v2121 = vadd.f32 %v1853, %v2120
    %2122 = vdwg.mxu0
    %2123 = vmatprep.subr.bf16.mxu0 %v2017
    %2124 = vmatpush1.bf16.msra.mxu0 %v2016
    %2125 = vmatprep.subr.bf16.mxu0 %v2013
    %2126 = vmatpush1.bf16.msra.mxu0 %v2012
    %2127 = vmatprep.subr.bf16.mxu0 %v2009
    %2128 = vmatpush1.bf16.msra.mxu0 %v2008
    %2129 = vmatprep.subr.bf16.mxu0 %v2005
    %2130 = vmatpush1.bf16.msra.mxu0 %v2004
    %2131 = vmatprep.subr.bf16.mxu0 %v2001
    %2132 = vmatpush1.bf16.msra.mxu0 %v2000
    %2133 = vmatprep.subr.bf16.mxu0 %v1997
    %2134 = vmatpush1.bf16.msra.mxu0 %v1996
    %2135 = vmatprep.subr.bf16.mxu0 %v1993
    %2136 = vmatpush1.bf16.msra.mxu0 %v1992
    %2137 = vmatprep.subr.bf16.mxu0 %v1989
    %2138 = vmatpush1.bf16.msra.mxu0 %v1988
    %2139 = vmatprep.subr.bf16.mxu0 0
    %2140 = vmatpush2.bf16.msra.mxu0 0
    %2141 = vmatprep.subr.bf16.mxu0 0
    %2142 = vmatpush2.bf16.msra.mxu0 0
    %2143 = vmatprep.subr.bf16.mxu0 0
    %2144 = vmatpush2.bf16.msra.mxu0 0
    %2145 = vmatprep.subr.bf16.mxu0 0
    %2146 = vmatpush2.bf16.msra.mxu0 0
    %2147 = vmatprep.subr.bf16.mxu0 0
    %2148 = vmatpush2.bf16.msra.mxu0 0
    %2149 = vmatprep.subr.bf16.mxu0 0
    %2150 = vmatpush2.bf16.msra.mxu0 0
    %2151 = vmatprep.subr.bf16.mxu0 0
    %2152 = vmatpush2.bf16.msra.mxu0 0
    %2153 = vmatprep.subr.bf16.mxu0 0
    %2154 = vmatpush2.bf16.msra.mxu0 0
    %2155 = vmatprep.mubr.bf16.mxu0 0
    %2156 = vmatmul.mubr.bf16.gmra.mxu0 %v1882
    %v2157 = vpop.f32.mrf.mxu0
    %v2158 = vadd.f32 %v1857, %v2157
    %v2159 = vpop.f32.mrf.mxu0
    %v2160 = vadd.f32 %v1861, %v2159
    %v2161 = vpop.f32.mrf.mxu0
    %v2162 = vadd.f32 %v1857, %v2161
    %v2163 = vpop.f32.mrf.mxu0
    %v2164 = vadd.f32 %v1861, %v2163
    %2165 = vmatprep.mubr.bf16.mxu0 0
    %2166 = vmatmul.mubr.bf16.gmra.mxu0 %v1883
    %v2167 = vpop.f32.mrf.mxu0
    %v2168 = vadd.f32 %v1857, %v2167
    %v2169 = vpop.f32.mrf.mxu0
    %v2170 = vadd.f32 %v1861, %v2169
    %v2171 = vpop.f32.mrf.mxu0
    %v2172 = vadd.f32 %v1857, %v2171
    %v2173 = vpop.f32.mrf.mxu0
    %v2174 = vadd.f32 %v1861, %v2173
    %2175 = vmatprep.mubr.bf16.mxu0 0
    %2176 = vmatmul.mubr.bf16.gmra.mxu0 %v1884
    %v2177 = vpop.f32.mrf.mxu0
    %v2178 = vadd.f32 %v1857, %v2177
    %v2179 = vpop.f32.mrf.mxu0
    %v2180 = vadd.f32 %v1861, %v2179
    %v2181 = vpop.f32.mrf.mxu0
    %v2182 = vadd.f32 %v1857, %v2181
    %v2183 = vpop.f32.mrf.mxu0
    %v2184 = vadd.f32 %v1861, %v2183
    %2185 = vmatprep.mubr.bf16.mxu0 0
    %2186 = vmatmul.mubr.bf16.gmra.mxu0 %v1885
    %v2187 = vpop.f32.mrf.mxu0
    %v2188 = vadd.f32 %v1857, %v2187
    %v2189 = vpop.f32.mrf.mxu0
    %v2190 = vadd.f32 %v1861, %v2189
    %v2191 = vpop.f32.mrf.mxu0
    %v2192 = vadd.f32 %v1857, %v2191
    %v2193 = vpop.f32.mrf.mxu0
    %v2194 = vadd.f32 %v1861, %v2193
    %2195 = vdwg.mxu0
    %2196 = vst [vmem:[#allocation3] sm:$0xff] %v2085
    %2197 = vst [vmem:[#allocation3 + $0x8] sm:$0xff] %v2087
    %2198 = vst [vmem:[#allocation3 + $0x10] sm:$0xff] %v2158
    %2199 = vst [vmem:[#allocation3 + $0x18] sm:$0xff] %v2160
    %2200 = vst [vmem:[#allocation3 + $0x20] sm:$0xff] %v2089
    %2201 = vst [vmem:[#allocation3 + $0x28] sm:$0xff] %v2091
    %2202 = vst [vmem:[#allocation3 + $0x30] sm:$0xff] %v2162
    %2203 = vst [vmem:[#allocation3 + $0x38] sm:$0xff] %v2164
    %2204 = vst [vmem:[#allocation3 + $0x40] sm:$0xff] %v2095
    %2205 = vst [vmem:[#allocation3 + $0x48] sm:$0xff] %v2097
    %2206 = vst [vmem:[#allocation3 + $0x50] sm:$0xff] %v2168
    %2207 = vst [vmem:[#allocation3 + $0x58] sm:$0xff] %v2170
    %2208 = vst [vmem:[#allocation3 + $0x60] sm:$0xff] %v2099
    %2209 = vst [vmem:[#allocation3 + $0x68] sm:$0xff] %v2101
    %2210 = vst [vmem:[#allocation3 + $0x70] sm:$0xff] %v2172
    %2211 = vst [vmem:[#allocation3 + $0x78] sm:$0xff] %v2174
    %2212 = vst [vmem:[#allocation3 + $0x80] sm:$0xff] %v2105
    %2213 = vst [vmem:[#allocation3 + $0x88] sm:$0xff] %v2107
    %2214 = vst [vmem:[#allocation3 + $0x90] sm:$0xff] %v2178
    %2215 = vst [vmem:[#allocation3 + $0x98] sm:$0xff] %v2180
    %2216 = vst [vmem:[#allocation3 + $0xa0] sm:$0xff] %v2109
    %2217 = vst [vmem:[#allocation3 + $0xa8] sm:$0xff] %v2111
    %2218 = vst [vmem:[#allocation3 + $0xb0] sm:$0xff] %v2182
    %2219 = vst [vmem:[#allocation3 + $0xb8] sm:$0xff] %v2184
    %2220 = vst [vmem:[#allocation3 + $0xc0] sm:$0xff] %v2115
    %2221 = vst [vmem:[#allocation3 + $0xc8] sm:$0xff] %v2117
    %2222 = vst [vmem:[#allocation3 + $0xd0] sm:$0xff] %v2188
    %2223 = vst [vmem:[#allocation3 + $0xd8] sm:$0xff] %v2190
    %2224 = vst [vmem:[#allocation3 + $0xe0] sm:$0xff] %v2119
    %2225 = vst [vmem:[#allocation3 + $0xe8] sm:$0xff] %v2121
    %2226 = vst [vmem:[#allocation3 + $0xf0] sm:$0xff] %v2192
    %2227 = vst [vmem:[#allocation3 + $0xf8] sm:$0xff] %v2194
    %v2228 = vld [vmem:[%s653] sm:$0xff]
    %v2229 = vld [vmem:[%s653 + $0x8] sm:$0xff]
    %v2230 = vld [vmem:[%s653 + $0x10] sm:$0xff]
    %v2231 = vld [vmem:[%s653 + $0x18] sm:$0xff]
    %v2264 = vunpack.c.l.b16 %v1812
    %v2265 = vunpack.c.h.b16 %v1812
    %v2266 = vunpack.c.l.b16 %v1813
    %v2267 = vunpack.c.h.b16 %v1813
    %v2268 = vunpack.c.l.b16 %v1814
    %v2269 = vunpack.c.h.b16 %v1814
    %v2270 = vunpack.c.l.b16 %v1815
    %v2271 = vunpack.c.h.b16 %v1815
    %v2272 = vunpack.c.l.b16 %v1816
    %v2273 = vunpack.c.h.b16 %v1816
    %v2274 = vunpack.c.l.b16 %v1817
    %v2275 = vunpack.c.h.b16 %v1817
    %v2276 = vunpack.c.l.b16 %v1818
    %v2277 = vunpack.c.h.b16 %v1818
    %v2278 = vunpack.c.l.b16 %v1819
    %v2279 = vunpack.c.h.b16 %v1819
    %v2280 = vunpack.c.l.b16 %v1820
    %v2281 = vunpack.c.h.b16 %v1820
    %v2282 = vunpack.c.l.b16 %v1821
    %v2283 = vunpack.c.h.b16 %v1821
    %v2284 = vunpack.c.l.b16 %v1822
    %v2285 = vunpack.c.h.b16 %v1822
    %v2286 = vunpack.c.l.b16 %v1823
    %v2287 = vunpack.c.h.b16 %v1823
    %v2288 = vunpack.c.l.b16 %v1824
    %v2289 = vunpack.c.h.b16 %v1824
    %v2290 = vunpack.c.l.b16 %v1825
    %v2291 = vunpack.c.h.b16 %v1825
    %v2292 = vunpack.c.l.b16 %v1826
    %v2293 = vunpack.c.h.b16 %v1826
    %v2294 = vunpack.c.l.b16 %v1827
    %v2295 = vunpack.c.h.b16 %v1827
    %v2296 = vunpack.c.l.b16 %v1828
    %v2297 = vunpack.c.h.b16 %v1828
    %v2298 = vunpack.c.l.b16 %v1829
    %v2299 = vunpack.c.h.b16 %v1829
    %v2300 = vunpack.c.l.b16 %v1830
    %v2301 = vunpack.c.h.b16 %v1830
    %v2302 = vunpack.c.l.b16 %v1831
    %v2303 = vunpack.c.h.b16 %v1831
    %v2304 = vunpack.c.l.b16 %v1832
    %v2305 = vunpack.c.h.b16 %v1832
    %v2306 = vunpack.c.l.b16 %v1833
    %v2307 = vunpack.c.h.b16 %v1833
    %v2308 = vunpack.c.l.b16 %v1834
    %v2309 = vunpack.c.h.b16 %v1834
    %v2310 = vunpack.c.l.b16 %v1835
    %v2311 = vunpack.c.h.b16 %v1835
    %v2312 = vunpack.c.l.b16 %v1836
    %v2313 = vunpack.c.h.b16 %v1836
    %v2314 = vunpack.c.l.b16 %v1837
    %v2315 = vunpack.c.h.b16 %v1837
    %v2316 = vunpack.c.l.b16 %v1838
    %v2317 = vunpack.c.h.b16 %v1838
    %v2318 = vunpack.c.l.b16 %v1839
    %v2319 = vunpack.c.h.b16 %v1839
    %v2320 = vunpack.c.l.b16 %v1840
    %v2321 = vunpack.c.h.b16 %v1840
    %v2322 = vunpack.c.l.b16 %v1841
    %v2323 = vunpack.c.h.b16 %v1841
    %v2324 = vunpack.c.l.b16 %v1842
    %v2325 = vunpack.c.h.b16 %v1842
    %v2326 = vunpack.c.l.b16 %v1843
    %v2327 = vunpack.c.h.b16 %v1843
    %v2328 = vpack.c.b16 %v2268, %v2264
    %v2329 = vpack.c.b16 %v2269, %v2265
    %v2330 = vpack.c.b16 %v2270, %v2266
    %v2331 = vpack.c.b16 %v2271, %v2267
    %v2332 = vpack.c.b16 %v2276, %v2272
    %v2333 = vpack.c.b16 %v2277, %v2273
    %v2334 = vpack.c.b16 %v2278, %v2274
    %v2335 = vpack.c.b16 %v2279, %v2275
    %v2336 = vpack.c.b16 %v2284, %v2280
    %v2337 = vpack.c.b16 %v2285, %v2281
    %v2338 = vpack.c.b16 %v2286, %v2282
    %v2339 = vpack.c.b16 %v2287, %v2283
    %v2340 = vpack.c.b16 %v2292, %v2288
    %v2341 = vpack.c.b16 %v2293, %v2289
    %v2342 = vpack.c.b16 %v2294, %v2290
    %v2343 = vpack.c.b16 %v2295, %v2291
    %v2344 = vpack.c.b16 %v2300, %v2296
    %v2345 = vpack.c.b16 %v2301, %v2297
    %v2346 = vpack.c.b16 %v2302, %v2298
    %v2347 = vpack.c.b16 %v2303, %v2299
    %v2348 = vpack.c.b16 %v2308, %v2304
    %v2349 = vpack.c.b16 %v2309, %v2305
    %v2350 = vpack.c.b16 %v2310, %v2306
    %v2351 = vpack.c.b16 %v2311, %v2307
    %v2352 = vpack.c.b16 %v2316, %v2312
    %v2353 = vpack.c.b16 %v2317, %v2313
    %v2354 = vpack.c.b16 %v2318, %v2314
    %v2355 = vpack.c.b16 %v2319, %v2315
    %v2356 = vpack.c.b16 %v2324, %v2320
    %v2357 = vpack.c.b16 %v2325, %v2321
    %v2358 = vpack.c.b16 %v2326, %v2322
    %v2359 = vpack.c.b16 %v2327, %v2323
    %2392 = vmatprep.subr.bf16.mxu0 %v2357
    %2393 = vmatpush1.bf16.msra.mxu0 %v2356
    %2394 = vmatprep.subr.bf16.mxu0 %v2353
    %2395 = vmatpush1.bf16.msra.mxu0 %v2352
    %2396 = vmatprep.subr.bf16.mxu0 %v2349
    %2397 = vmatpush1.bf16.msra.mxu0 %v2348
    %2398 = vmatprep.subr.bf16.mxu0 %v2345
    %2399 = vmatpush1.bf16.msra.mxu0 %v2344
    %2400 = vmatprep.subr.bf16.mxu0 %v2341
    %2401 = vmatpush1.bf16.msra.mxu0 %v2340
    %2402 = vmatprep.subr.bf16.mxu0 %v2337
    %2403 = vmatpush1.bf16.msra.mxu0 %v2336
    %2404 = vmatprep.subr.bf16.mxu0 %v2333
    %2405 = vmatpush1.bf16.msra.mxu0 %v2332
    %2406 = vmatprep.subr.bf16.mxu0 %v2329
    %2407 = vmatpush1.bf16.msra.mxu0 %v2328
    %2408 = vmatprep.subr.bf16.mxu0 0
    %2409 = vmatpush2.bf16.msra.mxu0 0
    %2410 = vmatprep.subr.bf16.mxu0 0
    %2411 = vmatpush2.bf16.msra.mxu0 0
    %2412 = vmatprep.subr.bf16.mxu0 0
    %2413 = vmatpush2.bf16.msra.mxu0 0
    %2414 = vmatprep.subr.bf16.mxu0 0
    %2415 = vmatpush2.bf16.msra.mxu0 0
    %2416 = vmatprep.subr.bf16.mxu0 0
    %2417 = vmatpush2.bf16.msra.mxu0 0
    %2418 = vmatprep.subr.bf16.mxu0 0
    %2419 = vmatpush2.bf16.msra.mxu0 0
    %2420 = vmatprep.subr.bf16.mxu0 0
    %2421 = vmatpush2.bf16.msra.mxu0 0
    %2422 = vmatprep.subr.bf16.mxu0 0
    %2423 = vmatpush2.bf16.msra.mxu0 0
    %2424 = vmatprep.mubr.bf16.mxu0 0
    %2425 = vmatmul.mubr.bf16.gmra.mxu0 0
    %v2426 = vpop.f32.mrf.mxu0
    %v2427 = vadd.f32 0.0, %v2426
    %v2428 = vpop.f32.mrf.mxu0
    %v2429 = vadd.f32 0.0, %v2428
    %v2430 = vpop.f32.mrf.mxu0
    %v2431 = vpop.f32.mrf.mxu0
    %2432 = vdwg.mxu0
    %2433 = vmatprep.subr.bf16.mxu0 %v2359
    %2434 = vmatpush1.bf16.msra.mxu0 %v2358
    %2435 = vmatprep.subr.bf16.mxu0 %v2355
    %2436 = vmatpush1.bf16.msra.mxu0 %v2354
    %2437 = vmatprep.subr.bf16.mxu0 %v2351
    %2438 = vmatpush1.bf16.msra.mxu0 %v2350
    %2439 = vmatprep.subr.bf16.mxu0 %v2347
    %2440 = vmatpush1.bf16.msra.mxu0 %v2346
    %2441 = vmatprep.subr.bf16.mxu0 %v2343
    %2442 = vmatpush1.bf16.msra.mxu0 %v2342
    %2443 = vmatprep.subr.bf16.mxu0 %v2339
    %2444 = vmatpush1.bf16.msra.mxu0 %v2338
    %2445 = vmatprep.subr.bf16.mxu0 %v2335
    %2446 = vmatpush1.bf16.msra.mxu0 %v2334
    %2447 = vmatprep.subr.bf16.mxu0 %v2331
    %2448 = vmatpush1.bf16.msra.mxu0 %v2330
    %2449 = vmatprep.subr.bf16.mxu0 0
    %2450 = vmatpush2.bf16.msra.mxu0 0
    %2451 = vmatprep.subr.bf16.mxu0 0
    %2452 = vmatpush2.bf16.msra.mxu0 0
    %2453 = vmatprep.subr.bf16.mxu0 0
    %2454 = vmatpush2.bf16.msra.mxu0 0
    %2455 = vmatprep.subr.bf16.mxu0 0
    %2456 = vmatpush2.bf16.msra.mxu0 0
    %2457 = vmatprep.subr.bf16.mxu0 0
    %2458 = vmatpush2.bf16.msra.mxu0 0
    %2459 = vmatprep.subr.bf16.mxu0 0
    %2460 = vmatpush2.bf16.msra.mxu0 0
    %2461 = vmatprep.subr.bf16.mxu0 0
    %2462 = vmatpush2.bf16.msra.mxu0 0
    %2463 = vmatprep.subr.bf16.mxu0 0
    %2464 = vmatpush2.bf16.msra.mxu0 0
    %2465 = vmatprep.mubr.bf16.mxu0 0
    %2466 = vmatmul.mubr.bf16.gmra.mxu0 0
    %v2467 = vpop.f32.mrf.mxu0
    %v2468 = vadd.f32 0.0, %v2467
    %v2469 = vpop.f32.mrf.mxu0
    %v2470 = vadd.f32 0.0, %v2469
    %v2471 = vpop.f32.mrf.mxu0
    %v2472 = vpop.f32.mrf.mxu0
    %2473 = vdwg.mxu0
    %v2474 = vadd.f32 %v2228, %v2427
    %v2475 = vadd.f32 %v2229, %v2429
    %v2476 = vadd.f32 %v2230, %v2468
    %v2477 = vadd.f32 %v2231, %v2470
    %v2478 = vxor.u32 %v2474, 2147483648
    %v2479 = vmul.f32 %v2478, 1.442695
    %v2480 = vpow.pop %v2479
    %v2481 = vadd.f32 %v2480, 1.0
    %v2482 = vrcp.pop %v2481
    %v2483 = vmul.f32 1.0, %v2482
    %v2484 = vxor.u32 %v2475, 2147483648
    %v2485 = vmul.f32 %v2484, 1.442695
    %v2486 = vpow.pop %v2485
    %v2487 = vadd.f32 %v2486, 1.0
    %v2488 = vrcp.pop %v2487
    %v2489 = vmul.f32 1.0, %v2488
    %v2490 = vtanh.pop %v2476
    %v2491 = vxor.u32 %v2477, 2147483648
    %v2492 = vmul.f32 %v2491, 1.442695
    %v2493 = vpow.pop %v2492
    %v2494 = vadd.f32 %v2493, 1.0
    %v2495 = vrcp.pop %v2494
    %v2496 = vmul.f32 1.0, %v2495
    %v2497 = vmul.f32 %v2489, 0.0
    %v2498 = vmul.f32 %v2483, %v2490
    %v2499 = vadd.f32 %v2497, %v2498
    %v2500 = vtanh.pop %v2499
    %v2501 = vmul.f32 %v2496, %v2500
    %v2502 = vpack.c.bf16 %v2501, %v2501
    %2503 = vst [vmem:[#allocation4] sm:$0xf] %v2502
    %v2504 = vld [vmem:[%s932] sm:$0xff]
    %v2505 = vld [vmem:[%s932 + $0x8] sm:$0xff]
    %v2506 = vld [vmem:[%s932 + $0x10] sm:$0xff]
    %v2507 = vld [vmem:[%s932 + $0x18] sm:$0xff]
    %2508 = vmatprep.subr.bf16.mxu0 %v2357
    %2509 = vmatpush1.bf16.msra.mxu0 %v2356
    %2510 = vmatprep.subr.bf16.mxu0 %v2353
    %2511 = vmatpush1.bf16.msra.mxu0 %v2352
    %2512 = vmatprep.subr.bf16.mxu0 %v2349
    %2513 = vmatpush1.bf16.msra.mxu0 %v2348
    %2514 = vmatprep.subr.bf16.mxu0 %v2345
    %2515 = vmatpush1.bf16.msra.mxu0 %v2344
    %2516 = vmatprep.subr.bf16.mxu0 %v2341
    %2517 = vmatpush1.bf16.msra.mxu0 %v2340
    %2518 = vmatprep.subr.bf16.mxu0 %v2337
    %2519 = vmatpush1.bf16.msra.mxu0 %v2336
    %2520 = vmatprep.subr.bf16.mxu0 %v2333
    %2521 = vmatpush1.bf16.msra.mxu0 %v2332
    %2522 = vmatprep.subr.bf16.mxu0 %v2329
    %2523 = vmatpush1.bf16.msra.mxu0 %v2328
    %2524 = vmatprep.subr.bf16.mxu0 0
    %2525 = vmatpush2.bf16.msra.mxu0 0
    %2526 = vmatprep.subr.bf16.mxu0 0
    %2527 = vmatpush2.bf16.msra.mxu0 0
    %2528 = vmatprep.subr.bf16.mxu0 0
    %2529 = vmatpush2.bf16.msra.mxu0 0
    %2530 = vmatprep.subr.bf16.mxu0 0
    %2531 = vmatpush2.bf16.msra.mxu0 0
    %2532 = vmatprep.subr.bf16.mxu0 0
    %2533 = vmatpush2.bf16.msra.mxu0 0
    %2534 = vmatprep.subr.bf16.mxu0 0
    %2535 = vmatpush2.bf16.msra.mxu0 0
    %2536 = vmatprep.subr.bf16.mxu0 0
    %2537 = vmatpush2.bf16.msra.mxu0 0
    %2538 = vmatprep.subr.bf16.mxu0 0
    %2539 = vmatpush2.bf16.msra.mxu0 0
    %2540 = vmatprep.mubr.bf16.mxu0 0
    %2541 = vmatmul.mubr.bf16.gmra.mxu0 %v2502
    %v2542 = vpop.f32.mrf.mxu0
    %v2543 = vadd.f32 0.0, %v2542
    %v2544 = vpop.f32.mrf.mxu0
    %v2545 = vadd.f32 0.0, %v2544
    %v2546 = vpop.f32.mrf.mxu0
    %v2547 = vpop.f32.mrf.mxu0
    %2548 = vdwg.mxu0
    %2549 = vmatprep.subr.bf16.mxu0 %v2359
    %2550 = vmatpush1.bf16.msra.mxu0 %v2358
    %2551 = vmatprep.subr.bf16.mxu0 %v2355
    %2552 = vmatpush1.bf16.msra.mxu0 %v2354
    %2553 = vmatprep.subr.bf16.mxu0 %v2351
    %2554 = vmatpush1.bf16.msra.mxu0 %v2350
    %2555 = vmatprep.subr.bf16.mxu0 %v2347
    %2556 = vmatpush1.bf16.msra.mxu0 %v2346
    %2557 = vmatprep.subr.bf16.mxu0 %v2343
    %2558 = vmatpush1.bf16.msra.mxu0 %v2342
    %2559 = vmatprep.subr.bf16.mxu0 %v2339
    %2560 = vmatpush1.bf16.msra.mxu0 %v2338
    %2561 = vmatprep.subr.bf16.mxu0 %v2335
    %2562 = vmatpush1.bf16.msra.mxu0 %v2334
    %2563 = vmatprep.subr.bf16.mxu0 %v2331
    %2564 = vmatpush1.bf16.msra.mxu0 %v2330
    %2565 = vmatprep.subr.bf16.mxu0 0
    %2566 = vmatpush2.bf16.msra.mxu0 0
    %2567 = vmatprep.subr.bf16.mxu0 0
    %2568 = vmatpush2.bf16.msra.mxu0 0
    %2569 = vmatprep.subr.bf16.mxu0 0
    %2570 = vmatpush2.bf16.msra.mxu0 0
    %2571 = vmatprep.subr.bf16.mxu0 0
    %2572 = vmatpush2.bf16.msra.mxu0 0
    %2573 = vmatprep.subr.bf16.mxu0 0
    %2574 = vmatpush2.bf16.msra.mxu0 0
    %2575 = vmatprep.subr.bf16.mxu0 0
    %2576 = vmatpush2.bf16.msra.mxu0 0
    %2577 = vmatprep.subr.bf16.mxu0 0
    %2578 = vmatpush2.bf16.msra.mxu0 0
    %2579 = vmatprep.subr.bf16.mxu0 0
    %2580 = vmatpush2.bf16.msra.mxu0 0
    %2581 = vmatprep.mubr.bf16.mxu0 0
    %2582 = vmatmul.mubr.bf16.gmra.mxu0 %v2502
    %v2583 = vpop.f32.mrf.mxu0
    %v2584 = vadd.f32 0.0, %v2583
    %v2585 = vpop.f32.mrf.mxu0
    %v2586 = vadd.f32 0.0, %v2585
    %v2587 = vpop.f32.mrf.mxu0
    %v2588 = vpop.f32.mrf.mxu0
    %2589 = vdwg.mxu0
    %v2590 = vadd.f32 %v2504, %v2543
    %v2591 = vadd.f32 %v2505, %v2545
    %v2592 = vadd.f32 %v2506, %v2584
    %v2593 = vadd.f32 %v2507, %v2586
    %v2594 = vxor.u32 %v2590, 2147483648
    %v2595 = vmul.f32 %v2594, 1.442695
    %v2596 = vpow.pop %v2595
    %v2597 = vadd.f32 %v2596, 1.0
    %v2598 = vrcp.pop %v2597
    %v2599 = vmul.f32 1.0, %v2598
    %v2600 = vxor.u32 %v2591, 2147483648
    %v2601 = vmul.f32 %v2600, 1.442695
    %v2602 = vpow.pop %v2601
    %v2603 = vadd.f32 %v2602, 1.0
    %v2604 = vrcp.pop %v2603
    %v2605 = vmul.f32 1.0, %v2604
    %v2606 = vtanh.pop %v2592
    %v2607 = vxor.u32 %v2593, 2147483648
    %v2608 = vmul.f32 %v2607, 1.442695
    %v2609 = vpow.pop %v2608
    %v2610 = vadd.f32 %v2609, 1.0
    %v2611 = vrcp.pop %v2610
    %v2612 = vmul.f32 1.0, %v2611
    %v2613 = vmul.f32 %v2605, %v2499
    %v2614 = vmul.f32 %v2599, %v2606
    %v2615 = vadd.f32 %v2613, %v2614
    %v2616 = vtanh.pop %v2615
    %v2617 = vmul.f32 %v2612, %v2616
    %v2618 = vpack.c.bf16 %v2617, %v2617
    %2619 = vst [vmem:[%s1048] sm:$0xf] %v2618
    %v2620 = vld [vmem:[%s1052] sm:$0xff]
    %v2621 = vld [vmem:[%s1052 + $0x8] sm:$0xff]
    %v2622 = vld [vmem:[%s1052 + $0x10] sm:$0xff]
    %v2623 = vld [vmem:[%s1052 + $0x18] sm:$0xff]
    %2624 = vmatprep.subr.bf16.mxu0 %v2357
    %2625 = vmatpush1.bf16.msra.mxu0 %v2356
    %2626 = vmatprep.subr.bf16.mxu0 %v2353
    %2627 = vmatpush1.bf16.msra.mxu0 %v2352
    %2628 = vmatprep.subr.bf16.mxu0 %v2349
    %2629 = vmatpush1.bf16.msra.mxu0 %v2348
    %2630 = vmatprep.subr.bf16.mxu0 %v2345
    %2631 = vmatpush1.bf16.msra.mxu0 %v2344
    %2632 = vmatprep.subr.bf16.mxu0 %v2341
    %2633 = vmatpush1.bf16.msra.mxu0 %v2340
    %2634 = vmatprep.subr.bf16.mxu0 %v2337
    %2635 = vmatpush1.bf16.msra.mxu0 %v2336
    %2636 = vmatprep.subr.bf16.mxu0 %v2333
    %2637 = vmatpush1.bf16.msra.mxu0 %v2332
    %2638 = vmatprep.subr.bf16.mxu0 %v2329
    %2639 = vmatpush1.bf16.msra.mxu0 %v2328
    %2640 = vmatprep.subr.bf16.mxu0 0
    %2641 = vmatpush2.bf16.msra.mxu0 0
    %2642 = vmatprep.subr.bf16.mxu0 0
    %2643 = vmatpush2.bf16.msra.mxu0 0
    %2644 = vmatprep.subr.bf16.mxu0 0
    %2645 = vmatpush2.bf16.msra.mxu0 0
    %2646 = vmatprep.subr.bf16.mxu0 0
    %2647 = vmatpush2.bf16.msra.mxu0 0
    %2648 = vmatprep.subr.bf16.mxu0 0
    %2649 = vmatpush2.bf16.msra.mxu0 0
    %2650 = vmatprep.subr.bf16.mxu0 0
    %2651 = vmatpush2.bf16.msra.mxu0 0
    %2652 = vmatprep.subr.bf16.mxu0 0
    %2653 = vmatpush2.bf16.msra.mxu0 0
    %2654 = vmatprep.subr.bf16.mxu0 0
    %2655 = vmatpush2.bf16.msra.mxu0 0
    %2656 = vmatprep.mubr.bf16.mxu0 0
    %2657 = vmatmul.mubr.bf16.gmra.mxu0 %v2618
    %v2658 = vpop.f32.mrf.mxu0
    %v2659 = vadd.f32 0.0, %v2658
    %v2660 = vpop.f32.mrf.mxu0
    %v2661 = vadd.f32 0.0, %v2660
    %v2662 = vpop.f32.mrf.mxu0
    %v2663 = vpop.f32.mrf.mxu0
    %2664 = vdwg.mxu0
    %2665 = vmatprep.subr.bf16.mxu0 %v2359
    %2666 = vmatpush1.bf16.msra.mxu0 %v2358
    %2667 = vmatprep.subr.bf16.mxu0 %v2355
    %2668 = vmatpush1.bf16.msra.mxu0 %v2354
    %2669 = vmatprep.subr.bf16.mxu0 %v2351
    %2670 = vmatpush1.bf16.msra.mxu0 %v2350
    %2671 = vmatprep.subr.bf16.mxu0 %v2347
    %2672 = vmatpush1.bf16.msra.mxu0 %v2346
    %2673 = vmatprep.subr.bf16.mxu0 %v2343
    %2674 = vmatpush1.bf16.msra.mxu0 %v2342
    %2675 = vmatprep.subr.bf16.mxu0 %v2339
    %2676 = vmatpush1.bf16.msra.mxu0 %v2338
    %2677 = vmatprep.subr.bf16.mxu0 %v2335
    %2678 = vmatpush1.bf16.msra.mxu0 %v2334
    %2679 = vmatprep.subr.bf16.mxu0 %v2331
    %2680 = vmatpush1.bf16.msra.mxu0 %v2330
    %2681 = vmatprep.subr.bf16.mxu0 0
    %2682 = vmatpush2.bf16.msra.mxu0 0
    %2683 = vmatprep.subr.bf16.mxu0 0
    %2684 = vmatpush2.bf16.msra.mxu0 0
    %2685 = vmatprep.subr.bf16.mxu0 0
    %2686 = vmatpush2.bf16.msra.mxu0 0
    %2687 = vmatprep.subr.bf16.mxu0 0
    %2688 = vmatpush2.bf16.msra.mxu0 0
    %2689 = vmatprep.subr.bf16.mxu0 0
    %2690 = vmatpush2.bf16.msra.mxu0 0
    %2691 = vmatprep.subr.bf16.mxu0 0
    %2692 = vmatpush2.bf16.msra.mxu0 0
    %2693 = vmatprep.subr.bf16.mxu0 0
    %2694 = vmatpush2.bf16.msra.mxu0 0
    %2695 = vmatprep.subr.bf16.mxu0 0
    %2696 = vmatpush2.bf16.msra.mxu0 0
    %2697 = vmatprep.mubr.bf16.mxu0 0
    %2698 = vmatmul.mubr.bf16.gmra.mxu0 %v2618
    %v2699 = vpop.f32.mrf.mxu0
    %v2700 = vadd.f32 0.0, %v2699
    %v2701 = vpop.f32.mrf.mxu0
    %v2702 = vadd.f32 0.0, %v2701
    %v2703 = vpop.f32.mrf.mxu0
    %v2704 = vpop.f32.mrf.mxu0
    %2705 = vdwg.mxu0
    %v2706 = vadd.f32 %v2620, %v2659
    %v2707 = vadd.f32 %v2621, %v2661
    %v2708 = vadd.f32 %v2622, %v2700
    %v2709 = vadd.f32 %v2623, %v2702
    %v2710 = vxor.u32 %v2706, 2147483648
    %v2711 = vmul.f32 %v2710, 1.442695
    %v2712 = vpow.pop %v2711
    %v2713 = vadd.f32 %v2712, 1.0
    %v2714 = vrcp.pop %v2713
    %v2715 = vmul.f32 1.0, %v2714
    %v2716 = vxor.u32 %v2707, 2147483648
    %v2717 = vmul.f32 %v2716, 1.442695
    %v2718 = vpow.pop %v2717
    %v2719 = vadd.f32 %v2718, 1.0
    %v2720 = vrcp.pop %v2719
    %v2721 = vmul.f32 1.0, %v2720
    %v2722 = vtanh.pop %v2708
    %v2723 = vxor.u32 %v2709, 2147483648
    %v2724 = vmul.f32 %v2723, 1.442695
    %v2725 = vpow.pop %v2724
    %v2726 = vadd.f32 %v2725, 1.0
    %v2727 = vrcp.pop %v2726
    %v2728 = vmul.f32 1.0, %v2727
    %v2729 = vmul.f32 %v2721, %v2615
    %v2730 = vmul.f32 %v2715, %v2722
    %v2731 = vadd.f32 %v2729, %v2730
    %v2732 = vtanh.pop %v2731
    %v2733 = vmul.f32 %v2728, %v2732
    %v2734 = vpack.c.bf16 %v2733, %v2733
    %2735 = vst [vmem:[%s1168] sm:$0xf] %v2734
    %v2736 = vld [vmem:[%s1172] sm:$0xff]
    %v2737 = vld [vmem:[%s1172 + $0x8] sm:$0xff]
    %v2738 = vld [vmem:[%s1172 + $0x10] sm:$0xff]
    %v2739 = vld [vmem:[%s1172 + $0x18] sm:$0xff]
    %2740 = vmatprep.subr.bf16.mxu0 %v2357
    %2741 = vmatpush1.bf16.msra.mxu0 %v2356
    %2742 = vmatprep.subr.bf16.mxu0 %v2353
    %2743 = vmatpush1.bf16.msra.mxu0 %v2352
    %2744 = vmatprep.subr.bf16.mxu0 %v2349
    %2745 = vmatpush1.bf16.msra.mxu0 %v2348
    %2746 = vmatprep.subr.bf16.mxu0 %v2345
    %2747 = vmatpush1.bf16.msra.mxu0 %v2344
    %2748 = vmatprep.subr.bf16.mxu0 %v2341
    %2749 = vmatpush1.bf16.msra.mxu0 %v2340
    %2750 = vmatprep.subr.bf16.mxu0 %v2337
    %2751 = vmatpush1.bf16.msra.mxu0 %v2336
    %2752 = vmatprep.subr.bf16.mxu0 %v2333
    %2753 = vmatpush1.bf16.msra.mxu0 %v2332
    %2754 = vmatprep.subr.bf16.mxu0 %v2329
    %2755 = vmatpush1.bf16.msra.mxu0 %v2328
    %2756 = vmatprep.subr.bf16.mxu0 0
    %2757 = vmatpush2.bf16.msra.mxu0 0
    %2758 = vmatprep.subr.bf16.mxu0 0
    %2759 = vmatpush2.bf16.msra.mxu0 0
    %2760 = vmatprep.subr.bf16.mxu0 0
    %2761 = vmatpush2.bf16.msra.mxu0 0
    %2762 = vmatprep.subr.bf16.mxu0 0
    %2763 = vmatpush2.bf16.msra.mxu0 0
    %2764 = vmatprep.subr.bf16.mxu0 0
    %2765 = vmatpush2.bf16.msra.mxu0 0
    %2766 = vmatprep.subr.bf16.mxu0 0
    %2767 = vmatpush2.bf16.msra.mxu0 0
    %2768 = vmatprep.subr.bf16.mxu0 0
    %2769 = vmatpush2.bf16.msra.mxu0 0
    %2770 = vmatprep.subr.bf16.mxu0 0
    %2771 = vmatpush2.bf16.msra.mxu0 0
    %2772 = vmatprep.mubr.bf16.mxu0 0
    %2773 = vmatmul.mubr.bf16.gmra.mxu0 %v2734
    %v2774 = vpop.f32.mrf.mxu0
    %v2775 = vadd.f32 0.0, %v2774
    %v2776 = vpop.f32.mrf.mxu0
    %v2777 = vadd.f32 0.0, %v2776
    %v2778 = vpop.f32.mrf.mxu0
    %v2779 = vpop.f32.mrf.mxu0
    %2780 = vdwg.mxu0
    %2781 = vmatprep.subr.bf16.mxu0 %v2359
    %2782 = vmatpush1.bf16.msra.mxu0 %v2358
    %2783 = vmatprep.subr.bf16.mxu0 %v2355
    %2784 = vmatpush1.bf16.msra.mxu0 %v2354
    %2785 = vmatprep.subr.bf16.mxu0 %v2351
    %2786 = vmatpush1.bf16.msra.mxu0 %v2350
    %2787 = vmatprep.subr.bf16.mxu0 %v2347
    %2788 = vmatpush1.bf16.msra.mxu0 %v2346
    %2789 = vmatprep.subr.bf16.mxu0 %v2343
    %2790 = vmatpush1.bf16.msra.mxu0 %v2342
    %2791 = vmatprep.subr.bf16.mxu0 %v2339
    %2792 = vmatpush1.bf16.msra.mxu0 %v2338
    %2793 = vmatprep.subr.bf16.mxu0 %v2335
    %2794 = vmatpush1.bf16.msra.mxu0 %v2334
    %2795 = vmatprep.subr.bf16.mxu0 %v2331
    %2796 = vmatpush1.bf16.msra.mxu0 %v2330
    %2797 = vmatprep.subr.bf16.mxu0 0
    %2798 = vmatpush2.bf16.msra.mxu0 0
    %2799 = vmatprep.subr.bf16.mxu0 0
    %2800 = vmatpush2.bf16.msra.mxu0 0
    %2801 = vmatprep.subr.bf16.mxu0 0
    %2802 = vmatpush2.bf16.msra.mxu0 0
    %2803 = vmatprep.subr.bf16.mxu0 0
    %2804 = vmatpush2.bf16.msra.mxu0 0
    %2805 = vmatprep.subr.bf16.mxu0 0
    %2806 = vmatpush2.bf16.msra.mxu0 0
    %2807 = vmatprep.subr.bf16.mxu0 0
    %2808 = vmatpush2.bf16.msra.mxu0 0
    %2809 = vmatprep.subr.bf16.mxu0 0
    %2810 = vmatpush2.bf16.msra.mxu0 0
    %2811 = vmatprep.subr.bf16.mxu0 0
    %2812 = vmatpush2.bf16.msra.mxu0 0
    %2813 = vmatprep.mubr.bf16.mxu0 0
    %2814 = vmatmul.mubr.bf16.gmra.mxu0 %v2734
    %v2815 = vpop.f32.mrf.mxu0
    %v2816 = vadd.f32 0.0, %v2815
    %v2817 = vpop.f32.mrf.mxu0
    %v2818 = vadd.f32 0.0, %v2817
    %v2819 = vpop.f32.mrf.mxu0
    %v2820 = vpop.f32.mrf.mxu0
    %2821 = vdwg.mxu0
    %v2822 = vadd.f32 %v2736, %v2775
    %v2823 = vadd.f32 %v2737, %v2777
    %v2824 = vadd.f32 %v2738, %v2816
    %v2825 = vadd.f32 %v2739, %v2818
    %v2826 = vxor.u32 %v2822, 2147483648
    %v2827 = vmul.f32 %v2826, 1.442695
    %v2828 = vpow.pop %v2827
    %v2829 = vadd.f32 %v2828, 1.0
    %v2830 = vrcp.pop %v2829
    %v2831 = vmul.f32 1.0, %v2830
    %v2832 = vxor.u32 %v2823, 2147483648
    %v2833 = vmul.f32 %v2832, 1.442695
    %v2834 = vpow.pop %v2833
    %v2835 = vadd.f32 %v2834, 1.0
    %v2836 = vrcp.pop %v2835
    %v2837 = vmul.f32 1.0, %v2836
    %v2838 = vtanh.pop %v2824
    %v2839 = vxor.u32 %v2825, 2147483648
    %v2840 = vmul.f32 %v2839, 1.442695
    %v2841 = vpow.pop %v2840
    %v2842 = vadd.f32 %v2841, 1.0
    %v2843 = vrcp.pop %v2842
    %v2844 = vmul.f32 1.0, %v2843
    %v2845 = vmul.f32 %v2837, %v2731
    %v2846 = vmul.f32 %v2831, %v2838
    %v2847 = vadd.f32 %v2845, %v2846
    %v2848 = vtanh.pop %v2847
    %v2849 = vmul.f32 %v2844, %v2848
    %v2850 = vpack.c.bf16 %v2849, %v2849
    %2851 = vst [vmem:[%s1288] sm:$0xf] %v2850
    %v2852 = vld [vmem:[%s1292] sm:$0xff]
    %v2853 = vld [vmem:[%s1292 + $0x8] sm:$0xff]
    %v2854 = vld [vmem:[%s1292 + $0x10] sm:$0xff]
    %v2855 = vld [vmem:[%s1292 + $0x18] sm:$0xff]
    %2856 = vmatprep.subr.bf16.mxu0 %v2357
    %2857 = vmatpush1.bf16.msra.mxu0 %v2356
    %2858 = vmatprep.subr.bf16.mxu0 %v2353
    %2859 = vmatpush1.bf16.msra.mxu0 %v2352
    %2860 = vmatprep.subr.bf16.mxu0 %v2349
    %2861 = vmatpush1.bf16.msra.mxu0 %v2348
    %2862 = vmatprep.subr.bf16.mxu0 %v2345
    %2863 = vmatpush1.bf16.msra.mxu0 %v2344
    %2864 = vmatprep.subr.bf16.mxu0 %v2341
    %2865 = vmatpush1.bf16.msra.mxu0 %v2340
    %2866 = vmatprep.subr.bf16.mxu0 %v2337
    %2867 = vmatpush1.bf16.msra.mxu0 %v2336
    %2868 = vmatprep.subr.bf16.mxu0 %v2333
    %2869 = vmatpush1.bf16.msra.mxu0 %v2332
    %2870 = vmatprep.subr.bf16.mxu0 %v2329
    %2871 = vmatpush1.bf16.msra.mxu0 %v2328
    %2872 = vmatprep.subr.bf16.mxu0 0
    %2873 = vmatpush2.bf16.msra.mxu0 0
    %2874 = vmatprep.subr.bf16.mxu0 0
    %2875 = vmatpush2.bf16.msra.mxu0 0
    %2876 = vmatprep.subr.bf16.mxu0 0
    %2877 = vmatpush2.bf16.msra.mxu0 0
    %2878 = vmatprep.subr.bf16.mxu0 0
    %2879 = vmatpush2.bf16.msra.mxu0 0
    %2880 = vmatprep.subr.bf16.mxu0 0
    %2881 = vmatpush2.bf16.msra.mxu0 0
    %2882 = vmatprep.subr.bf16.mxu0 0
    %2883 = vmatpush2.bf16.msra.mxu0 0
    %2884 = vmatprep.subr.bf16.mxu0 0
    %2885 = vmatpush2.bf16.msra.mxu0 0
    %2886 = vmatprep.subr.bf16.mxu0 0
    %2887 = vmatpush2.bf16.msra.mxu0 0
    %2888 = vmatprep.mubr.bf16.mxu0 0
    %2889 = vmatmul.mubr.bf16.gmra.mxu0 %v2850
    %v2890 = vpop.f32.mrf.mxu0
    %v2891 = vadd.f32 0.0, %v2890
    %v2892 = vpop.f32.mrf.mxu0
    %v2893 = vadd.f32 0.0, %v2892
    %v2894 = vpop.f32.mrf.mxu0
    %v2895 = vpop.f32.mrf.mxu0
    %2896 = vdwg.mxu0
    %2897 = vmatprep.subr.bf16.mxu0 %v2359
    %2898 = vmatpush1.bf16.msra.mxu0 %v2358
    %2899 = vmatprep.subr.bf16.mxu0 %v2355
    %2900 = vmatpush1.bf16.msra.mxu0 %v2354
    %2901 = vmatprep.subr.bf16.mxu0 %v2351
    %2902 = vmatpush1.bf16.msra.mxu0 %v2350
    %2903 = vmatprep.subr.bf16.mxu0 %v2347
    %2904 = vmatpush1.bf16.msra.mxu0 %v2346
    %2905 = vmatprep.subr.bf16.mxu0 %v2343
    %2906 = vmatpush1.bf16.msra.mxu0 %v2342
    %2907 = vmatprep.subr.bf16.mxu0 %v2339
    %2908 = vmatpush1.bf16.msra.mxu0 %v2338
    %2909 = vmatprep.subr.bf16.mxu0 %v2335
    %2910 = vmatpush1.bf16.msra.mxu0 %v2334
    %2911 = vmatprep.subr.bf16.mxu0 %v2331
    %2912 = vmatpush1.bf16.msra.mxu0 %v2330
    %2913 = vmatprep.subr.bf16.mxu0 0
    %2914 = vmatpush2.bf16.msra.mxu0 0
    %2915 = vmatprep.subr.bf16.mxu0 0
    %2916 = vmatpush2.bf16.msra.mxu0 0
    %2917 = vmatprep.subr.bf16.mxu0 0
    %2918 = vmatpush2.bf16.msra.mxu0 0
    %2919 = vmatprep.subr.bf16.mxu0 0
    %2920 = vmatpush2.bf16.msra.mxu0 0
    %2921 = vmatprep.subr.bf16.mxu0 0
    %2922 = vmatpush2.bf16.msra.mxu0 0
    %2923 = vmatprep.subr.bf16.mxu0 0
    %2924 = vmatpush2.bf16.msra.mxu0 0
    %2925 = vmatprep.subr.bf16.mxu0 0
    %2926 = vmatpush2.bf16.msra.mxu0 0
    %2927 = vmatprep.subr.bf16.mxu0 0
    %2928 = vmatpush2.bf16.msra.mxu0 0
    %2929 = vmatprep.mubr.bf16.mxu0 0
    %2930 = vmatmul.mubr.bf16.gmra.mxu0 %v2850
    %v2931 = vpop.f32.mrf.mxu0
    %v2932 = vadd.f32 0.0, %v2931
    %v2933 = vpop.f32.mrf.mxu0
    %v2934 = vadd.f32 0.0, %v2933
    %v2935 = vpop.f32.mrf.mxu0
    %v2936 = vpop.f32.mrf.mxu0
    %2937 = vdwg.mxu0
    %v2938 = vadd.f32 %v2852, %v2891
    %v2939 = vadd.f32 %v2853, %v2893
    %v2940 = vadd.f32 %v2854, %v2932
    %v2941 = vadd.f32 %v2855, %v2934
    %v2942 = vxor.u32 %v2938, 2147483648
    %v2943 = vmul.f32 %v2942, 1.442695
    %v2944 = vpow.pop %v2943
    %v2945 = vadd.f32 %v2944, 1.0
    %v2946 = vrcp.pop %v2945
    %v2947 = vmul.f32 1.0, %v2946
    %v2948 = vxor.u32 %v2939, 2147483648
    %v2949 = vmul.f32 %v2948, 1.442695
    %v2950 = vpow.pop %v2949
    %v2951 = vadd.f32 %v2950, 1.0
    %v2952 = vrcp.pop %v2951
    %v2953 = vmul.f32 1.0, %v2952
    %v2954 = vtanh.pop %v2940
    %v2955 = vxor.u32 %v2941, 2147483648
    %v2956 = vmul.f32 %v2955, 1.442695
    %v2957 = vpow.pop %v2956
    %v2958 = vadd.f32 %v2957, 1.0
    %v2959 = vrcp.pop %v2958
    %v2960 = vmul.f32 1.0, %v2959
    %v2961 = vmul.f32 %v2953, %v2847
    %v2962 = vmul.f32 %v2947, %v2954
    %v2963 = vadd.f32 %v2961, %v2962
    %v2964 = vtanh.pop %v2963
    %v2965 = vmul.f32 %v2960, %v2964
    %v2966 = vpack.c.bf16 %v2965, %v2965
    %2967 = vst [vmem:[%s1408] sm:$0xf] %v2966
    %v2968 = vld [vmem:[%s1412] sm:$0xff]
    %v2969 = vld [vmem:[%s1412 + $0x8] sm:$0xff]
    %v2970 = vld [vmem:[%s1412 + $0x10] sm:$0xff]
    %v2971 = vld [vmem:[%s1412 + $0x18] sm:$0xff]
    %2972 = vmatprep.subr.bf16.mxu0 %v2357
    %2973 = vmatpush1.bf16.msra.mxu0 %v2356
    %2974 = vmatprep.subr.bf16.mxu0 %v2353
    %2975 = vmatpush1.bf16.msra.mxu0 %v2352
    %2976 = vmatprep.subr.bf16.mxu0 %v2349
    %2977 = vmatpush1.bf16.msra.mxu0 %v2348
    %2978 = vmatprep.subr.bf16.mxu0 %v2345
    %2979 = vmatpush1.bf16.msra.mxu0 %v2344
    %2980 = vmatprep.subr.bf16.mxu0 %v2341
    %2981 = vmatpush1.bf16.msra.mxu0 %v2340
    %2982 = vmatprep.subr.bf16.mxu0 %v2337
    %2983 = vmatpush1.bf16.msra.mxu0 %v2336
    %2984 = vmatprep.subr.bf16.mxu0 %v2333
    %2985 = vmatpush1.bf16.msra.mxu0 %v2332
    %2986 = vmatprep.subr.bf16.mxu0 %v2329
    %2987 = vmatpush1.bf16.msra.mxu0 %v2328
    %2988 = vmatprep.subr.bf16.mxu0 0
    %2989 = vmatpush2.bf16.msra.mxu0 0
    %2990 = vmatprep.subr.bf16.mxu0 0
    %2991 = vmatpush2.bf16.msra.mxu0 0
    %2992 = vmatprep.subr.bf16.mxu0 0
    %2993 = vmatpush2.bf16.msra.mxu0 0
    %2994 = vmatprep.subr.bf16.mxu0 0
    %2995 = vmatpush2.bf16.msra.mxu0 0
    %2996 = vmatprep.subr.bf16.mxu0 0
    %2997 = vmatpush2.bf16.msra.mxu0 0
    %2998 = vmatprep.subr.bf16.mxu0 0
    %2999 = vmatpush2.bf16.msra.mxu0 0
    %3000 = vmatprep.subr.bf16.mxu0 0
    %3001 = vmatpush2.bf16.msra.mxu0 0
    %3002 = vmatprep.subr.bf16.mxu0 0
    %3003 = vmatpush2.bf16.msra.mxu0 0
    %3004 = vmatprep.mubr.bf16.mxu0 0
    %3005 = vmatmul.mubr.bf16.gmra.mxu0 %v2966
    %v3006 = vpop.f32.mrf.mxu0
    %v3007 = vadd.f32 0.0, %v3006
    %v3008 = vpop.f32.mrf.mxu0
    %v3009 = vadd.f32 0.0, %v3008
    %v3010 = vpop.f32.mrf.mxu0
    %v3011 = vpop.f32.mrf.mxu0
    %3012 = vdwg.mxu0
    %3013 = vmatprep.subr.bf16.mxu0 %v2359
    %3014 = vmatpush1.bf16.msra.mxu0 %v2358
    %3015 = vmatprep.subr.bf16.mxu0 %v2355
    %3016 = vmatpush1.bf16.msra.mxu0 %v2354
    %3017 = vmatprep.subr.bf16.mxu0 %v2351
    %3018 = vmatpush1.bf16.msra.mxu0 %v2350
    %3019 = vmatprep.subr.bf16.mxu0 %v2347
    %3020 = vmatpush1.bf16.msra.mxu0 %v2346
    %3021 = vmatprep.subr.bf16.mxu0 %v2343
    %3022 = vmatpush1.bf16.msra.mxu0 %v2342
    %3023 = vmatprep.subr.bf16.mxu0 %v2339
    %3024 = vmatpush1.bf16.msra.mxu0 %v2338
    %3025 = vmatprep.subr.bf16.mxu0 %v2335
    %3026 = vmatpush1.bf16.msra.mxu0 %v2334
    %3027 = vmatprep.subr.bf16.mxu0 %v2331
    %3028 = vmatpush1.bf16.msra.mxu0 %v2330
    %3029 = vmatprep.subr.bf16.mxu0 0
    %3030 = vmatpush2.bf16.msra.mxu0 0
    %3031 = vmatprep.subr.bf16.mxu0 0
    %3032 = vmatpush2.bf16.msra.mxu0 0
    %3033 = vmatprep.subr.bf16.mxu0 0
    %3034 = vmatpush2.bf16.msra.mxu0 0
    %3035 = vmatprep.subr.bf16.mxu0 0
    %3036 = vmatpush2.bf16.msra.mxu0 0
    %3037 = vmatprep.subr.bf16.mxu0 0
    %3038 = vmatpush2.bf16.msra.mxu0 0
    %3039 = vmatprep.subr.bf16.mxu0 0
    %3040 = vmatpush2.bf16.msra.mxu0 0
    %3041 = vmatprep.subr.bf16.mxu0 0
    %3042 = vmatpush2.bf16.msra.mxu0 0
    %3043 = vmatprep.subr.bf16.mxu0 0
    %3044 = vmatpush2.bf16.msra.mxu0 0
    %3045 = vmatprep.mubr.bf16.mxu0 0
    %3046 = vmatmul.mubr.bf16.gmra.mxu0 %v2966
    %v3047 = vpop.f32.mrf.mxu0
    %v3048 = vadd.f32 0.0, %v3047
    %v3049 = vpop.f32.mrf.mxu0
    %v3050 = vadd.f32 0.0, %v3049
    %v3051 = vpop.f32.mrf.mxu0
    %v3052 = vpop.f32.mrf.mxu0
    %3053 = vdwg.mxu0
    %v3054 = vadd.f32 %v2968, %v3007
    %v3055 = vadd.f32 %v2969, %v3009
    %v3056 = vadd.f32 %v2970, %v3048
    %v3057 = vadd.f32 %v2971, %v3050
    %v3058 = vxor.u32 %v3054, 2147483648
    %v3059 = vmul.f32 %v3058, 1.442695
    %v3060 = vpow.pop %v3059
    %v3061 = vadd.f32 %v3060, 1.0
    %v3062 = vrcp.pop %v3061
    %v3063 = vmul.f32 1.0, %v3062
    %v3064 = vxor.u32 %v3055, 2147483648
    %v3065 = vmul.f32 %v3064, 1.442695
    %v3066 = vpow.pop %v3065
    %v3067 = vadd.f32 %v3066, 1.0
    %v3068 = vrcp.pop %v3067
    %v3069 = vmul.f32 1.0, %v3068
    %v3070 = vtanh.pop %v3056
    %v3071 = vxor.u32 %v3057, 2147483648
    %v3072 = vmul.f32 %v3071, 1.442695
    %v3073 = vpow.pop %v3072
    %v3074 = vadd.f32 %v3073, 1.0
    %v3075 = vrcp.pop %v3074
    %v3076 = vmul.f32 1.0, %v3075
    %v3077 = vmul.f32 %v3069, %v2963
    %v3078 = vmul.f32 %v3063, %v3070
    %v3079 = vadd.f32 %v3077, %v3078
    %v3080 = vtanh.pop %v3079
    %v3081 = vmul.f32 %v3076, %v3080
    %v3082 = vpack.c.bf16 %v3081, %v3081
    %3083 = vst [vmem:[%s1528] sm:$0xf] %v3082
    %v3084 = vld [vmem:[%s1532] sm:$0xff]
    %v3085 = vld [vmem:[%s1532 + $0x8] sm:$0xff]
    %v3086 = vld [vmem:[%s1532 + $0x10] sm:$0xff]
    %v3087 = vld [vmem:[%s1532 + $0x18] sm:$0xff]
    %3088 = vmatprep.subr.bf16.mxu0 %v2357
    %3089 = vmatpush1.bf16.msra.mxu0 %v2356
    %3090 = vmatprep.subr.bf16.mxu0 %v2353
    %3091 = vmatpush1.bf16.msra.mxu0 %v2352
    %3092 = vmatprep.subr.bf16.mxu0 %v2349
    %3093 = vmatpush1.bf16.msra.mxu0 %v2348
    %3094 = vmatprep.subr.bf16.mxu0 %v2345
    %3095 = vmatpush1.bf16.msra.mxu0 %v2344
    %3096 = vmatprep.subr.bf16.mxu0 %v2341
    %3097 = vmatpush1.bf16.msra.mxu0 %v2340
    %3098 = vmatprep.subr.bf16.mxu0 %v2337
    %3099 = vmatpush1.bf16.msra.mxu0 %v2336
    %3100 = vmatprep.subr.bf16.mxu0 %v2333
    %3101 = vmatpush1.bf16.msra.mxu0 %v2332
    %3102 = vmatprep.subr.bf16.mxu0 %v2329
    %3103 = vmatpush1.bf16.msra.mxu0 %v2328
    %3104 = vmatprep.subr.bf16.mxu0 0
    %3105 = vmatpush2.bf16.msra.mxu0 0
    %3106 = vmatprep.subr.bf16.mxu0 0
    %3107 = vmatpush2.bf16.msra.mxu0 0
    %3108 = vmatprep.subr.bf16.mxu0 0
    %3109 = vmatpush2.bf16.msra.mxu0 0
    %3110 = vmatprep.subr.bf16.mxu0 0
    %3111 = vmatpush2.bf16.msra.mxu0 0
    %3112 = vmatprep.subr.bf16.mxu0 0
    %3113 = vmatpush2.bf16.msra.mxu0 0
    %3114 = vmatprep.subr.bf16.mxu0 0
    %3115 = vmatpush2.bf16.msra.mxu0 0
    %3116 = vmatprep.subr.bf16.mxu0 0
    %3117 = vmatpush2.bf16.msra.mxu0 0
    %3118 = vmatprep.subr.bf16.mxu0 0
    %3119 = vmatpush2.bf16.msra.mxu0 0
    %3120 = vmatprep.mubr.bf16.mxu0 0
    %3121 = vmatmul.mubr.bf16.gmra.mxu0 %v3082
    %v3122 = vpop.f32.mrf.mxu0
    %v3123 = vadd.f32 0.0, %v3122
    %v3124 = vpop.f32.mrf.mxu0
    %v3125 = vadd.f32 0.0, %v3124
    %v3126 = vpop.f32.mrf.mxu0
    %v3127 = vpop.f32.mrf.mxu0
    %3128 = vdwg.mxu0
    %3129 = vmatprep.subr.bf16.mxu0 %v2359
    %3130 = vmatpush1.bf16.msra.mxu0 %v2358
    %3131 = vmatprep.subr.bf16.mxu0 %v2355
    %3132 = vmatpush1.bf16.msra.mxu0 %v2354
    %3133 = vmatprep.subr.bf16.mxu0 %v2351
    %3134 = vmatpush1.bf16.msra.mxu0 %v2350
    %3135 = vmatprep.subr.bf16.mxu0 %v2347
    %3136 = vmatpush1.bf16.msra.mxu0 %v2346
    %3137 = vmatprep.subr.bf16.mxu0 %v2343
    %3138 = vmatpush1.bf16.msra.mxu0 %v2342
    %3139 = vmatprep.subr.bf16.mxu0 %v2339
    %3140 = vmatpush1.bf16.msra.mxu0 %v2338
    %3141 = vmatprep.subr.bf16.mxu0 %v2335
    %3142 = vmatpush1.bf16.msra.mxu0 %v2334
    %3143 = vmatprep.subr.bf16.mxu0 %v2331
    %3144 = vmatpush1.bf16.msra.mxu0 %v2330
    %3145 = vmatprep.subr.bf16.mxu0 0
    %3146 = vmatpush2.bf16.msra.mxu0 0
    %3147 = vmatprep.subr.bf16.mxu0 0
    %3148 = vmatpush2.bf16.msra.mxu0 0
    %3149 = vmatprep.subr.bf16.mxu0 0
    %3150 = vmatpush2.bf16.msra.mxu0 0
    %3151 = vmatprep.subr.bf16.mxu0 0
    %3152 = vmatpush2.bf16.msra.mxu0 0
    %3153 = vmatprep.subr.bf16.mxu0 0
    %3154 = vmatpush2.bf16.msra.mxu0 0
    %3155 = vmatprep.subr.bf16.mxu0 0
    %3156 = vmatpush2.bf16.msra.mxu0 0
    %3157 = vmatprep.subr.bf16.mxu0 0
    %3158 = vmatpush2.bf16.msra.mxu0 0
    %3159 = vmatprep.subr.bf16.mxu0 0
    %3160 = vmatpush2.bf16.msra.mxu0 0
    %3161 = vmatprep.mubr.bf16.mxu0 0
    %3162 = vmatmul.mubr.bf16.gmra.mxu0 %v3082
    %v3163 = vpop.f32.mrf.mxu0
    %v3164 = vadd.f32 0.0, %v3163
    %v3165 = vpop.f32.mrf.mxu0
    %v3166 = vadd.f32 0.0, %v3165
    %v3167 = vpop.f32.mrf.mxu0
    %v3168 = vpop.f32.mrf.mxu0
    %3169 = vdwg.mxu0
    %v3170 = vadd.f32 %v3084, %v3123
    %v3171 = vadd.f32 %v3085, %v3125
    %v3172 = vadd.f32 %v3086, %v3164
    %v3173 = vadd.f32 %v3087, %v3166
    %v3174 = vxor.u32 %v3170, 2147483648
    %v3175 = vmul.f32 %v3174, 1.442695
    %v3176 = vpow.pop %v3175
    %v3177 = vadd.f32 %v3176, 1.0
    %v3178 = vrcp.pop %v3177
    %v3179 = vmul.f32 1.0, %v3178
    %v3180 = vxor.u32 %v3171, 2147483648
    %v3181 = vmul.f32 %v3180, 1.442695
    %v3182 = vpow.pop %v3181
    %v3183 = vadd.f32 %v3182, 1.0
    %v3184 = vrcp.pop %v3183
    %v3185 = vmul.f32 1.0, %v3184
    %v3186 = vtanh.pop %v3172
    %v3187 = vxor.u32 %v3173, 2147483648
    %v3188 = vmul.f32 %v3187, 1.442695
    %v3189 = vpow.pop %v3188
    %v3190 = vadd.f32 %v3189, 1.0
    %v3191 = vrcp.pop %v3190
    %v3192 = vmul.f32 1.0, %v3191
    %v3193 = vmul.f32 %v3185, %v3079
    %v3194 = vmul.f32 %v3179, %v3186
    %v3195 = vadd.f32 %v3193, %v3194
    %v3196 = vtanh.pop %v3195
    %v3197 = vmul.f32 %v3192, %v3196
    %v3198 = vpack.c.bf16 %v3197, %v3197
    %3199 = vst [vmem:[%s1648] sm:$0xf] %v3198
    %v3200 = vld [vmem:[%s1652] sm:$0xff]
    %v3201 = vld [vmem:[%s1652 + $0x8] sm:$0xff]
    %v3202 = vld [vmem:[%s1652 + $0x10] sm:$0xff]
    %v3203 = vld [vmem:[%s1652 + $0x18] sm:$0xff]
    %3204 = vmatprep.subr.bf16.mxu0 %v2357
    %3205 = vmatpush1.bf16.msra.mxu0 %v2356
    %3206 = vmatprep.subr.bf16.mxu0 %v2353
    %3207 = vmatpush1.bf16.msra.mxu0 %v2352
    %3208 = vmatprep.subr.bf16.mxu0 %v2349
    %3209 = vmatpush1.bf16.msra.mxu0 %v2348
    %3210 = vmatprep.subr.bf16.mxu0 %v2345
    %3211 = vmatpush1.bf16.msra.mxu0 %v2344
    %3212 = vmatprep.subr.bf16.mxu0 %v2341
    %3213 = vmatpush1.bf16.msra.mxu0 %v2340
    %3214 = vmatprep.subr.bf16.mxu0 %v2337
    %3215 = vmatpush1.bf16.msra.mxu0 %v2336
    %3216 = vmatprep.subr.bf16.mxu0 %v2333
    %3217 = vmatpush1.bf16.msra.mxu0 %v2332
    %3218 = vmatprep.subr.bf16.mxu0 %v2329
    %3219 = vmatpush1.bf16.msra.mxu0 %v2328
    %3220 = vmatprep.subr.bf16.mxu0 0
    %3221 = vmatpush2.bf16.msra.mxu0 0
    %3222 = vmatprep.subr.bf16.mxu0 0
    %3223 = vmatpush2.bf16.msra.mxu0 0
    %3224 = vmatprep.subr.bf16.mxu0 0
    %3225 = vmatpush2.bf16.msra.mxu0 0
    %3226 = vmatprep.subr.bf16.mxu0 0
    %3227 = vmatpush2.bf16.msra.mxu0 0
    %3228 = vmatprep.subr.bf16.mxu0 0
    %3229 = vmatpush2.bf16.msra.mxu0 0
    %3230 = vmatprep.subr.bf16.mxu0 0
    %3231 = vmatpush2.bf16.msra.mxu0 0
    %3232 = vmatprep.subr.bf16.mxu0 0
    %3233 = vmatpush2.bf16.msra.mxu0 0
    %3234 = vmatprep.subr.bf16.mxu0 0
    %3235 = vmatpush2.bf16.msra.mxu0 0
    %3236 = vmatprep.mubr.bf16.mxu0 0
    %3237 = vmatmul.mubr.bf16.gmra.mxu0 %v3198
    %v3238 = vpop.f32.mrf.mxu0
    %v3239 = vadd.f32 0.0, %v3238
    %v3240 = vpop.f32.mrf.mxu0
    %v3241 = vadd.f32 0.0, %v3240
    %v3242 = vpop.f32.mrf.mxu0
    %v3243 = vpop.f32.mrf.mxu0
    %3244 = vdwg.mxu0
    %3245 = vmatprep.subr.bf16.mxu0 %v2359
    %3246 = vmatpush1.bf16.msra.mxu0 %v2358
    %3247 = vmatprep.subr.bf16.mxu0 %v2355
    %3248 = vmatpush1.bf16.msra.mxu0 %v2354
    %3249 = vmatprep.subr.bf16.mxu0 %v2351
    %3250 = vmatpush1.bf16.msra.mxu0 %v2350
    %3251 = vmatprep.subr.bf16.mxu0 %v2347
    %3252 = vmatpush1.bf16.msra.mxu0 %v2346
    %3253 = vmatprep.subr.bf16.mxu0 %v2343
    %3254 = vmatpush1.bf16.msra.mxu0 %v2342
    %3255 = vmatprep.subr.bf16.mxu0 %v2339
    %3256 = vmatpush1.bf16.msra.mxu0 %v2338
    %3257 = vmatprep.subr.bf16.mxu0 %v2335
    %3258 = vmatpush1.bf16.msra.mxu0 %v2334
    %3259 = vmatprep.subr.bf16.mxu0 %v2331
    %3260 = vmatpush1.bf16.msra.mxu0 %v2330
    %3261 = vmatprep.subr.bf16.mxu0 0
    %3262 = vmatpush2.bf16.msra.mxu0 0
    %3263 = vmatprep.subr.bf16.mxu0 0
    %3264 = vmatpush2.bf16.msra.mxu0 0
    %3265 = vmatprep.subr.bf16.mxu0 0
    %3266 = vmatpush2.bf16.msra.mxu0 0
    %3267 = vmatprep.subr.bf16.mxu0 0
    %3268 = vmatpush2.bf16.msra.mxu0 0
    %3269 = vmatprep.subr.bf16.mxu0 0
    %3270 = vmatpush2.bf16.msra.mxu0 0
    %3271 = vmatprep.subr.bf16.mxu0 0
    %3272 = vmatpush2.bf16.msra.mxu0 0
    %3273 = vmatprep.subr.bf16.mxu0 0
    %3274 = vmatpush2.bf16.msra.mxu0 0
    %3275 = vmatprep.subr.bf16.mxu0 0
    %3276 = vmatpush2.bf16.msra.mxu0 0
    %3277 = vmatprep.mubr.bf16.mxu0 0
    %3278 = vmatmul.mubr.bf16.gmra.mxu0 %v3198
    %v3279 = vpop.f32.mrf.mxu0
    %v3280 = vadd.f32 0.0, %v3279
    %v3281 = vpop.f32.mrf.mxu0
    %v3282 = vadd.f32 0.0, %v3281
    %v3283 = vpop.f32.mrf.mxu0
    %v3284 = vpop.f32.mrf.mxu0
    %3285 = vdwg.mxu0
    %v3286 = vadd.f32 %v3200, %v3239
    %v3287 = vadd.f32 %v3201, %v3241
    %v3288 = vadd.f32 %v3202, %v3280
    %v3289 = vadd.f32 %v3203, %v3282
    %v3290 = vxor.u32 %v3286, 2147483648
    %v3291 = vmul.f32 %v3290, 1.442695
    %v3292 = vpow.pop %v3291
    %v3293 = vadd.f32 %v3292, 1.0
    %v3294 = vrcp.pop %v3293
    %v3295 = vmul.f32 1.0, %v3294
    %v3296 = vxor.u32 %v3287, 2147483648
    %v3297 = vmul.f32 %v3296, 1.442695
    %v3298 = vpow.pop %v3297
    %v3299 = vadd.f32 %v3298, 1.0
    %v3300 = vrcp.pop %v3299
    %v3301 = vmul.f32 1.0, %v3300
    %v3302 = vtanh.pop %v3288
    %v3303 = vxor.u32 %v3289, 2147483648
    %v3304 = vmul.f32 %v3303, 1.442695
    %v3305 = vpow.pop %v3304
    %v3306 = vadd.f32 %v3305, 1.0
    %v3307 = vrcp.pop %v3306
    %v3308 = vmul.f32 1.0, %v3307
    %v3309 = vmul.f32 %v3301, %v3195
    %v3310 = vmul.f32 %v3295, %v3302
    %v3311 = vadd.f32 %v3309, %v3310
    %v3312 = vtanh.pop %v3311
    %v3313 = vmul.f32 %v3308, %v3312
    %v3314 = vpack.c.bf16 %v3313, %v3313
    %3315 = vst [vmem:[%s1768] sm:$0xf] %v3314
    %s3316 = scalar_lea.vmem %s11, 8
    %3317 = vst [vmem:[%s3316] sm:$0xff] %v3313
    %s3318 = scalar_lea.vmem %s12, 8
    %3319 = vst [vmem:[%s3318] sm:$0xff] %v3311
    %v3320 = vld [vmem:[#allocation4] sm:$0xf]
    %v3321 = vld [vmem:[#allocation4 + $0x4] sm:$0xf]
    %v3322 = vld [vmem:[#allocation4 + $0x8] sm:$0xf]
    %v3323 = vld [vmem:[#allocation4 + $0xc] sm:$0xf]
    %v3324 = vld [vmem:[#allocation4 + $0x10] sm:$0xf]
    %v3325 = vld [vmem:[#allocation4 + $0x14] sm:$0xf]
    %v3326 = vld [vmem:[#allocation4 + $0x18] sm:$0xf]
    %v3327 = vld [vmem:[#allocation4 + $0x1c] sm:$0xf]
    %v3328 = vld [vmem:[#allocation17] sm:$0xf]
    %v3329 = vld [vmem:[#allocation17 + $0x4] sm:$0xf]
    %v3330 = vld [vmem:[#allocation17 + $0x8] sm:$0xf]
    %v3331 = vld [vmem:[#allocation17 + $0xc] sm:$0xf]
    %v3332 = vld [vmem:[#allocation17 + $0x10] sm:$0xf]
    %v3333 = vld [vmem:[#allocation17 + $0x14] sm:$0xf]
    %v3334 = vld [vmem:[#allocation17 + $0x18] sm:$0xf]
    %v3335 = vld [vmem:[#allocation17 + $0x1c] sm:$0xf]
    %v3336 = vld [vmem:[#allocation17 + $0x20] sm:$0xf]
    %v3337 = vld [vmem:[#allocation17 + $0x24] sm:$0xf]
    %v3338 = vld [vmem:[#allocation17 + $0x28] sm:$0xf]
    %v3339 = vld [vmem:[#allocation17 + $0x2c] sm:$0xf]
    %v3340 = vld [vmem:[#allocation17 + $0x30] sm:$0xf]
    %v3341 = vld [vmem:[#allocation17 + $0x34] sm:$0xf]
    %v3342 = vld [vmem:[#allocation17 + $0x38] sm:$0xf]
    %v3343 = vld [vmem:[#allocation17 + $0x3c] sm:$0xf]
    %v3344 = vld [vmem:[%s9] sm:$0x1]
    %v3346 = vlaneseq
    %v3347 = vshrl.u32 %v3346, 7
    %v3348 = vsub.s32 0, %v3347
    %v3349 = vrot.slane %v3344, %v3348
    %v3359 = vunpack.c.l.b16 %v3320
    %v3360 = vunpack.c.l.b16 %v3321
    %v3361 = vunpack.c.l.b16 %v3322
    %v3362 = vunpack.c.l.b16 %v3323
    %v3363 = vunpack.c.l.b16 %v3324
    %v3364 = vunpack.c.l.b16 %v3325
    %v3365 = vunpack.c.l.b16 %v3326
    %v3366 = vunpack.c.l.b16 %v3327
    %v3367 = vpack.c.b16 %v3360, %v3359
    %v3368 = vpack.c.b16 %v3362, %v3361
    %v3369 = vpack.c.b16 %v3364, %v3363
    %v3370 = vpack.c.b16 %v3366, %v3365
    %v3391 = vunpack.c.l.b16 %v3328
    %v3392 = vunpack.c.l.b16 %v3329
    %v3393 = vunpack.c.l.b16 %v3330
    %v3394 = vunpack.c.l.b16 %v3331
    %v3395 = vunpack.c.l.b16 %v3332
    %v3396 = vunpack.c.l.b16 %v3333
    %v3397 = vunpack.c.l.b16 %v3334
    %v3398 = vunpack.c.l.b16 %v3335
    %v3399 = vunpack.c.l.b16 %v3336
    %v3400 = vunpack.c.l.b16 %v3337
    %v3401 = vunpack.c.l.b16 %v3338
    %v3402 = vunpack.c.l.b16 %v3339
    %v3403 = vunpack.c.l.b16 %v3340
    %v3404 = vunpack.c.l.b16 %v3341
    %v3405 = vunpack.c.l.b16 %v3342
    %v3406 = vunpack.c.l.b16 %v3343
    %v3407 = vpack.c.b16 %v3392, %v3391
    %v3408 = vpack.c.b16 %v3394, %v3393
    %v3409 = vpack.c.b16 %v3396, %v3395
    %v3410 = vpack.c.b16 %v3398, %v3397
    %v3411 = vpack.c.b16 %v3400, %v3399
    %v3412 = vpack.c.b16 %v3402, %v3401
    %v3413 = vpack.c.b16 %v3404, %v3403
    %v3414 = vpack.c.b16 %v3406, %v3405
    %3423 = vmatprep.subr.bf16.mxu0 0
    %3424 = vmatpush1.bf16.msra.mxu0 %v3414
    %3425 = vmatprep.subr.bf16.mxu0 0
    %3426 = vmatpush1.bf16.msra.mxu0 %v3413
    %3427 = vmatprep.subr.bf16.mxu0 0
    %3428 = vmatpush1.bf16.msra.mxu0 %v3412
    %3429 = vmatprep.subr.bf16.mxu0 0
    %3430 = vmatpush1.bf16.msra.mxu0 %v3411
    %3431 = vmatprep.subr.bf16.mxu0 0
    %3432 = vmatpush1.bf16.msra.mxu0 %v3410
    %3433 = vmatprep.subr.bf16.mxu0 0
    %3434 = vmatpush1.bf16.msra.mxu0 %v3409
    %3435 = vmatprep.subr.bf16.mxu0 0
    %3436 = vmatpush1.bf16.msra.mxu0 %v3408
    %3437 = vmatprep.subr.bf16.mxu0 0
    %3438 = vmatpush1.bf16.msra.mxu0 %v3407
    %3439 = vmatprep.subr.bf16.mxu0 0
    %3440 = vmatpush2.bf16.msra.mxu0 0
    %3441 = vmatprep.subr.bf16.mxu0 0
    %3442 = vmatpush2.bf16.msra.mxu0 0
    %3443 = vmatprep.subr.bf16.mxu0 0
    %3444 = vmatpush2.bf16.msra.mxu0 0
    %3445 = vmatprep.subr.bf16.mxu0 0
    %3446 = vmatpush2.bf16.msra.mxu0 0
    %3447 = vmatprep.subr.bf16.mxu0 0
    %3448 = vmatpush2.bf16.msra.mxu0 0
    %3449 = vmatprep.subr.bf16.mxu0 0
    %3450 = vmatpush2.bf16.msra.mxu0 0
    %3451 = vmatprep.subr.bf16.mxu0 0
    %3452 = vmatpush2.bf16.msra.mxu0 0
    %3453 = vmatprep.subr.bf16.mxu0 0
    %3454 = vmatpush2.bf16.msra.mxu0 0
    %3455 = vmatprep.mubr.bf16.mxu0 0
    %3456 = vmatmul.mubr.bf16.gmra.mxu0 %v3367
    %v3457 = vpop.f32.mrf.mxu0
    %v3458 = vadd.f32 %v3349, %v3457
    %v3459 = vpop.f32.mrf.mxu0
    %v3460 = vpop.f32.mrf.mxu0
    %v3461 = vadd.f32 %v3349, %v3460
    %v3462 = vpop.f32.mrf.mxu0
    %3463 = vmatprep.mubr.bf16.mxu0 0
    %3464 = vmatmul.mubr.bf16.gmra.mxu0 %v3368
    %v3465 = vpop.f32.mrf.mxu0
    %v3466 = vadd.f32 %v3349, %v3465
    %v3467 = vpop.f32.mrf.mxu0
    %v3468 = vpop.f32.mrf.mxu0
    %v3469 = vadd.f32 %v3349, %v3468
    %v3470 = vpop.f32.mrf.mxu0
    %3471 = vmatprep.mubr.bf16.mxu0 0
    %3472 = vmatmul.mubr.bf16.gmra.mxu0 %v3369
    %v3473 = vpop.f32.mrf.mxu0
    %v3474 = vadd.f32 %v3349, %v3473
    %v3475 = vpop.f32.mrf.mxu0
    %v3476 = vpop.f32.mrf.mxu0
    %v3477 = vadd.f32 %v3349, %v3476
    %v3478 = vpop.f32.mrf.mxu0
    %3479 = vmatprep.mubr.bf16.mxu0 0
    %3480 = vmatmul.mubr.bf16.gmra.mxu0 %v3370
    %v3481 = vpop.f32.mrf.mxu0
    %v3482 = vadd.f32 %v3349, %v3481
    %v3483 = vpop.f32.mrf.mxu0
    %v3484 = vpop.f32.mrf.mxu0
    %v3485 = vadd.f32 %v3349, %v3484
    %v3486 = vpop.f32.mrf.mxu0
    %3487 = vdwg.mxu0
    %3488 = vst [vmem:[%s10] sm:$0xff] %v3458
    %3489 = vst [vmem:[%s10 + $0x8] sm:$0xff] %v3461
    %3490 = vst [vmem:[%s10 + $0x10] sm:$0xff] %v3466
    %3491 = vst [vmem:[%s10 + $0x18] sm:$0xff] %v3469
    %3492 = vst [vmem:[%s10 + $0x20] sm:$0xff] %v3474
    %3493 = vst [vmem:[%s10 + $0x28] sm:$0xff] %v3477
    %3494 = vst [vmem:[%s10 + $0x30] sm:$0xff] %v3482
    %3495 = vst [vmem:[%s10 + $0x38] sm:$0xff] %v3485
    // Predicated region
    $region74: #{char_lstm_forward.1} parent=1 // pred_check
      _
    $region75: #{char_lstm_forward.1} parent=1 // pred_check_branch
      %3497 = sbr.rel (0) target = $region77
    $region76: #{char_lstm_forward.1} parent=1 // pred_region
      _
    $region77: #{char_lstm_forward.1} parent=1 // pred_fallthru
      _
    // Predicated region
    $region78: #{char_lstm_forward.1} parent=1 // pred_check
      _
    $region79: #{char_lstm_forward.1} parent=1 // pred_check_branch
      %3499 = sbr.rel (0) target = $region81
    $region80: #{char_lstm_forward.1} parent=1 // pred_region
      _
    $region81: #{char_lstm_forward.1} parent=1 // pred_fallthru
      _
    // Predicated region
    $region82: #{char_lstm_forward.1} parent=1 // pred_check
      _
    $region83: #{char_lstm_forward.1} parent=1 // pred_check_branch
      %3501 = sbr.rel (0) target = $region85
    $region84: #{char_lstm_forward.1} parent=1 // pred_region
      _
    $region85: #{char_lstm_forward.1} parent=1 // pred_fallthru
      _
    // Predicated region
    $region86: #{char_lstm_forward.1} parent=1 // pred_check
      _
    $region87: #{char_lstm_forward.1} parent=1 // pred_check_branch
      %3503 = sbr.rel (0) target = $region89
    $region88: #{char_lstm_forward.1} parent=1 // pred_region
      _
    $region89: #{char_lstm_forward.1} parent=1 // pred_fallthru
      _
    // Predicated region
    $region90: #{char_lstm_forward.1} parent=1 // pred_check
      _
    $region91: #{char_lstm_forward.1} parent=1 // pred_check_branch
      %3505 = sbr.rel (0) target = $region93
    $region92: #{char_lstm_forward.1} parent=1 // pred_region
      _
    $region93: #{char_lstm_forward.1} parent=1 // pred_fallthru
      _
    // Predicated region
    $region94: #{char_lstm_forward.1} parent=1 // pred_check
      _
    $region95: #{char_lstm_forward.1} parent=1 // pred_check_branch
      %3507 = sbr.rel (0) target = $region97
    $region96: #{char_lstm_forward.1} parent=1 // pred_region
      _
    $region97: #{char_lstm_forward.1} parent=1 // pred_fallthru
      _
    %3508 = vsyncpa [#allocation6], 1
    %3509 = vsyncpa [#allocation10], 1
    %3510 = vsyncpa [#allocation13], 1
    %3511 = vsyncpa [#allocation16], 1
    %3512 = vsyncpa [#allocation7], 1

</llo_original>
